<compile_context>
chip_gen: v6e
topology: v6e:2x2x1
jax: 0.10.0
libtpu: 0.0.40
codegen_flags: <defaults>
</compile_context>

<pallas_src>
import jax
import jax.numpy as jnp
from jax.experimental import pallas as pl
from jax.experimental.pallas import tpu as pltpu

IN_FEATURES = 1024
OUT_FEATURES = 1024
NUM_LAYERS = 5


def net_kernel(x_ref, w_ref, b_ref, o_ref, h_cur):
    """One grid step == one layer.

    x_ref:  (B, 1024)        f32   network input (resident; read once at layer 0)
    w_ref:  (1024, 1024)     bf16  this layer's weight, pre-transposed to [in, out]
    b_ref:  (5, 1, 1024)     f32   ALL biases, resident in VMEM
    o_ref:  (B, 1024)        f32   final output block (constant index -> one writeback)
    h_cur:  (B, 1024)        bf16  activation carry (VMEM scratch)
    """
    layer = pl.program_id(0)
    last_layer = pl.num_programs(0) - 1

    # Initialize the activation carry from the network input once.
    @pl.when(layer == 0)
    def _():
        h_cur[...] = x_ref[...].astype(jnp.bfloat16)

    # bf16 x bf16 matmul with f32 accumulation on the MXU, plus resident bias.
    y = jnp.dot(h_cur[...], w_ref[...], preferred_element_type=jnp.float32)
    y = y + b_ref[layer]  # (B, 1024) + (1, 1024) broadcast, f32

    # Intermediate layers: carry the activation forward in bf16.
    @pl.when(layer != last_layer)
    def _():
        h_cur[...] = y.astype(jnp.bfloat16)

    # Final layer: store into the resident output block (written to HBM once).
    @pl.when(layer == last_layer)
    def _():
        o_ref[...] = y.astype(o_ref.dtype)


def net_forward(x, weights, biases):
    """x: [B, 1024] f32; weights: [5, 1024, 1024] bf16 ([in, out]); biases: [5, 1, 1024] f32."""
    B = x.shape[0]
    return pl.pallas_call(
        net_kernel,
        out_shape=jax.ShapeDtypeStruct((B, OUT_FEATURES), x.dtype),
        grid_spec=pltpu.PrefetchScalarGridSpec(
            num_scalar_prefetch=0,
            grid=(NUM_LAYERS,),
            in_specs=[
                # Network input: one resident block for the whole grid.
                pl.BlockSpec((B, IN_FEATURES), lambda l: (0, 0)),
                # Full-width weight of layer l (layer axis squeezed), bf16, 2 MiB DMA/step.
                pl.BlockSpec((None, IN_FEATURES, OUT_FEATURES), lambda l: (l, 0, 0)),
                # All biases resident: constant index map, indexed by `layer` in-kernel.
                pl.BlockSpec((NUM_LAYERS, 1, OUT_FEATURES), lambda l: (0, 0, 0)),
            ],
            # Constant block index -> output stays resident in VMEM and is
            # written back to HBM once after the last grid step.
            out_specs=pl.BlockSpec((B, OUT_FEATURES), lambda l: (0, 0)),
            scratch_shapes=[
                pltpu.VMEM((B, OUT_FEATURES), jnp.bfloat16),  # h_cur
            ],
        ),
        compiler_params=pltpu.CompilerParams(
            # The layer axis carries sequential state (h_cur, resident output).
            dimension_semantics=("arbitrary",),
            # Working set ~4.1 MiB (2 double-buffered weight blocks + residents);
            # 32 MiB leaves plenty of headroom even on v7x (64 MiB per-TC VMEM).
            vmem_limit_bytes=32 * 1024 * 1024,
        ),
    )(x, weights, biases)


def init_params(key):
    """Deterministic synthetic parameters matching torch.nn.Linear(1024, 1024) x5.

    Weights are returned pre-transposed to [in, out] and stored in bf16 (the
    kernel's HBM weight format); biases stay f32.
    """
    ws, bs = [], []
    for _ in range(NUM_LAYERS):
        kw, kb, key = jax.random.split(key, 3)
        bound = 1.0 / jnp.sqrt(IN_FEATURES)
        # PyTorch layout [out, in]; transpose to [in, out] for the kernel.
        w_torch = jax.random.uniform(
            kw, (OUT_FEATURES, IN_FEATURES), jnp.float32, -bound, bound
        )
        b = jax.random.uniform(kb, (OUT_FEATURES,), jnp.float32, -bound, bound)
        ws.append(w_torch.T.astype(jnp.bfloat16))
        bs.append(b.reshape(1, OUT_FEATURES))
    return jnp.stack(ws, axis=0), jnp.stack(bs, axis=0)


def reference_forward(x, weights_bf16, biases):
    """Pure-JAX reference mirroring the kernel's numerics (bf16 acts/weights, f32 accum)."""
    h = x.astype(jnp.bfloat16)
    y = None
    for i in range(NUM_LAYERS):
        y = (
            jnp.dot(h, weights_bf16[i], preferred_element_type=jnp.float32)
            + biases[i]
        )
        h = y.astype(jnp.bfloat16)
    return y


if __name__ == "__main__":
    key = jax.random.PRNGKey(0)
    kx, kp = jax.random.split(key)
    B = 8  # small batch
    x = jax.random.normal(kx, (B, IN_FEATURES), jnp.float32)
    weights, biases = init_params(kp)

    out = net_forward(x, weights, biases)
    out = jax.block_until_ready(out)

    ref = reference_forward(x, weights, biases)
    assert out.shape == (B, OUT_FEATURES)
    # Same bf16 rounding points as the kernel; tolerance covers MXU vs XLA
    # accumulation-order differences.
    assert jnp.allclose(out, ref, atol=1e-2, rtol=1e-2)
    print("KERNEL_OK")
</pallas_src>

<mosaic_0001>
module attributes {stable_mosaic.version = 11 : i64} {
  func.func @net_kernel(%arg0: i32, %arg1: memref<8x1024xf32, #tpu.memory_space<vmem>>, %arg2: memref<1x1024x1024xbf16, #tpu.memory_space<vmem>>, %arg3: memref<5x1x1024xf32, #tpu.memory_space<vmem>>, %arg4: memref<8x1024xf32, #tpu.memory_space<vmem>>, %arg5: memref<8x1024xbf16, #tpu.memory_space<vmem>>) attributes {dimension_semantics = [#tpu.dimension_semantics<arbitrary>], iteration_bounds = array<i64: 5>, scalar_prefetch = 0 : i64, scratch_operands = 1 : i64, tpu.core_type = #tpu.core_type<tc>, window_params = [{pipeline_mode = #tpu.pipeline_mode<synchronous>, transform_indices = @transform_0, window_bounds = array<i64: 8, 1024>}, {transform_indices = @transform_1, window_bounds = array<i64: 1, 1024, 1024>}, {pipeline_mode = #tpu.pipeline_mode<synchronous>, transform_indices = @transform_2, window_bounds = array<i64: 5, 1, 1024>}, {pipeline_mode = #tpu.pipeline_mode<synchronous>, transform_indices = @transform_3, window_bounds = array<i64: 8, 1024>}]} {
    %c0_i32 = arith.constant 0 : i32
    %0 = arith.cmpi eq, %arg0, %c0_i32 : i32
    %1 = arith.extui %0 : i1 to i32
    %c0_i32_0 = arith.constant 0 : i32
    %2 = arith.cmpi ne, %1, %c0_i32_0 : i32
    scf.if %2 {
      %c0_10 = arith.constant 0 : index
      %c0_11 = arith.constant 0 : index
      %18 = vector.load %arg1[%c0_10, %c0_11] : memref<8x1024xf32, #tpu.memory_space<vmem>>, vector<8x1024xf32>
      %19 = arith.truncf %18 : vector<8x1024xf32> to vector<8x1024xbf16>
      %c0_12 = arith.constant 0 : index
      %c0_13 = arith.constant 0 : index
      %20 = vector.load %arg5[%c0_12, %c0_13] : memref<8x1024xbf16, #tpu.memory_space<vmem>>, vector<8x1024xbf16>
      tpu.vector_store %arg5[%c0_12, %c0_13], %19 {strides = array<i32>} : memref<8x1024xbf16, #tpu.memory_space<vmem>>, vector<8x1024xbf16>,
    } else {
    }
    %c0 = arith.constant 0 : index
    %c0_1 = arith.constant 0 : index
    %3 = vector.load %arg5[%c0, %c0_1] : memref<8x1024xbf16, #tpu.memory_space<vmem>>, vector<8x1024xbf16>
    %c0_2 = arith.constant 0 : index
    %c0_3 = arith.constant 0 : index
    %c0_4 = arith.constant 0 : index
    %4 = vector.load %arg2[%c0_2, %c0_3, %c0_4] : memref<1x1024x1024xbf16, #tpu.memory_space<vmem>>, vector<1x1024x1024xbf16>
    %5 = vector.shape_cast %4 : vector<1x1024x1024xbf16> to vector<1024x1024xbf16>
    %cst = arith.constant dense<0.000000e+00> : vector<8x1024xf32>
    %6 = tpu.matmul %3, %5, %cst {dimension_numbers = #tpu.dot_dimension_numbers<[1], [0], [0], [1], [0, 0, 1, 1], [], []>} : vector<8x1024xbf16>, vector<1024x1024xbf16>, vector<8x1024xf32> -> vector<8x1024xf32>
    %7 = arith.index_cast %arg0 : i32 to index
    %c0_5 = arith.constant 0 : index
    %c0_6 = arith.constant 0 : index
    %8 = vector.load %arg3[%7, %c0_5, %c0_6] : memref<5x1x1024xf32, #tpu.memory_space<vmem>>, vector<1x1x1024xf32>
    %9 = vector.shape_cast %8 : vector<1x1x1024xf32> to vector<1x1024xf32>
    %10 = vector.broadcast %9 : vector<1x1024xf32> to vector<8x1024xf32>
    %11 = arith.addf %6, %10 : vector<8x1024xf32>
    %c4_i32 = arith.constant 4 : i32
    %12 = arith.cmpi ne, %arg0, %c4_i32 : i32
    %13 = arith.extui %12 : i1 to i32
    %c0_i32_7 = arith.constant 0 : i32
    %14 = arith.cmpi ne, %13, %c0_i32_7 : i32
    scf.if %14 {
      %18 = arith.truncf %11 : vector<8x1024xf32> to vector<8x1024xbf16>
      %c0_10 = arith.constant 0 : index
      %c0_11 = arith.constant 0 : index
      %19 = vector.load %arg5[%c0_10, %c0_11] : memref<8x1024xbf16, #tpu.memory_space<vmem>>, vector<8x1024xbf16>
      tpu.vector_store %arg5[%c0_10, %c0_11], %18 {strides = array<i32>} : memref<8x1024xbf16, #tpu.memory_space<vmem>>, vector<8x1024xbf16>,
    } else {
    }
    %c4_i32_8 = arith.constant 4 : i32
    %15 = arith.cmpi eq, %arg0, %c4_i32_8 : i32
    %16 = arith.extui %15 : i1 to i32
    %c0_i32_9 = arith.constant 0 : i32
    %17 = arith.cmpi ne, %16, %c0_i32_9 : i32
    scf.if %17 {
      %c0_10 = arith.constant 0 : index
      %c0_11 = arith.constant 0 : index
      %18 = vector.load %arg4[%c0_10, %c0_11] : memref<8x1024xf32, #tpu.memory_space<vmem>>, vector<8x1024xf32>
      tpu.vector_store %arg4[%c0_10, %c0_11], %11 {strides = array<i32>} : memref<8x1024xf32, #tpu.memory_space<vmem>>, vector<8x1024xf32>,
    } else {
    }
    return
  }
  func.func @transform_0(%arg0: i32) -> (i32, i32) {
    %c0_i32 = arith.constant 0 : i32
    %c0_i32_0 = arith.constant 0 : i32
    %c0_i32_1 = arith.constant 0 : i32
    return %c0_i32, %c0_i32_0 : i32, i32
  }
  func.func @transform_1(%arg0: i32) -> (i32, i32, i32) {
    %c0_i32 = arith.constant 0 : i32
    %c0_i32_0 = arith.constant 0 : i32
    %c0_i32_1 = arith.constant 0 : i32
    return %arg0, %c0_i32, %c0_i32_0 : i32, i32, i32
  }
  func.func @transform_2(%arg0: i32) -> (i32, i32, i32) {
    %c0_i32 = arith.constant 0 : i32
    %c0_i32_0 = arith.constant 0 : i32
    %c0_i32_1 = arith.constant 0 : i32
    %c0_i32_2 = arith.constant 0 : i32
    return %c0_i32, %c0_i32_0, %c0_i32_1 : i32, i32, i32
  }
  func.func @transform_3(%arg0: i32) -> (i32, i32) {
    %c0_i32 = arith.constant 0 : i32
    %c0_i32_0 = arith.constant 0 : i32
    %c0_i32_1 = arith.constant 0 : i32
    return %c0_i32, %c0_i32_0 : i32, i32
  }
}

</mosaic_0001>

<llo_original>
// kernel: tpu_custom_call.1
$region0: #{tpu_custom_call.1}
  #allocation0 [shape = 'u32[]', space=smem, size = 0x4, offset = 0x4, fixed_abs, tag = 'smem constant byte address 0x4 - core index']
  #allocation1 [shape = 'u32[144,128]{1,0:T(1,128)}', space=vmem, size = 0x12000, scoped, tag = 'internal scratch']
  #allocation2 [shape = 'bf16[8,1024]{1,0:T(8,128)(2,1)}', space=vmem, size = 0x4000, scoped, tag = 'scratch operand']
  %s0 = inlined_call_operand.hbm [shape: f32[8,1024], index: 0, kind: input, shape index: {}]
  %s1 = inlined_call_operand.hbm [shape: bf16[5,1024,1024], index: 1, kind: input, shape index: {}]
  %s2 = inlined_call_operand.hbm [shape: f32[5,1,1024], index: 2, kind: input, shape index: {}]
  %s3 = inlined_call_operand.hbm [shape: f32[8,1024], index: 3, kind: output, shape index: {}]
  %s4 = sld [smem:[#allocation0]]
  $region69: #{tpu_custom_call.1} parent=0
    _
  %s6 = ssub.s32 1, %s4
  %s7 = scalar_select 0, %s6, %s4
  $region1: #{tpu_custom_call.1} parent=0
    #allocation3 [shape = 'u8[32768]{0}', space=vmem, size = 0x8000, scoped, tag = 'input window, operand 0, single buffered']
    #allocation4 [shape = 's32[2]{0}', space=sflag, size = 0x8, scoped, tag = 'scoped memory for tpu_custom_call.1']
    #allocation5 [shape = 's32[2]{0}', space=sflag, size = 0x8, scoped, tag = 'scoped memory for tpu_custom_call.1']
    #allocation6 [shape = 'u8[4194304]{0}', space=vmem, size = 0x400000, scoped, tag = 'input window, operand 1']
    #allocation7 [shape = 's32[2]{0}', space=sflag, size = 0x8, scoped, tag = 'scoped memory for tpu_custom_call.1']
    #allocation8 [shape = 'u8[20480]{0}', space=vmem, size = 0x5000, scoped, tag = 'input window, operand 2, single buffered']
    #allocation9 [shape = 'u8[32768]{0}', space=vmem, size = 0x8000, scoped, tag = 'output window, operand 0, single buffered']
    %8 = vsyncpa [#allocation4], 0
    %9 = vsyncpa [#allocation7], 0
    %s10 = scalar_lea.sflag [#allocation7], 1
    %11 = vsyncpa %s10, 0
    %12 = vsyncpa [#allocation5], 0
    loop: start=0, step=1, limit=7
    $region2: #{tpu_custom_call.1} parent=1 // loop_pre_header
      _
    $region3: #{tpu_custom_call.1} parent=1 // loop_header
      %s14 = sphi 0, %s18
      %p15 = scmp.ge.s32.totalorder %s14, 7
      %s22 = sphi 0, %s22
      %s24 = sphi 0, %s22
      %s25 = sphi 0, %s24
      %s39 = sphi 0, %s25
      %s45 = sphi 0, %s47
      %s48 = sphi 0, %s45
      %s49 = sphi 0, %s48
      %s65 = sphi 0, %s49
      %s69 = sphi 0, %s69
      %s71 = sphi 0, %s69
      %s72 = sphi 0, %s71
      %s86 = sphi 0, %s72
      %s90 = sphi 0, %s90
      %s92 = sphi 0, %s90
      %s93 = sphi 0, %s92
      %s107 = sphi 0, %s93
    $region4: #{tpu_custom_call.1} parent=1 // loop_header_branch
      %17 = sbr.rel (%p15) target = $region8
    $region5: #{tpu_custom_call.1} parent=1 // loop_body
      %s19 = ssub.s32 %s14, 1
      %s20 = ssub.s32 %s14, 2
      %s21 = sadd.s32 %s14, 1
      %s23 = sadd.s32 %s22, 1
      %p26 = scmp.eq.s32.totalorder %s14, 4
      %p27 = scmp.ne.s32.totalorder %s22, %s24
      %p28 = scmp.eq.s32.totalorder %s14, 0
      %p29 = por %p27, %p28
      %p30 = scmp.ne.s32.totalorder %s22, %s24
      %p31 = scmp.eq.s32.totalorder %s19, 4
      %p32 = por %p30, %p31
      %p33 = scmp.ne.s32.totalorder %s24, %s25
      %p34 = scmp.eq.s32.totalorder %s19, 0
      %p35 = por %p33, %p34
      %p36 = scmp.ne.s32.totalorder %s24, %s25
      %p37 = scmp.eq.s32.totalorder %s20, 4
      %p38 = por %p36, %p37
      %p40 = scmp.ne.s32.totalorder %s25, %s39
      %p41 = scmp.eq.s32.totalorder %s20, 0
      %p42 = por %p40, %p41
      %s43 = ssub.s32 %s14, %s21
      %p44 = scmp.eq.s32.totalorder %s43, 0
      %s46 = sadd.s32 %s45, 1
      %s47 = scalar_select %p44, %s45, %s46
      %p50 = pneg %p44
      %p51 = scmp.eq.s32.totalorder %s14, 4
      %p52 = por %p50, %p51
      %p53 = scmp.ne.s32.totalorder %s45, %s48
      %p54 = scmp.eq.s32.totalorder %s14, 0
      %p55 = por %p53, %p54
      %p56 = scmp.ne.s32.totalorder %s45, %s48
      %p57 = scmp.eq.s32.totalorder %s19, 4
      %p58 = por %p56, %p57
      %p59 = scmp.ne.s32.totalorder %s48, %s49
      %p60 = scmp.eq.s32.totalorder %s19, 0
      %p61 = por %p59, %p60
      %p62 = scmp.ne.s32.totalorder %s48, %s49
      %p63 = scmp.eq.s32.totalorder %s20, 4
      %p64 = por %p62, %p63
      %p66 = scmp.ne.s32.totalorder %s49, %s65
      %p67 = scmp.eq.s32.totalorder %s20, 0
      %p68 = por %p66, %p67
      %s70 = sadd.s32 %s69, 1
      %p73 = scmp.eq.s32.totalorder %s14, 4
      %p74 = scmp.ne.s32.totalorder %s69, %s71
      %p75 = scmp.eq.s32.totalorder %s14, 0
      %p76 = por %p74, %p75
      %p77 = scmp.ne.s32.totalorder %s69, %s71
      %p78 = scmp.eq.s32.totalorder %s19, 4
      %p79 = por %p77, %p78
      %p80 = scmp.ne.s32.totalorder %s71, %s72
      %p81 = scmp.eq.s32.totalorder %s19, 0
      %p82 = por %p80, %p81
      %p83 = scmp.ne.s32.totalorder %s71, %s72
      %p84 = scmp.eq.s32.totalorder %s20, 4
      %p85 = por %p83, %p84
      %p87 = scmp.ne.s32.totalorder %s72, %s86
      %p88 = scmp.eq.s32.totalorder %s20, 0
      %p89 = por %p87, %p88
      %s91 = sadd.s32 %s90, 1
      %p94 = scmp.eq.s32.totalorder %s14, 4
      %p95 = scmp.ne.s32.totalorder %s90, %s92
      %p96 = scmp.eq.s32.totalorder %s14, 0
      %p97 = por %p95, %p96
      %p98 = scmp.ne.s32.totalorder %s90, %s92
      %p99 = scmp.eq.s32.totalorder %s19, 4
      %p100 = por %p98, %p99
      %p101 = scmp.ne.s32.totalorder %s92, %s93
      %p102 = scmp.eq.s32.totalorder %s19, 0
      %p103 = por %p101, %p102
      %p104 = scmp.ne.s32.totalorder %s92, %s93
      %p105 = scmp.eq.s32.totalorder %s20, 4
      %p106 = por %p104, %p105
      %p108 = scmp.ne.s32.totalorder %s93, %s107
      %p109 = scmp.eq.s32.totalorder %s20, 0
      %p110 = por %p108, %p109
      %p111 = scmp.le.s32.totalorder 1, %s14
      %p112 = scmp.lt.s32.totalorder %s14, 6
      %p113 = pnand %p111, %p112
      %p114 = pneg %p113
      // Predicated region
      $region9: #{tpu_custom_call.1} parent=5 // pred_check
        _
      $region10: #{tpu_custom_call.1} parent=5 // pred_check_branch
        %116 = sbr.rel (%p113) target = $region12
      $region11: #{tpu_custom_call.1} parent=5 // pred_region
        %s117 = ssub.s32 %s14, 1
        // Predicated region
        $region13: #{tpu_custom_call.1} parent=11 // pred_check
          %p118 = pneg %p35
        $region14: #{tpu_custom_call.1} parent=11 // pred_check_branch
          %120 = sbr.rel (%p118) target = $region16
        $region15: #{tpu_custom_call.1} parent=11 // pred_region
          %s122 = ssub.s32 1024, 1024
          %123 = vsyncadd [#allocation4], %s122
          %s125 = sshll.u32 [#allocation3], 4
          %s126 = int_to_ptr.vmem [resolvable:$true] %s125
          %128 = dma.hbm_to_vmem [thread:$0]  %s0, 1024, %s126, [#allocation4]
        $region16: #{tpu_custom_call.1} parent=11 // pred_fallthru
          _
        // Predicated region
        $region17: #{tpu_custom_call.1} parent=11 // pred_check
          %p129 = pneg %p82
        $region18: #{tpu_custom_call.1} parent=11 // pred_check_branch
          %131 = sbr.rel (%p129) target = $region20
        $region19: #{tpu_custom_call.1} parent=11 // pred_region
          %s133 = ssub.s32 640, 640
          %134 = vsyncadd [#allocation7], %s133
          %s135 = sshll.u32 [#allocation8], 4
          %s136 = int_to_ptr.vmem [resolvable:$true] %s135
          %141 = dma.hbm_to_vmem [thread:$0]  %s2, 640, %s136, [#allocation7], 128, 128, 8
        $region20: #{tpu_custom_call.1} parent=11 // pred_fallthru
          _
      $region12: #{tpu_custom_call.1} parent=5 // pred_fallthru
        _
      %p142 = scmp.lt.s32.totalorder %s14, 5
      // Predicated region
      $region21: #{tpu_custom_call.1} parent=5 // pred_check
        %p143 = pneg %p142
      $region22: #{tpu_custom_call.1} parent=5 // pred_check_branch
        %145 = sbr.rel (%p143) target = $region24
      $region23: #{tpu_custom_call.1} parent=5 // pred_region
        // Predicated region
        $region25: #{tpu_custom_call.1} parent=23 // pred_check
          %p146 = pneg %p55
        $region26: #{tpu_custom_call.1} parent=23 // pred_check_branch
          %148 = sbr.rel (%p146) target = $region28
        $region27: #{tpu_custom_call.1} parent=23 // pred_region
          %s149 = sand.u32 %s14, 1
          %s150 = scalar_lea.sflag [#allocation7], %s149
          %s151 = sand.u32 %s45, 1
          %s152 = smul.addr %s151, 4096
          %s153 = scalar_lea.vmem [#allocation6], %s152
          %s155 = ssub.s32 65536, 65536
          %156 = vsyncadd %s150, %s155
          %s157 = smul.addr %s14, 1024
          %s158 = smul.addr %s157, 64
          %s159 = scalar_lea.hbm %s1, %s158
          %s160 = sshll.u32 %s153, 4
          %s161 = int_to_ptr.vmem [resolvable:$true] %s160
          %166 = dma.hbm_to_vmem [thread:$0]  %s159, 65536, %s161, %s150, 512, 512, 32
        $region28: #{tpu_custom_call.1} parent=23 // pred_fallthru
          _
      $region24: #{tpu_custom_call.1} parent=5 // pred_fallthru
        _
      %p167 = scmp.le.s32.totalorder 1, %s14
      %p168 = scmp.lt.s32.totalorder %s14, 6
      %p169 = pnand %p167, %p168
      %p170 = pneg %p169
      // Predicated region
      $region29: #{tpu_custom_call.1} parent=5 // pred_check
        _
      $region30: #{tpu_custom_call.1} parent=5 // pred_check_branch
        %172 = sbr.rel (%p169) target = $region32
      $region31: #{tpu_custom_call.1} parent=5 // pred_region
        %s173 = ssub.s32 %s14, 1
        // Predicated region
        $region33: #{tpu_custom_call.1} parent=31 // pred_check
          %p174 = pneg %p35
        $region34: #{tpu_custom_call.1} parent=31 // pred_check_branch
          %176 = sbr.rel (%p174) target = $region36
        $region35: #{tpu_custom_call.1} parent=31 // pred_region
          %177 = dma.done [#allocation4], 1024
        $region36: #{tpu_custom_call.1} parent=31 // pred_fallthru
          _
        %s178 = sand.u32 %s19, 1
        %s179 = scalar_lea.sflag [#allocation7], %s178
        %s180 = sand.u32 %s48, 1
        %s181 = smul.addr %s180, 4096
        %s182 = scalar_lea.vmem [#allocation6], %s181
        // Predicated region
        $region37: #{tpu_custom_call.1} parent=31 // pred_check
          %p183 = pneg %p61
        $region38: #{tpu_custom_call.1} parent=31 // pred_check_branch
          %185 = sbr.rel (%p183) target = $region40
        $region39: #{tpu_custom_call.1} parent=31 // pred_region
          %186 = dma.done %s179, 65536
        $region40: #{tpu_custom_call.1} parent=31 // pred_fallthru
          _
        // Predicated region
        $region41: #{tpu_custom_call.1} parent=31 // pred_check
          %p187 = pneg %p82
        $region42: #{tpu_custom_call.1} parent=31 // pred_check_branch
          %189 = sbr.rel (%p187) target = $region44
        $region43: #{tpu_custom_call.1} parent=31 // pred_region
          %190 = dma.done [#allocation7], 640
        $region44: #{tpu_custom_call.1} parent=31 // pred_fallthru
          _
        %p191 = pneg %p35
        %p192 = pneg %p32
        %s193 = sand.u32 %s19, 1
        %s194 = scalar_lea.sflag [#allocation7], %s193
        %s195 = sand.u32 %s48, 1
        %s196 = smul.addr %s195, 4096
        %s197 = scalar_lea.vmem [#allocation6], %s196
        %p198 = pneg %p61
        %p199 = pneg %p58
        %p200 = pneg %p82
        %p201 = pneg %p79
        %p202 = pneg %p103
        %p203 = pneg %p100
        %p204 = scmp.eq.s32.totalorder %s19, 0
        // Predicated region
        $region45: #{tpu_custom_call.1} parent=31 // pred_check
          %p205 = pneg %p204
        $region46: #{tpu_custom_call.1} parent=31 // pred_check_branch
          %207 = sbr.rel (%p205) target = $region48
        $region47: #{tpu_custom_call.1} parent=31 // pred_region
          %v208 = vld [vmem:[#allocation3] sm:$0xff]
          %v209 = vld [vmem:[#allocation3 + $0x8] sm:$0xff]
          %v210 = vld [vmem:[#allocation3 + $0x10] sm:$0xff]
          %v211 = vld [vmem:[#allocation3 + $0x18] sm:$0xff]
          %v212 = vld [vmem:[#allocation3 + $0x20] sm:$0xff]
          %v213 = vld [vmem:[#allocation3 + $0x28] sm:$0xff]
          %v214 = vld [vmem:[#allocation3 + $0x30] sm:$0xff]
          %v215 = vld [vmem:[#allocation3 + $0x38] sm:$0xff]
          %v216 = vpack.c.bf16 %v208, %v208
          %v217 = vpack.c.bf16 %v209, %v209
          %v218 = vpack.c.bf16 %v210, %v210
          %v219 = vpack.c.bf16 %v211, %v211
          %v220 = vpack.c.bf16 %v212, %v212
          %v221 = vpack.c.bf16 %v213, %v213
          %v222 = vpack.c.bf16 %v214, %v214
          %v223 = vpack.c.bf16 %v215, %v215
          %v232 = vunpack.c.l.b16 %v216
          %v233 = vunpack.c.l.b16 %v217
          %v234 = vunpack.c.l.b16 %v218
          %v235 = vunpack.c.l.b16 %v219
          %v236 = vunpack.c.l.b16 %v220
          %v237 = vunpack.c.l.b16 %v221
          %v238 = vunpack.c.l.b16 %v222
          %v239 = vunpack.c.l.b16 %v223
          %v240 = vpack.c.b16 %v233, %v232
          %v241 = vpack.c.b16 %v235, %v234
          %v242 = vpack.c.b16 %v237, %v236
          %v243 = vpack.c.b16 %v239, %v238
          %248 = vst [vmem:[#allocation2] sm:$0xff] %v240
          %249 = vst [vmem:[#allocation2 + $0x8] sm:$0xff] %v241
          %250 = vst [vmem:[#allocation2 + $0x10] sm:$0xff] %v242
          %251 = vst [vmem:[#allocation2 + $0x18] sm:$0xff] %v243
        $region48: #{tpu_custom_call.1} parent=31 // pred_fallthru
          _
        %v252 = vld [vmem:[#allocation2] sm:$0xff]
        %v253 = vld [vmem:[#allocation2 + $0x8] sm:$0xff]
        %v254 = vld [vmem:[#allocation2 + $0x10] sm:$0xff]
        %v255 = vld [vmem:[#allocation2 + $0x18] sm:$0xff]
        %v256 = vld [vmem:[%s182] sm:$0xff]
        %v257 = vld [vmem:[%s182 + $0x8] sm:$0xff]
        %v258 = vld [vmem:[%s182 + $0x10] sm:$0xff]
        %v259 = vld [vmem:[%s182 + $0x18] sm:$0xff]
        %v260 = vld [vmem:[%s182 + $0x20] sm:$0xff]
        %v261 = vld [vmem:[%s182 + $0x28] sm:$0xff]
        %v262 = vld [vmem:[%s182 + $0x30] sm:$0xff]
        %v263 = vld [vmem:[%s182 + $0x38] sm:$0xff]
        %v264 = vld [vmem:[%s182 + $0x40] sm:$0xff]
        %v265 = vld [vmem:[%s182 + $0x48] sm:$0xff]
        %v266 = vld [vmem:[%s182 + $0x50] sm:$0xff]
        %v267 = vld [vmem:[%s182 + $0x58] sm:$0xff]
        %v268 = vld [vmem:[%s182 + $0x60] sm:$0xff]
        %v269 = vld [vmem:[%s182 + $0x68] sm:$0xff]
        %v270 = vld [vmem:[%s182 + $0x70] sm:$0xff]
        %v271 = vld [vmem:[%s182 + $0x78] sm:$0xff]
        %v272 = vld [vmem:[%s182 + $0x80] sm:$0xff]
        %v273 = vld [vmem:[%s182 + $0x88] sm:$0xff]
        %v274 = vld [vmem:[%s182 + $0x90] sm:$0xff]
        %v275 = vld [vmem:[%s182 + $0x98] sm:$0xff]
        %v276 = vld [vmem:[%s182 + $0xa0] sm:$0xff]
        %v277 = vld [vmem:[%s182 + $0xa8] sm:$0xff]
        %v278 = vld [vmem:[%s182 + $0xb0] sm:$0xff]
        %v279 = vld [vmem:[%s182 + $0xb8] sm:$0xff]
        %v280 = vld [vmem:[%s182 + $0xc0] sm:$0xff]
        %v281 = vld [vmem:[%s182 + $0xc8] sm:$0xff]
        %v282 = vld [vmem:[%s182 + $0xd0] sm:$0xff]
        %v283 = vld [vmem:[%s182 + $0xd8] sm:$0xff]
        %v284 = vld [vmem:[%s182 + $0xe0] sm:$0xff]
        %v285 = vld [vmem:[%s182 + $0xe8] sm:$0xff]
        %v286 = vld [vmem:[%s182 + $0xf0] sm:$0xff]
        %v287 = vld [vmem:[%s182 + $0xf8] sm:$0xff]
        %v288 = vld [vmem:[%s182 + $0x100] sm:$0xff]
        %v289 = vld [vmem:[%s182 + $0x108] sm:$0xff]
        %v290 = vld [vmem:[%s182 + $0x110] sm:$0xff]
        %v291 = vld [vmem:[%s182 + $0x118] sm:$0xff]
        %v292 = vld [vmem:[%s182 + $0x120] sm:$0xff]
        %v293 = vld [vmem:[%s182 + $0x128] sm:$0xff]
        %v294 = vld [vmem:[%s182 + $0x130] sm:$0xff]
        %v295 = vld [vmem:[%s182 + $0x138] sm:$0xff]
        %v296 = vld [vmem:[%s182 + $0x140] sm:$0xff]
        %v297 = vld [vmem:[%s182 + $0x148] sm:$0xff]
        %v298 = vld [vmem:[%s182 + $0x150] sm:$0xff]
        %v299 = vld [vmem:[%s182 + $0x158] sm:$0xff]
        %v300 = vld [vmem:[%s182 + $0x160] sm:$0xff]
        %v301 = vld [vmem:[%s182 + $0x168] sm:$0xff]
        %v302 = vld [vmem:[%s182 + $0x170] sm:$0xff]
        %v303 = vld [vmem:[%s182 + $0x178] sm:$0xff]
        %v304 = vld [vmem:[%s182 + $0x180] sm:$0xff]
        %v305 = vld [vmem:[%s182 + $0x188] sm:$0xff]
        %v306 = vld [vmem:[%s182 + $0x190] sm:$0xff]
        %v307 = vld [vmem:[%s182 + $0x198] sm:$0xff]
        %v308 = vld [vmem:[%s182 + $0x1a0] sm:$0xff]
        %v309 = vld [vmem:[%s182 + $0x1a8] sm:$0xff]
        %v310 = vld [vmem:[%s182 + $0x1b0] sm:$0xff]
        %v311 = vld [vmem:[%s182 + $0x1b8] sm:$0xff]
        %v312 = vld [vmem:[%s182 + $0x1c0] sm:$0xff]
        %v313 = vld [vmem:[%s182 + $0x1c8] sm:$0xff]
        %v314 = vld [vmem:[%s182 + $0x1d0] sm:$0xff]
        %v315 = vld [vmem:[%s182 + $0x1d8] sm:$0xff]
        %v316 = vld [vmem:[%s182 + $0x1e0] sm:$0xff]
        %v317 = vld [vmem:[%s182 + $0x1e8] sm:$0xff]
        %v318 = vld [vmem:[%s182 + $0x1f0] sm:$0xff]
        %v319 = vld [vmem:[%s182 + $0x1f8] sm:$0xff]
        %v320 = vld [vmem:[%s182 + $0x200] sm:$0xff]
        %v321 = vld [vmem:[%s182 + $0x208] sm:$0xff]
        %v322 = vld [vmem:[%s182 + $0x210] sm:$0xff]
        %v323 = vld [vmem:[%s182 + $0x218] sm:$0xff]
        %v324 = vld [vmem:[%s182 + $0x220] sm:$0xff]
        %v325 = vld [vmem:[%s182 + $0x228] sm:$0xff]
        %v326 = vld [vmem:[%s182 + $0x230] sm:$0xff]
        %v327 = vld [vmem:[%s182 + $0x238] sm:$0xff]
        %v328 = vld [vmem:[%s182 + $0x240] sm:$0xff]
        %v329 = vld [vmem:[%s182 + $0x248] sm:$0xff]
        %v330 = vld [vmem:[%s182 + $0x250] sm:$0xff]
        %v331 = vld [vmem:[%s182 + $0x258] sm:$0xff]
        %v332 = vld [vmem:[%s182 + $0x260] sm:$0xff]
        %v333 = vld [vmem:[%s182 + $0x268] sm:$0xff]
        %v334 = vld [vmem:[%s182 + $0x270] sm:$0xff]
        %v335 = vld [vmem:[%s182 + $0x278] sm:$0xff]
        %v336 = vld [vmem:[%s182 + $0x280] sm:$0xff]
        %v337 = vld [vmem:[%s182 + $0x288] sm:$0xff]
        %v338 = vld [vmem:[%s182 + $0x290] sm:$0xff]
        %v339 = vld [vmem:[%s182 + $0x298] sm:$0xff]
        %v340 = vld [vmem:[%s182 + $0x2a0] sm:$0xff]
        %v341 = vld [vmem:[%s182 + $0x2a8] sm:$0xff]
        %v342 = vld [vmem:[%s182 + $0x2b0] sm:$0xff]
        %v343 = vld [vmem:[%s182 + $0x2b8] sm:$0xff]
        %v344 = vld [vmem:[%s182 + $0x2c0] sm:$0xff]
        %v345 = vld [vmem:[%s182 + $0x2c8] sm:$0xff]
        %v346 = vld [vmem:[%s182 + $0x2d0] sm:$0xff]
        %v347 = vld [vmem:[%s182 + $0x2d8] sm:$0xff]
        %v348 = vld [vmem:[%s182 + $0x2e0] sm:$0xff]
        %v349 = vld [vmem:[%s182 + $0x2e8] sm:$0xff]
        %v350 = vld [vmem:[%s182 + $0x2f0] sm:$0xff]
        %v351 = vld [vmem:[%s182 + $0x2f8] sm:$0xff]
        %v352 = vld [vmem:[%s182 + $0x300] sm:$0xff]
        %v353 = vld [vmem:[%s182 + $0x308] sm:$0xff]
        %v354 = vld [vmem:[%s182 + $0x310] sm:$0xff]
        %v355 = vld [vmem:[%s182 + $0x318] sm:$0xff]
        %v356 = vld [vmem:[%s182 + $0x320] sm:$0xff]
        %v357 = vld [vmem:[%s182 + $0x328] sm:$0xff]
        %v358 = vld [vmem:[%s182 + $0x330] sm:$0xff]
        %v359 = vld [vmem:[%s182 + $0x338] sm:$0xff]
        %v360 = vld [vmem:[%s182 + $0x340] sm:$0xff]
        %v361 = vld [vmem:[%s182 + $0x348] sm:$0xff]
        %v362 = vld [vmem:[%s182 + $0x350] sm:$0xff]
        %v363 = vld [vmem:[%s182 + $0x358] sm:$0xff]
        %v364 = vld [vmem:[%s182 + $0x360] sm:$0xff]
        %v365 = vld [vmem:[%s182 + $0x368] sm:$0xff]
        %v366 = vld [vmem:[%s182 + $0x370] sm:$0xff]
        %v367 = vld [vmem:[%s182 + $0x378] sm:$0xff]
        %v368 = vld [vmem:[%s182 + $0x380] sm:$0xff]
        %v369 = vld [vmem:[%s182 + $0x388] sm:$0xff]
        %v370 = vld [vmem:[%s182 + $0x390] sm:$0xff]
        %v371 = vld [vmem:[%s182 + $0x398] sm:$0xff]
        %v372 = vld [vmem:[%s182 + $0x3a0] sm:$0xff]
        %v373 = vld [vmem:[%s182 + $0x3a8] sm:$0xff]
        %v374 = vld [vmem:[%s182 + $0x3b0] sm:$0xff]
        %v375 = vld [vmem:[%s182 + $0x3b8] sm:$0xff]
        %v376 = vld [vmem:[%s182 + $0x3c0] sm:$0xff]
        %v377 = vld [vmem:[%s182 + $0x3c8] sm:$0xff]
        %v378 = vld [vmem:[%s182 + $0x3d0] sm:$0xff]
        %v379 = vld [vmem:[%s182 + $0x3d8] sm:$0xff]
        %v380 = vld [vmem:[%s182 + $0x3e0] sm:$0xff]
        %v381 = vld [vmem:[%s182 + $0x3e8] sm:$0xff]
        %v382 = vld [vmem:[%s182 + $0x3f0] sm:$0xff]
        %v383 = vld [vmem:[%s182 + $0x3f8] sm:$0xff]
        %v384 = vld [vmem:[%s182 + $0x400] sm:$0xff]
        %v385 = vld [vmem:[%s182 + $0x408] sm:$0xff]
        %v386 = vld [vmem:[%s182 + $0x410] sm:$0xff]
        %v387 = vld [vmem:[%s182 + $0x418] sm:$0xff]
        %v388 = vld [vmem:[%s182 + $0x420] sm:$0xff]
        %v389 = vld [vmem:[%s182 + $0x428] sm:$0xff]
        %v390 = vld [vmem:[%s182 + $0x430] sm:$0xff]
        %v391 = vld [vmem:[%s182 + $0x438] sm:$0xff]
        %v392 = vld [vmem:[%s182 + $0x440] sm:$0xff]
        %v393 = vld [vmem:[%s182 + $0x448] sm:$0xff]
        %v394 = vld [vmem:[%s182 + $0x450] sm:$0xff]
        %v395 = vld [vmem:[%s182 + $0x458] sm:$0xff]
        %v396 = vld [vmem:[%s182 + $0x460] sm:$0xff]
        %v397 = vld [vmem:[%s182 + $0x468] sm:$0xff]
        %v398 = vld [vmem:[%s182 + $0x470] sm:$0xff]
        %v399 = vld [vmem:[%s182 + $0x478] sm:$0xff]
        %v400 = vld [vmem:[%s182 + $0x480] sm:$0xff]
        %v401 = vld [vmem:[%s182 + $0x488] sm:$0xff]
        %v402 = vld [vmem:[%s182 + $0x490] sm:$0xff]
        %v403 = vld [vmem:[%s182 + $0x498] sm:$0xff]
        %v404 = vld [vmem:[%s182 + $0x4a0] sm:$0xff]
        %v405 = vld [vmem:[%s182 + $0x4a8] sm:$0xff]
        %v406 = vld [vmem:[%s182 + $0x4b0] sm:$0xff]
        %v407 = vld [vmem:[%s182 + $0x4b8] sm:$0xff]
        %v408 = vld [vmem:[%s182 + $0x4c0] sm:$0xff]
        %v409 = vld [vmem:[%s182 + $0x4c8] sm:$0xff]
        %v410 = vld [vmem:[%s182 + $0x4d0] sm:$0xff]
        %v411 = vld [vmem:[%s182 + $0x4d8] sm:$0xff]
        %v412 = vld [vmem:[%s182 + $0x4e0] sm:$0xff]
        %v413 = vld [vmem:[%s182 + $0x4e8] sm:$0xff]
        %v414 = vld [vmem:[%s182 + $0x4f0] sm:$0xff]
        %v415 = vld [vmem:[%s182 + $0x4f8] sm:$0xff]
        %v416 = vld [vmem:[%s182 + $0x500] sm:$0xff]
        %v417 = vld [vmem:[%s182 + $0x508] sm:$0xff]
        %v418 = vld [vmem:[%s182 + $0x510] sm:$0xff]
        %v419 = vld [vmem:[%s182 + $0x518] sm:$0xff]
        %v420 = vld [vmem:[%s182 + $0x520] sm:$0xff]
        %v421 = vld [vmem:[%s182 + $0x528] sm:$0xff]
        %v422 = vld [vmem:[%s182 + $0x530] sm:$0xff]
        %v423 = vld [vmem:[%s182 + $0x538] sm:$0xff]
        %v424 = vld [vmem:[%s182 + $0x540] sm:$0xff]
        %v425 = vld [vmem:[%s182 + $0x548] sm:$0xff]
        %v426 = vld [vmem:[%s182 + $0x550] sm:$0xff]
        %v427 = vld [vmem:[%s182 + $0x558] sm:$0xff]
        %v428 = vld [vmem:[%s182 + $0x560] sm:$0xff]
        %v429 = vld [vmem:[%s182 + $0x568] sm:$0xff]
        %v430 = vld [vmem:[%s182 + $0x570] sm:$0xff]
        %v431 = vld [vmem:[%s182 + $0x578] sm:$0xff]
        %v432 = vld [vmem:[%s182 + $0x580] sm:$0xff]
        %v433 = vld [vmem:[%s182 + $0x588] sm:$0xff]
        %v434 = vld [vmem:[%s182 + $0x590] sm:$0xff]
        %v435 = vld [vmem:[%s182 + $0x598] sm:$0xff]
        %v436 = vld [vmem:[%s182 + $0x5a0] sm:$0xff]
        %v437 = vld [vmem:[%s182 + $0x5a8] sm:$0xff]
        %v438 = vld [vmem:[%s182 + $0x5b0] sm:$0xff]
        %v439 = vld [vmem:[%s182 + $0x5b8] sm:$0xff]
        %v440 = vld [vmem:[%s182 + $0x5c0] sm:$0xff]
        %v441 = vld [vmem:[%s182 + $0x5c8] sm:$0xff]
        %v442 = vld [vmem:[%s182 + $0x5d0] sm:$0xff]
        %v443 = vld [vmem:[%s182 + $0x5d8] sm:$0xff]
        %v444 = vld [vmem:[%s182 + $0x5e0] sm:$0xff]
        %v445 = vld [vmem:[%s182 + $0x5e8] sm:$0xff]
        %v446 = vld [vmem:[%s182 + $0x5f0] sm:$0xff]
        %v447 = vld [vmem:[%s182 + $0x5f8] sm:$0xff]
        %v448 = vld [vmem:[%s182 + $0x600] sm:$0xff]
        %v449 = vld [vmem:[%s182 + $0x608] sm:$0xff]
        %v450 = vld [vmem:[%s182 + $0x610] sm:$0xff]
        %v451 = vld [vmem:[%s182 + $0x618] sm:$0xff]
        %v452 = vld [vmem:[%s182 + $0x620] sm:$0xff]
        %v453 = vld [vmem:[%s182 + $0x628] sm:$0xff]
        %v454 = vld [vmem:[%s182 + $0x630] sm:$0xff]
        %v455 = vld [vmem:[%s182 + $0x638] sm:$0xff]
        %v456 = vld [vmem:[%s182 + $0x640] sm:$0xff]
        %v457 = vld [vmem:[%s182 + $0x648] sm:$0xff]
        %v458 = vld [vmem:[%s182 + $0x650] sm:$0xff]
        %v459 = vld [vmem:[%s182 + $0x658] sm:$0xff]
        %v460 = vld [vmem:[%s182 + $0x660] sm:$0xff]
        %v461 = vld [vmem:[%s182 + $0x668] sm:$0xff]
        %v462 = vld [vmem:[%s182 + $0x670] sm:$0xff]
        %v463 = vld [vmem:[%s182 + $0x678] sm:$0xff]
        %v464 = vld [vmem:[%s182 + $0x680] sm:$0xff]
        %v465 = vld [vmem:[%s182 + $0x688] sm:$0xff]
        %v466 = vld [vmem:[%s182 + $0x690] sm:$0xff]
        %v467 = vld [vmem:[%s182 + $0x698] sm:$0xff]
        %v468 = vld [vmem:[%s182 + $0x6a0] sm:$0xff]
        %v469 = vld [vmem:[%s182 + $0x6a8] sm:$0xff]
        %v470 = vld [vmem:[%s182 + $0x6b0] sm:$0xff]
        %v471 = vld [vmem:[%s182 + $0x6b8] sm:$0xff]
        %v472 = vld [vmem:[%s182 + $0x6c0] sm:$0xff]
        %v473 = vld [vmem:[%s182 + $0x6c8] sm:$0xff]
        %v474 = vld [vmem:[%s182 + $0x6d0] sm:$0xff]
        %v475 = vld [vmem:[%s182 + $0x6d8] sm:$0xff]
        %v476 = vld [vmem:[%s182 + $0x6e0] sm:$0xff]
        %v477 = vld [vmem:[%s182 + $0x6e8] sm:$0xff]
        %v478 = vld [vmem:[%s182 + $0x6f0] sm:$0xff]
        %v479 = vld [vmem:[%s182 + $0x6f8] sm:$0xff]
        %v480 = vld [vmem:[%s182 + $0x700] sm:$0xff]
        %v481 = vld [vmem:[%s182 + $0x708] sm:$0xff]
        %v482 = vld [vmem:[%s182 + $0x710] sm:$0xff]
        %v483 = vld [vmem:[%s182 + $0x718] sm:$0xff]
        %v484 = vld [vmem:[%s182 + $0x720] sm:$0xff]
        %v485 = vld [vmem:[%s182 + $0x728] sm:$0xff]
        %v486 = vld [vmem:[%s182 + $0x730] sm:$0xff]
        %v487 = vld [vmem:[%s182 + $0x738] sm:$0xff]
        %v488 = vld [vmem:[%s182 + $0x740] sm:$0xff]
        %v489 = vld [vmem:[%s182 + $0x748] sm:$0xff]
        %v490 = vld [vmem:[%s182 + $0x750] sm:$0xff]
        %v491 = vld [vmem:[%s182 + $0x758] sm:$0xff]
        %v492 = vld [vmem:[%s182 + $0x760] sm:$0xff]
        %v493 = vld [vmem:[%s182 + $0x768] sm:$0xff]
        %v494 = vld [vmem:[%s182 + $0x770] sm:$0xff]
        %v495 = vld [vmem:[%s182 + $0x778] sm:$0xff]
        %v496 = vld [vmem:[%s182 + $0x780] sm:$0xff]
        %v497 = vld [vmem:[%s182 + $0x788] sm:$0xff]
        %v498 = vld [vmem:[%s182 + $0x790] sm:$0xff]
        %v499 = vld [vmem:[%s182 + $0x798] sm:$0xff]
        %v500 = vld [vmem:[%s182 + $0x7a0] sm:$0xff]
        %v501 = vld [vmem:[%s182 + $0x7a8] sm:$0xff]
        %v502 = vld [vmem:[%s182 + $0x7b0] sm:$0xff]
        %v503 = vld [vmem:[%s182 + $0x7b8] sm:$0xff]
        %v504 = vld [vmem:[%s182 + $0x7c0] sm:$0xff]
        %v505 = vld [vmem:[%s182 + $0x7c8] sm:$0xff]
        %v506 = vld [vmem:[%s182 + $0x7d0] sm:$0xff]
        %v507 = vld [vmem:[%s182 + $0x7d8] sm:$0xff]
        %v508 = vld [vmem:[%s182 + $0x7e0] sm:$0xff]
        %v509 = vld [vmem:[%s182 + $0x7e8] sm:$0xff]
        %v510 = vld [vmem:[%s182 + $0x7f0] sm:$0xff]
        %v511 = vld [vmem:[%s182 + $0x7f8] sm:$0xff]
        %v512 = vld [vmem:[%s182 + $0x800] sm:$0xff]
        %v513 = vld [vmem:[%s182 + $0x808] sm:$0xff]
        %v514 = vld [vmem:[%s182 + $0x810] sm:$0xff]
        %v515 = vld [vmem:[%s182 + $0x818] sm:$0xff]
        %v516 = vld [vmem:[%s182 + $0x820] sm:$0xff]
        %v517 = vld [vmem:[%s182 + $0x828] sm:$0xff]
        %v518 = vld [vmem:[%s182 + $0x830] sm:$0xff]
        %v519 = vld [vmem:[%s182 + $0x838] sm:$0xff]
        %v520 = vld [vmem:[%s182 + $0x840] sm:$0xff]
        %v521 = vld [vmem:[%s182 + $0x848] sm:$0xff]
        %v522 = vld [vmem:[%s182 + $0x850] sm:$0xff]
        %v523 = vld [vmem:[%s182 + $0x858] sm:$0xff]
        %v524 = vld [vmem:[%s182 + $0x860] sm:$0xff]
        %v525 = vld [vmem:[%s182 + $0x868] sm:$0xff]
        %v526 = vld [vmem:[%s182 + $0x870] sm:$0xff]
        %v527 = vld [vmem:[%s182 + $0x878] sm:$0xff]
        %v528 = vld [vmem:[%s182 + $0x880] sm:$0xff]
        %v529 = vld [vmem:[%s182 + $0x888] sm:$0xff]
        %v530 = vld [vmem:[%s182 + $0x890] sm:$0xff]
        %v531 = vld [vmem:[%s182 + $0x898] sm:$0xff]
        %v532 = vld [vmem:[%s182 + $0x8a0] sm:$0xff]
        %v533 = vld [vmem:[%s182 + $0x8a8] sm:$0xff]
        %v534 = vld [vmem:[%s182 + $0x8b0] sm:$0xff]
        %v535 = vld [vmem:[%s182 + $0x8b8] sm:$0xff]
        %v536 = vld [vmem:[%s182 + $0x8c0] sm:$0xff]
        %v537 = vld [vmem:[%s182 + $0x8c8] sm:$0xff]
        %v538 = vld [vmem:[%s182 + $0x8d0] sm:$0xff]
        %v539 = vld [vmem:[%s182 + $0x8d8] sm:$0xff]
        %v540 = vld [vmem:[%s182 + $0x8e0] sm:$0xff]
        %v541 = vld [vmem:[%s182 + $0x8e8] sm:$0xff]
        %v542 = vld [vmem:[%s182 + $0x8f0] sm:$0xff]
        %v543 = vld [vmem:[%s182 + $0x8f8] sm:$0xff]
        %v544 = vld [vmem:[%s182 + $0x900] sm:$0xff]
        %v545 = vld [vmem:[%s182 + $0x908] sm:$0xff]
        %v546 = vld [vmem:[%s182 + $0x910] sm:$0xff]
        %v547 = vld [vmem:[%s182 + $0x918] sm:$0xff]
        %v548 = vld [vmem:[%s182 + $0x920] sm:$0xff]
        %v549 = vld [vmem:[%s182 + $0x928] sm:$0xff]
        %v550 = vld [vmem:[%s182 + $0x930] sm:$0xff]
        %v551 = vld [vmem:[%s182 + $0x938] sm:$0xff]
        %v552 = vld [vmem:[%s182 + $0x940] sm:$0xff]
        %v553 = vld [vmem:[%s182 + $0x948] sm:$0xff]
        %v554 = vld [vmem:[%s182 + $0x950] sm:$0xff]
        %v555 = vld [vmem:[%s182 + $0x958] sm:$0xff]
        %v556 = vld [vmem:[%s182 + $0x960] sm:$0xff]
        %v557 = vld [vmem:[%s182 + $0x968] sm:$0xff]
        %v558 = vld [vmem:[%s182 + $0x970] sm:$0xff]
        %v559 = vld [vmem:[%s182 + $0x978] sm:$0xff]
        %v560 = vld [vmem:[%s182 + $0x980] sm:$0xff]
        %v561 = vld [vmem:[%s182 + $0x988] sm:$0xff]
        %v562 = vld [vmem:[%s182 + $0x990] sm:$0xff]
        %v563 = vld [vmem:[%s182 + $0x998] sm:$0xff]
        %v564 = vld [vmem:[%s182 + $0x9a0] sm:$0xff]
        %v565 = vld [vmem:[%s182 + $0x9a8] sm:$0xff]
        %v566 = vld [vmem:[%s182 + $0x9b0] sm:$0xff]
        %v567 = vld [vmem:[%s182 + $0x9b8] sm:$0xff]
        %v568 = vld [vmem:[%s182 + $0x9c0] sm:$0xff]
        %v569 = vld [vmem:[%s182 + $0x9c8] sm:$0xff]
        %v570 = vld [vmem:[%s182 + $0x9d0] sm:$0xff]
        %v571 = vld [vmem:[%s182 + $0x9d8] sm:$0xff]
        %v572 = vld [vmem:[%s182 + $0x9e0] sm:$0xff]
        %v573 = vld [vmem:[%s182 + $0x9e8] sm:$0xff]
        %v574 = vld [vmem:[%s182 + $0x9f0] sm:$0xff]
        %v575 = vld [vmem:[%s182 + $0x9f8] sm:$0xff]
        %v576 = vld [vmem:[%s182 + $0xa00] sm:$0xff]
        %v577 = vld [vmem:[%s182 + $0xa08] sm:$0xff]
        %v578 = vld [vmem:[%s182 + $0xa10] sm:$0xff]
        %v579 = vld [vmem:[%s182 + $0xa18] sm:$0xff]
        %v580 = vld [vmem:[%s182 + $0xa20] sm:$0xff]
        %v581 = vld [vmem:[%s182 + $0xa28] sm:$0xff]
        %v582 = vld [vmem:[%s182 + $0xa30] sm:$0xff]
        %v583 = vld [vmem:[%s182 + $0xa38] sm:$0xff]
        %v584 = vld [vmem:[%s182 + $0xa40] sm:$0xff]
        %v585 = vld [vmem:[%s182 + $0xa48] sm:$0xff]
        %v586 = vld [vmem:[%s182 + $0xa50] sm:$0xff]
        %v587 = vld [vmem:[%s182 + $0xa58] sm:$0xff]
        %v588 = vld [vmem:[%s182 + $0xa60] sm:$0xff]
        %v589 = vld [vmem:[%s182 + $0xa68] sm:$0xff]
        %v590 = vld [vmem:[%s182 + $0xa70] sm:$0xff]
        %v591 = vld [vmem:[%s182 + $0xa78] sm:$0xff]
        %v592 = vld [vmem:[%s182 + $0xa80] sm:$0xff]
        %v593 = vld [vmem:[%s182 + $0xa88] sm:$0xff]
        %v594 = vld [vmem:[%s182 + $0xa90] sm:$0xff]
        %v595 = vld [vmem:[%s182 + $0xa98] sm:$0xff]
        %v596 = vld [vmem:[%s182 + $0xaa0] sm:$0xff]
        %v597 = vld [vmem:[%s182 + $0xaa8] sm:$0xff]
        %v598 = vld [vmem:[%s182 + $0xab0] sm:$0xff]
        %v599 = vld [vmem:[%s182 + $0xab8] sm:$0xff]
        %v600 = vld [vmem:[%s182 + $0xac0] sm:$0xff]
        %v601 = vld [vmem:[%s182 + $0xac8] sm:$0xff]
        %v602 = vld [vmem:[%s182 + $0xad0] sm:$0xff]
        %v603 = vld [vmem:[%s182 + $0xad8] sm:$0xff]
        %v604 = vld [vmem:[%s182 + $0xae0] sm:$0xff]
        %v605 = vld [vmem:[%s182 + $0xae8] sm:$0xff]
        %v606 = vld [vmem:[%s182 + $0xaf0] sm:$0xff]
        %v607 = vld [vmem:[%s182 + $0xaf8] sm:$0xff]
        %v608 = vld [vmem:[%s182 + $0xb00] sm:$0xff]
        %v609 = vld [vmem:[%s182 + $0xb08] sm:$0xff]
        %v610 = vld [vmem:[%s182 + $0xb10] sm:$0xff]
        %v611 = vld [vmem:[%s182 + $0xb18] sm:$0xff]
        %v612 = vld [vmem:[%s182 + $0xb20] sm:$0xff]
        %v613 = vld [vmem:[%s182 + $0xb28] sm:$0xff]
        %v614 = vld [vmem:[%s182 + $0xb30] sm:$0xff]
        %v615 = vld [vmem:[%s182 + $0xb38] sm:$0xff]
        %v616 = vld [vmem:[%s182 + $0xb40] sm:$0xff]
        %v617 = vld [vmem:[%s182 + $0xb48] sm:$0xff]
        %v618 = vld [vmem:[%s182 + $0xb50] sm:$0xff]
        %v619 = vld [vmem:[%s182 + $0xb58] sm:$0xff]
        %v620 = vld [vmem:[%s182 + $0xb60] sm:$0xff]
        %v621 = vld [vmem:[%s182 + $0xb68] sm:$0xff]
        %v622 = vld [vmem:[%s182 + $0xb70] sm:$0xff]
        %v623 = vld [vmem:[%s182 + $0xb78] sm:$0xff]
        %v624 = vld [vmem:[%s182 + $0xb80] sm:$0xff]
        %v625 = vld [vmem:[%s182 + $0xb88] sm:$0xff]
        %v626 = vld [vmem:[%s182 + $0xb90] sm:$0xff]
        %v627 = vld [vmem:[%s182 + $0xb98] sm:$0xff]
        %v628 = vld [vmem:[%s182 + $0xba0] sm:$0xff]
        %v629 = vld [vmem:[%s182 + $0xba8] sm:$0xff]
        %v630 = vld [vmem:[%s182 + $0xbb0] sm:$0xff]
        %v631 = vld [vmem:[%s182 + $0xbb8] sm:$0xff]
        %v632 = vld [vmem:[%s182 + $0xbc0] sm:$0xff]
        %v633 = vld [vmem:[%s182 + $0xbc8] sm:$0xff]
        %v634 = vld [vmem:[%s182 + $0xbd0] sm:$0xff]
        %v635 = vld [vmem:[%s182 + $0xbd8] sm:$0xff]
        %v636 = vld [vmem:[%s182 + $0xbe0] sm:$0xff]
        %v637 = vld [vmem:[%s182 + $0xbe8] sm:$0xff]
        %v638 = vld [vmem:[%s182 + $0xbf0] sm:$0xff]
        %v639 = vld [vmem:[%s182 + $0xbf8] sm:$0xff]
        %v640 = vld [vmem:[%s182 + $0xc00] sm:$0xff]
        %v641 = vld [vmem:[%s182 + $0xc08] sm:$0xff]
        %v642 = vld [vmem:[%s182 + $0xc10] sm:$0xff]
        %v643 = vld [vmem:[%s182 + $0xc18] sm:$0xff]
        %v644 = vld [vmem:[%s182 + $0xc20] sm:$0xff]
        %v645 = vld [vmem:[%s182 + $0xc28] sm:$0xff]
        %v646 = vld [vmem:[%s182 + $0xc30] sm:$0xff]
        %v647 = vld [vmem:[%s182 + $0xc38] sm:$0xff]
        %v648 = vld [vmem:[%s182 + $0xc40] sm:$0xff]
        %v649 = vld [vmem:[%s182 + $0xc48] sm:$0xff]
        %v650 = vld [vmem:[%s182 + $0xc50] sm:$0xff]
        %v651 = vld [vmem:[%s182 + $0xc58] sm:$0xff]
        %v652 = vld [vmem:[%s182 + $0xc60] sm:$0xff]
        %v653 = vld [vmem:[%s182 + $0xc68] sm:$0xff]
        %v654 = vld [vmem:[%s182 + $0xc70] sm:$0xff]
        %v655 = vld [vmem:[%s182 + $0xc78] sm:$0xff]
        %v656 = vld [vmem:[%s182 + $0xc80] sm:$0xff]
        %v657 = vld [vmem:[%s182 + $0xc88] sm:$0xff]
        %v658 = vld [vmem:[%s182 + $0xc90] sm:$0xff]
        %v659 = vld [vmem:[%s182 + $0xc98] sm:$0xff]
        %v660 = vld [vmem:[%s182 + $0xca0] sm:$0xff]
        %v661 = vld [vmem:[%s182 + $0xca8] sm:$0xff]
        %v662 = vld [vmem:[%s182 + $0xcb0] sm:$0xff]
        %v663 = vld [vmem:[%s182 + $0xcb8] sm:$0xff]
        %v664 = vld [vmem:[%s182 + $0xcc0] sm:$0xff]
        %v665 = vld [vmem:[%s182 + $0xcc8] sm:$0xff]
        %v666 = vld [vmem:[%s182 + $0xcd0] sm:$0xff]
        %v667 = vld [vmem:[%s182 + $0xcd8] sm:$0xff]
        %v668 = vld [vmem:[%s182 + $0xce0] sm:$0xff]
        %v669 = vld [vmem:[%s182 + $0xce8] sm:$0xff]
        %v670 = vld [vmem:[%s182 + $0xcf0] sm:$0xff]
        %v671 = vld [vmem:[%s182 + $0xcf8] sm:$0xff]
        %v672 = vld [vmem:[%s182 + $0xd00] sm:$0xff]
        %v673 = vld [vmem:[%s182 + $0xd08] sm:$0xff]
        %v674 = vld [vmem:[%s182 + $0xd10] sm:$0xff]
        %v675 = vld [vmem:[%s182 + $0xd18] sm:$0xff]
        %v676 = vld [vmem:[%s182 + $0xd20] sm:$0xff]
        %v677 = vld [vmem:[%s182 + $0xd28] sm:$0xff]
        %v678 = vld [vmem:[%s182 + $0xd30] sm:$0xff]
        %v679 = vld [vmem:[%s182 + $0xd38] sm:$0xff]
        %v680 = vld [vmem:[%s182 + $0xd40] sm:$0xff]
        %v681 = vld [vmem:[%s182 + $0xd48] sm:$0xff]
        %v682 = vld [vmem:[%s182 + $0xd50] sm:$0xff]
        %v683 = vld [vmem:[%s182 + $0xd58] sm:$0xff]
        %v684 = vld [vmem:[%s182 + $0xd60] sm:$0xff]
        %v685 = vld [vmem:[%s182 + $0xd68] sm:$0xff]
        %v686 = vld [vmem:[%s182 + $0xd70] sm:$0xff]
        %v687 = vld [vmem:[%s182 + $0xd78] sm:$0xff]
        %v688 = vld [vmem:[%s182 + $0xd80] sm:$0xff]
        %v689 = vld [vmem:[%s182 + $0xd88] sm:$0xff]
        %v690 = vld [vmem:[%s182 + $0xd90] sm:$0xff]
        %v691 = vld [vmem:[%s182 + $0xd98] sm:$0xff]
        %v692 = vld [vmem:[%s182 + $0xda0] sm:$0xff]
        %v693 = vld [vmem:[%s182 + $0xda8] sm:$0xff]
        %v694 = vld [vmem:[%s182 + $0xdb0] sm:$0xff]
        %v695 = vld [vmem:[%s182 + $0xdb8] sm:$0xff]
        %v696 = vld [vmem:[%s182 + $0xdc0] sm:$0xff]
        %v697 = vld [vmem:[%s182 + $0xdc8] sm:$0xff]
        %v698 = vld [vmem:[%s182 + $0xdd0] sm:$0xff]
        %v699 = vld [vmem:[%s182 + $0xdd8] sm:$0xff]
        %v700 = vld [vmem:[%s182 + $0xde0] sm:$0xff]
        %v701 = vld [vmem:[%s182 + $0xde8] sm:$0xff]
        %v702 = vld [vmem:[%s182 + $0xdf0] sm:$0xff]
        %v703 = vld [vmem:[%s182 + $0xdf8] sm:$0xff]
        %v704 = vld [vmem:[%s182 + $0xe00] sm:$0xff]
        %v705 = vld [vmem:[%s182 + $0xe08] sm:$0xff]
        %v706 = vld [vmem:[%s182 + $0xe10] sm:$0xff]
        %v707 = vld [vmem:[%s182 + $0xe18] sm:$0xff]
        %v708 = vld [vmem:[%s182 + $0xe20] sm:$0xff]
        %v709 = vld [vmem:[%s182 + $0xe28] sm:$0xff]
        %v710 = vld [vmem:[%s182 + $0xe30] sm:$0xff]
        %v711 = vld [vmem:[%s182 + $0xe38] sm:$0xff]
        %v712 = vld [vmem:[%s182 + $0xe40] sm:$0xff]
        %v713 = vld [vmem:[%s182 + $0xe48] sm:$0xff]
        %v714 = vld [vmem:[%s182 + $0xe50] sm:$0xff]
        %v715 = vld [vmem:[%s182 + $0xe58] sm:$0xff]
        %v716 = vld [vmem:[%s182 + $0xe60] sm:$0xff]
        %v717 = vld [vmem:[%s182 + $0xe68] sm:$0xff]
        %v718 = vld [vmem:[%s182 + $0xe70] sm:$0xff]
        %v719 = vld [vmem:[%s182 + $0xe78] sm:$0xff]
        %v720 = vld [vmem:[%s182 + $0xe80] sm:$0xff]
        %v721 = vld [vmem:[%s182 + $0xe88] sm:$0xff]
        %v722 = vld [vmem:[%s182 + $0xe90] sm:$0xff]
        %v723 = vld [vmem:[%s182 + $0xe98] sm:$0xff]
        %v724 = vld [vmem:[%s182 + $0xea0] sm:$0xff]
        %v725 = vld [vmem:[%s182 + $0xea8] sm:$0xff]
        %v726 = vld [vmem:[%s182 + $0xeb0] sm:$0xff]
        %v727 = vld [vmem:[%s182 + $0xeb8] sm:$0xff]
        %v728 = vld [vmem:[%s182 + $0xec0] sm:$0xff]
        %v729 = vld [vmem:[%s182 + $0xec8] sm:$0xff]
        %v730 = vld [vmem:[%s182 + $0xed0] sm:$0xff]
        %v731 = vld [vmem:[%s182 + $0xed8] sm:$0xff]
        %v732 = vld [vmem:[%s182 + $0xee0] sm:$0xff]
        %v733 = vld [vmem:[%s182 + $0xee8] sm:$0xff]
        %v734 = vld [vmem:[%s182 + $0xef0] sm:$0xff]
        %v735 = vld [vmem:[%s182 + $0xef8] sm:$0xff]
        %v736 = vld [vmem:[%s182 + $0xf00] sm:$0xff]
        %v737 = vld [vmem:[%s182 + $0xf08] sm:$0xff]
        %v738 = vld [vmem:[%s182 + $0xf10] sm:$0xff]
        %v739 = vld [vmem:[%s182 + $0xf18] sm:$0xff]
        %v740 = vld [vmem:[%s182 + $0xf20] sm:$0xff]
        %v741 = vld [vmem:[%s182 + $0xf28] sm:$0xff]
        %v742 = vld [vmem:[%s182 + $0xf30] sm:$0xff]
        %v743 = vld [vmem:[%s182 + $0xf38] sm:$0xff]
        %v744 = vld [vmem:[%s182 + $0xf40] sm:$0xff]
        %v745 = vld [vmem:[%s182 + $0xf48] sm:$0xff]
        %v746 = vld [vmem:[%s182 + $0xf50] sm:$0xff]
        %v747 = vld [vmem:[%s182 + $0xf58] sm:$0xff]
        %v748 = vld [vmem:[%s182 + $0xf60] sm:$0xff]
        %v749 = vld [vmem:[%s182 + $0xf68] sm:$0xff]
        %v750 = vld [vmem:[%s182 + $0xf70] sm:$0xff]
        %v751 = vld [vmem:[%s182 + $0xf78] sm:$0xff]
        %v752 = vld [vmem:[%s182 + $0xf80] sm:$0xff]
        %v753 = vld [vmem:[%s182 + $0xf88] sm:$0xff]
        %v754 = vld [vmem:[%s182 + $0xf90] sm:$0xff]
        %v755 = vld [vmem:[%s182 + $0xf98] sm:$0xff]
        %v756 = vld [vmem:[%s182 + $0xfa0] sm:$0xff]
        %v757 = vld [vmem:[%s182 + $0xfa8] sm:$0xff]
        %v758 = vld [vmem:[%s182 + $0xfb0] sm:$0xff]
        %v759 = vld [vmem:[%s182 + $0xfb8] sm:$0xff]
        %v760 = vld [vmem:[%s182 + $0xfc0] sm:$0xff]
        %v761 = vld [vmem:[%s182 + $0xfc8] sm:$0xff]
        %v762 = vld [vmem:[%s182 + $0xfd0] sm:$0xff]
        %v763 = vld [vmem:[%s182 + $0xfd8] sm:$0xff]
        %v764 = vld [vmem:[%s182 + $0xfe0] sm:$0xff]
        %v765 = vld [vmem:[%s182 + $0xfe8] sm:$0xff]
        %v766 = vld [vmem:[%s182 + $0xff0] sm:$0xff]
        %v767 = vld [vmem:[%s182 + $0xff8] sm:$0xff]
        %s768 = smul.u32 %s19, 8
        %s769 = scalar_lea.vmem [#allocation8], %s768
        %v770 = vld [vmem:[%s769] sm:$0xff]
        %v772 = vlaneseq
        %v773 = vshrl.u32 %v772, 7
        %v774 = vsub.s32 0, %v773
        %v775 = vrot.slane %v770, %v774
        %v776 = vlaneseq
        %v777 = vshrl.u32 %v776, 7
        %v778 = vsub.s32 1, %v777
        %v779 = vrot.slane %v770, %v778
        %v780 = vlaneseq
        %v781 = vshrl.u32 %v780, 7
        %v782 = vsub.s32 2, %v781
        %v783 = vrot.slane %v770, %v782
        %v784 = vlaneseq
        %v785 = vshrl.u32 %v784, 7
        %v786 = vsub.s32 3, %v785
        %v787 = vrot.slane %v770, %v786
        %v788 = vlaneseq
        %v789 = vshrl.u32 %v788, 7
        %v790 = vsub.s32 4, %v789
        %v791 = vrot.slane %v770, %v790
        %v792 = vlaneseq
        %v793 = vshrl.u32 %v792, 7
        %v794 = vsub.s32 5, %v793
        %v795 = vrot.slane %v770, %v794
        %v796 = vlaneseq
        %v797 = vshrl.u32 %v796, 7
        %v798 = vsub.s32 6, %v797
        %v799 = vrot.slane %v770, %v798
        %v800 = vlaneseq
        %v801 = vshrl.u32 %v800, 7
        %v802 = vsub.s32 7, %v801
        %v803 = vrot.slane %v770, %v802
        %v816 = vunpack.c.l.b16 %v252
        %v817 = vunpack.c.h.b16 %v252
        %v818 = vunpack.c.l.b16 %v253
        %v819 = vunpack.c.h.b16 %v253
        %v820 = vunpack.c.l.b16 %v254
        %v821 = vunpack.c.h.b16 %v254
        %v822 = vunpack.c.l.b16 %v255
        %v823 = vunpack.c.h.b16 %v255
        %v824 = vpack.c.b16 %v816, %v816
        %v825 = vpack.c.b16 %v817, %v817
        %v826 = vpack.c.b16 %v818, %v818
        %v827 = vpack.c.b16 %v819, %v819
        %v828 = vpack.c.b16 %v820, %v820
        %v829 = vpack.c.b16 %v821, %v821
        %v830 = vpack.c.b16 %v822, %v822
        %v831 = vpack.c.b16 %v823, %v823
        %v1352 = vunpack.c.l.b16 %v256
        %v1353 = vunpack.c.h.b16 %v256
        %v1354 = vunpack.c.l.b16 %v257
        %v1355 = vunpack.c.h.b16 %v257
        %v1356 = vunpack.c.l.b16 %v258
        %v1357 = vunpack.c.h.b16 %v258
        %v1358 = vunpack.c.l.b16 %v259
        %v1359 = vunpack.c.h.b16 %v259
        %v1360 = vunpack.c.l.b16 %v260
        %v1361 = vunpack.c.h.b16 %v260
        %v1362 = vunpack.c.l.b16 %v261
        %v1363 = vunpack.c.h.b16 %v261
        %v1364 = vunpack.c.l.b16 %v262
        %v1365 = vunpack.c.h.b16 %v262
        %v1366 = vunpack.c.l.b16 %v263
        %v1367 = vunpack.c.h.b16 %v263
        %v1368 = vunpack.c.l.b16 %v264
        %v1369 = vunpack.c.h.b16 %v264
        %v1370 = vunpack.c.l.b16 %v265
        %v1371 = vunpack.c.h.b16 %v265
        %v1372 = vunpack.c.l.b16 %v266
        %v1373 = vunpack.c.h.b16 %v266
        %v1374 = vunpack.c.l.b16 %v267
        %v1375 = vunpack.c.h.b16 %v267
        %v1376 = vunpack.c.l.b16 %v268
        %v1377 = vunpack.c.h.b16 %v268
        %v1378 = vunpack.c.l.b16 %v269
        %v1379 = vunpack.c.h.b16 %v269
        %v1380 = vunpack.c.l.b16 %v270
        %v1381 = vunpack.c.h.b16 %v270
        %v1382 = vunpack.c.l.b16 %v271
        %v1383 = vunpack.c.h.b16 %v271
        %v1384 = vunpack.c.l.b16 %v272
        %v1385 = vunpack.c.h.b16 %v272
        %v1386 = vunpack.c.l.b16 %v273
        %v1387 = vunpack.c.h.b16 %v273
        %v1388 = vunpack.c.l.b16 %v274
        %v1389 = vunpack.c.h.b16 %v274
        %v1390 = vunpack.c.l.b16 %v275
        %v1391 = vunpack.c.h.b16 %v275
        %v1392 = vunpack.c.l.b16 %v276
        %v1393 = vunpack.c.h.b16 %v276
        %v1394 = vunpack.c.l.b16 %v277
        %v1395 = vunpack.c.h.b16 %v277
        %v1396 = vunpack.c.l.b16 %v278
        %v1397 = vunpack.c.h.b16 %v278
        %v1398 = vunpack.c.l.b16 %v279
        %v1399 = vunpack.c.h.b16 %v279
        %v1400 = vunpack.c.l.b16 %v280
        %v1401 = vunpack.c.h.b16 %v280
        %v1402 = vunpack.c.l.b16 %v281
        %v1403 = vunpack.c.h.b16 %v281
        %v1404 = vunpack.c.l.b16 %v282
        %v1405 = vunpack.c.h.b16 %v282
        %v1406 = vunpack.c.l.b16 %v283
        %v1407 = vunpack.c.h.b16 %v283
        %v1408 = vunpack.c.l.b16 %v284
        %v1409 = vunpack.c.h.b16 %v284
        %v1410 = vunpack.c.l.b16 %v285
        %v1411 = vunpack.c.h.b16 %v285
        %v1412 = vunpack.c.l.b16 %v286
        %v1413 = vunpack.c.h.b16 %v286
        %v1414 = vunpack.c.l.b16 %v287
        %v1415 = vunpack.c.h.b16 %v287
        %v1416 = vunpack.c.l.b16 %v288
        %v1417 = vunpack.c.h.b16 %v288
        %v1418 = vunpack.c.l.b16 %v289
        %v1419 = vunpack.c.h.b16 %v289
        %v1420 = vunpack.c.l.b16 %v290
        %v1421 = vunpack.c.h.b16 %v290
        %v1422 = vunpack.c.l.b16 %v291
        %v1423 = vunpack.c.h.b16 %v291
        %v1424 = vunpack.c.l.b16 %v292
        %v1425 = vunpack.c.h.b16 %v292
        %v1426 = vunpack.c.l.b16 %v293
        %v1427 = vunpack.c.h.b16 %v293
        %v1428 = vunpack.c.l.b16 %v294
        %v1429 = vunpack.c.h.b16 %v294
        %v1430 = vunpack.c.l.b16 %v295
        %v1431 = vunpack.c.h.b16 %v295
        %v1432 = vunpack.c.l.b16 %v296
        %v1433 = vunpack.c.h.b16 %v296
        %v1434 = vunpack.c.l.b16 %v297
        %v1435 = vunpack.c.h.b16 %v297
        %v1436 = vunpack.c.l.b16 %v298
        %v1437 = vunpack.c.h.b16 %v298
        %v1438 = vunpack.c.l.b16 %v299
        %v1439 = vunpack.c.h.b16 %v299
        %v1440 = vunpack.c.l.b16 %v300
        %v1441 = vunpack.c.h.b16 %v300
        %v1442 = vunpack.c.l.b16 %v301
        %v1443 = vunpack.c.h.b16 %v301
        %v1444 = vunpack.c.l.b16 %v302
        %v1445 = vunpack.c.h.b16 %v302
        %v1446 = vunpack.c.l.b16 %v303
        %v1447 = vunpack.c.h.b16 %v303
        %v1448 = vunpack.c.l.b16 %v304
        %v1449 = vunpack.c.h.b16 %v304
        %v1450 = vunpack.c.l.b16 %v305
        %v1451 = vunpack.c.h.b16 %v305
        %v1452 = vunpack.c.l.b16 %v306
        %v1453 = vunpack.c.h.b16 %v306
        %v1454 = vunpack.c.l.b16 %v307
        %v1455 = vunpack.c.h.b16 %v307
        %v1456 = vunpack.c.l.b16 %v308
        %v1457 = vunpack.c.h.b16 %v308
        %v1458 = vunpack.c.l.b16 %v309
        %v1459 = vunpack.c.h.b16 %v309
        %v1460 = vunpack.c.l.b16 %v310
        %v1461 = vunpack.c.h.b16 %v310
        %v1462 = vunpack.c.l.b16 %v311
        %v1463 = vunpack.c.h.b16 %v311
        %v1464 = vunpack.c.l.b16 %v312
        %v1465 = vunpack.c.h.b16 %v312
        %v1466 = vunpack.c.l.b16 %v313
        %v1467 = vunpack.c.h.b16 %v313
        %v1468 = vunpack.c.l.b16 %v314
        %v1469 = vunpack.c.h.b16 %v314
        %v1470 = vunpack.c.l.b16 %v315
        %v1471 = vunpack.c.h.b16 %v315
        %v1472 = vunpack.c.l.b16 %v316
        %v1473 = vunpack.c.h.b16 %v316
        %v1474 = vunpack.c.l.b16 %v317
        %v1475 = vunpack.c.h.b16 %v317
        %v1476 = vunpack.c.l.b16 %v318
        %v1477 = vunpack.c.h.b16 %v318
        %v1478 = vunpack.c.l.b16 %v319
        %v1479 = vunpack.c.h.b16 %v319
        %v1480 = vunpack.c.l.b16 %v320
        %v1481 = vunpack.c.h.b16 %v320
        %v1482 = vunpack.c.l.b16 %v321
        %v1483 = vunpack.c.h.b16 %v321
        %v1484 = vunpack.c.l.b16 %v322
        %v1485 = vunpack.c.h.b16 %v322
        %v1486 = vunpack.c.l.b16 %v323
        %v1487 = vunpack.c.h.b16 %v323
        %v1488 = vunpack.c.l.b16 %v324
        %v1489 = vunpack.c.h.b16 %v324
        %v1490 = vunpack.c.l.b16 %v325
        %v1491 = vunpack.c.h.b16 %v325
        %v1492 = vunpack.c.l.b16 %v326
        %v1493 = vunpack.c.h.b16 %v326
        %v1494 = vunpack.c.l.b16 %v327
        %v1495 = vunpack.c.h.b16 %v327
        %v1496 = vunpack.c.l.b16 %v328
        %v1497 = vunpack.c.h.b16 %v328
        %v1498 = vunpack.c.l.b16 %v329
        %v1499 = vunpack.c.h.b16 %v329
        %v1500 = vunpack.c.l.b16 %v330
        %v1501 = vunpack.c.h.b16 %v330
        %v1502 = vunpack.c.l.b16 %v331
        %v1503 = vunpack.c.h.b16 %v331
        %v1504 = vunpack.c.l.b16 %v332
        %v1505 = vunpack.c.h.b16 %v332
        %v1506 = vunpack.c.l.b16 %v333
        %v1507 = vunpack.c.h.b16 %v333
        %v1508 = vunpack.c.l.b16 %v334
        %v1509 = vunpack.c.h.b16 %v334
        %v1510 = vunpack.c.l.b16 %v335
        %v1511 = vunpack.c.h.b16 %v335
        %v1512 = vunpack.c.l.b16 %v336
        %v1513 = vunpack.c.h.b16 %v336
        %v1514 = vunpack.c.l.b16 %v337
        %v1515 = vunpack.c.h.b16 %v337
        %v1516 = vunpack.c.l.b16 %v338
        %v1517 = vunpack.c.h.b16 %v338
        %v1518 = vunpack.c.l.b16 %v339
        %v1519 = vunpack.c.h.b16 %v339
        %v1520 = vunpack.c.l.b16 %v340
        %v1521 = vunpack.c.h.b16 %v340
        %v1522 = vunpack.c.l.b16 %v341
        %v1523 = vunpack.c.h.b16 %v341
        %v1524 = vunpack.c.l.b16 %v342
        %v1525 = vunpack.c.h.b16 %v342
        %v1526 = vunpack.c.l.b16 %v343
        %v1527 = vunpack.c.h.b16 %v343
        %v1528 = vunpack.c.l.b16 %v344
        %v1529 = vunpack.c.h.b16 %v344
        %v1530 = vunpack.c.l.b16 %v345
        %v1531 = vunpack.c.h.b16 %v345
        %v1532 = vunpack.c.l.b16 %v346
        %v1533 = vunpack.c.h.b16 %v346
        %v1534 = vunpack.c.l.b16 %v347
        %v1535 = vunpack.c.h.b16 %v347
        %v1536 = vunpack.c.l.b16 %v348
        %v1537 = vunpack.c.h.b16 %v348
        %v1538 = vunpack.c.l.b16 %v349
        %v1539 = vunpack.c.h.b16 %v349
        %v1540 = vunpack.c.l.b16 %v350
        %v1541 = vunpack.c.h.b16 %v350
        %v1542 = vunpack.c.l.b16 %v351
        %v1543 = vunpack.c.h.b16 %v351
        %v1544 = vunpack.c.l.b16 %v352
        %v1545 = vunpack.c.h.b16 %v352
        %v1546 = vunpack.c.l.b16 %v353
        %v1547 = vunpack.c.h.b16 %v353
        %v1548 = vunpack.c.l.b16 %v354
        %v1549 = vunpack.c.h.b16 %v354
        %v1550 = vunpack.c.l.b16 %v355
        %v1551 = vunpack.c.h.b16 %v355
        %v1552 = vunpack.c.l.b16 %v356
        %v1553 = vunpack.c.h.b16 %v356
        %v1554 = vunpack.c.l.b16 %v357
        %v1555 = vunpack.c.h.b16 %v357
        %v1556 = vunpack.c.l.b16 %v358
        %v1557 = vunpack.c.h.b16 %v358
        %v1558 = vunpack.c.l.b16 %v359
        %v1559 = vunpack.c.h.b16 %v359
        %v1560 = vunpack.c.l.b16 %v360
        %v1561 = vunpack.c.h.b16 %v360
        %v1562 = vunpack.c.l.b16 %v361
        %v1563 = vunpack.c.h.b16 %v361
        %v1564 = vunpack.c.l.b16 %v362
        %v1565 = vunpack.c.h.b16 %v362
        %v1566 = vunpack.c.l.b16 %v363
        %v1567 = vunpack.c.h.b16 %v363
        %v1568 = vunpack.c.l.b16 %v364
        %v1569 = vunpack.c.h.b16 %v364
        %v1570 = vunpack.c.l.b16 %v365
        %v1571 = vunpack.c.h.b16 %v365
        %v1572 = vunpack.c.l.b16 %v366
        %v1573 = vunpack.c.h.b16 %v366
        %v1574 = vunpack.c.l.b16 %v367
        %v1575 = vunpack.c.h.b16 %v367
        %v1576 = vunpack.c.l.b16 %v368
        %v1577 = vunpack.c.h.b16 %v368
        %v1578 = vunpack.c.l.b16 %v369
        %v1579 = vunpack.c.h.b16 %v369
        %v1580 = vunpack.c.l.b16 %v370
        %v1581 = vunpack.c.h.b16 %v370
        %v1582 = vunpack.c.l.b16 %v371
        %v1583 = vunpack.c.h.b16 %v371
        %v1584 = vunpack.c.l.b16 %v372
        %v1585 = vunpack.c.h.b16 %v372
        %v1586 = vunpack.c.l.b16 %v373
        %v1587 = vunpack.c.h.b16 %v373
        %v1588 = vunpack.c.l.b16 %v374
        %v1589 = vunpack.c.h.b16 %v374
        %v1590 = vunpack.c.l.b16 %v375
        %v1591 = vunpack.c.h.b16 %v375
        %v1592 = vunpack.c.l.b16 %v376
        %v1593 = vunpack.c.h.b16 %v376
        %v1594 = vunpack.c.l.b16 %v377
        %v1595 = vunpack.c.h.b16 %v377
        %v1596 = vunpack.c.l.b16 %v378
        %v1597 = vunpack.c.h.b16 %v378
        %v1598 = vunpack.c.l.b16 %v379
        %v1599 = vunpack.c.h.b16 %v379
        %v1600 = vunpack.c.l.b16 %v380
        %v1601 = vunpack.c.h.b16 %v380
        %v1602 = vunpack.c.l.b16 %v381
        %v1603 = vunpack.c.h.b16 %v381
        %v1604 = vunpack.c.l.b16 %v382
        %v1605 = vunpack.c.h.b16 %v382
        %v1606 = vunpack.c.l.b16 %v383
        %v1607 = vunpack.c.h.b16 %v383
        %v1608 = vunpack.c.l.b16 %v384
        %v1609 = vunpack.c.h.b16 %v384
        %v1610 = vunpack.c.l.b16 %v385
        %v1611 = vunpack.c.h.b16 %v385
        %v1612 = vunpack.c.l.b16 %v386
        %v1613 = vunpack.c.h.b16 %v386
        %v1614 = vunpack.c.l.b16 %v387
        %v1615 = vunpack.c.h.b16 %v387
        %v1616 = vunpack.c.l.b16 %v388
        %v1617 = vunpack.c.h.b16 %v388
        %v1618 = vunpack.c.l.b16 %v389
        %v1619 = vunpack.c.h.b16 %v389
        %v1620 = vunpack.c.l.b16 %v390
        %v1621 = vunpack.c.h.b16 %v390
        %v1622 = vunpack.c.l.b16 %v391
        %v1623 = vunpack.c.h.b16 %v391
        %v1624 = vunpack.c.l.b16 %v392
        %v1625 = vunpack.c.h.b16 %v392
        %v1626 = vunpack.c.l.b16 %v393
        %v1627 = vunpack.c.h.b16 %v393
        %v1628 = vunpack.c.l.b16 %v394
        %v1629 = vunpack.c.h.b16 %v394
        %v1630 = vunpack.c.l.b16 %v395
        %v1631 = vunpack.c.h.b16 %v395
        %v1632 = vunpack.c.l.b16 %v396
        %v1633 = vunpack.c.h.b16 %v396
        %v1634 = vunpack.c.l.b16 %v397
        %v1635 = vunpack.c.h.b16 %v397
        %v1636 = vunpack.c.l.b16 %v398
        %v1637 = vunpack.c.h.b16 %v398
        %v1638 = vunpack.c.l.b16 %v399
        %v1639 = vunpack.c.h.b16 %v399
        %v1640 = vunpack.c.l.b16 %v400
        %v1641 = vunpack.c.h.b16 %v400
        %v1642 = vunpack.c.l.b16 %v401
        %v1643 = vunpack.c.h.b16 %v401
        %v1644 = vunpack.c.l.b16 %v402
        %v1645 = vunpack.c.h.b16 %v402
        %v1646 = vunpack.c.l.b16 %v403
        %v1647 = vunpack.c.h.b16 %v403
        %v1648 = vunpack.c.l.b16 %v404
        %v1649 = vunpack.c.h.b16 %v404
        %v1650 = vunpack.c.l.b16 %v405
        %v1651 = vunpack.c.h.b16 %v405
        %v1652 = vunpack.c.l.b16 %v406
        %v1653 = vunpack.c.h.b16 %v406
        %v1654 = vunpack.c.l.b16 %v407
        %v1655 = vunpack.c.h.b16 %v407
        %v1656 = vunpack.c.l.b16 %v408
        %v1657 = vunpack.c.h.b16 %v408
        %v1658 = vunpack.c.l.b16 %v409
        %v1659 = vunpack.c.h.b16 %v409
        %v1660 = vunpack.c.l.b16 %v410
        %v1661 = vunpack.c.h.b16 %v410
        %v1662 = vunpack.c.l.b16 %v411
        %v1663 = vunpack.c.h.b16 %v411
        %v1664 = vunpack.c.l.b16 %v412
        %v1665 = vunpack.c.h.b16 %v412
        %v1666 = vunpack.c.l.b16 %v413
        %v1667 = vunpack.c.h.b16 %v413
        %v1668 = vunpack.c.l.b16 %v414
        %v1669 = vunpack.c.h.b16 %v414
        %v1670 = vunpack.c.l.b16 %v415
        %v1671 = vunpack.c.h.b16 %v415
        %v1672 = vunpack.c.l.b16 %v416
        %v1673 = vunpack.c.h.b16 %v416
        %v1674 = vunpack.c.l.b16 %v417
        %v1675 = vunpack.c.h.b16 %v417
        %v1676 = vunpack.c.l.b16 %v418
        %v1677 = vunpack.c.h.b16 %v418
        %v1678 = vunpack.c.l.b16 %v419
        %v1679 = vunpack.c.h.b16 %v419
        %v1680 = vunpack.c.l.b16 %v420
        %v1681 = vunpack.c.h.b16 %v420
        %v1682 = vunpack.c.l.b16 %v421
        %v1683 = vunpack.c.h.b16 %v421
        %v1684 = vunpack.c.l.b16 %v422
        %v1685 = vunpack.c.h.b16 %v422
        %v1686 = vunpack.c.l.b16 %v423
        %v1687 = vunpack.c.h.b16 %v423
        %v1688 = vunpack.c.l.b16 %v424
        %v1689 = vunpack.c.h.b16 %v424
        %v1690 = vunpack.c.l.b16 %v425
        %v1691 = vunpack.c.h.b16 %v425
        %v1692 = vunpack.c.l.b16 %v426
        %v1693 = vunpack.c.h.b16 %v426
        %v1694 = vunpack.c.l.b16 %v427
        %v1695 = vunpack.c.h.b16 %v427
        %v1696 = vunpack.c.l.b16 %v428
        %v1697 = vunpack.c.h.b16 %v428
        %v1698 = vunpack.c.l.b16 %v429
        %v1699 = vunpack.c.h.b16 %v429
        %v1700 = vunpack.c.l.b16 %v430
        %v1701 = vunpack.c.h.b16 %v430
        %v1702 = vunpack.c.l.b16 %v431
        %v1703 = vunpack.c.h.b16 %v431
        %v1704 = vunpack.c.l.b16 %v432
        %v1705 = vunpack.c.h.b16 %v432
        %v1706 = vunpack.c.l.b16 %v433
        %v1707 = vunpack.c.h.b16 %v433
        %v1708 = vunpack.c.l.b16 %v434
        %v1709 = vunpack.c.h.b16 %v434
        %v1710 = vunpack.c.l.b16 %v435
        %v1711 = vunpack.c.h.b16 %v435
        %v1712 = vunpack.c.l.b16 %v436
        %v1713 = vunpack.c.h.b16 %v436
        %v1714 = vunpack.c.l.b16 %v437
        %v1715 = vunpack.c.h.b16 %v437
        %v1716 = vunpack.c.l.b16 %v438
        %v1717 = vunpack.c.h.b16 %v438
        %v1718 = vunpack.c.l.b16 %v439
        %v1719 = vunpack.c.h.b16 %v439
        %v1720 = vunpack.c.l.b16 %v440
        %v1721 = vunpack.c.h.b16 %v440
        %v1722 = vunpack.c.l.b16 %v441
        %v1723 = vunpack.c.h.b16 %v441
        %v1724 = vunpack.c.l.b16 %v442
        %v1725 = vunpack.c.h.b16 %v442
        %v1726 = vunpack.c.l.b16 %v443
        %v1727 = vunpack.c.h.b16 %v443
        %v1728 = vunpack.c.l.b16 %v444
        %v1729 = vunpack.c.h.b16 %v444
        %v1730 = vunpack.c.l.b16 %v445
        %v1731 = vunpack.c.h.b16 %v445
        %v1732 = vunpack.c.l.b16 %v446
        %v1733 = vunpack.c.h.b16 %v446
        %v1734 = vunpack.c.l.b16 %v447
        %v1735 = vunpack.c.h.b16 %v447
        %v1736 = vunpack.c.l.b16 %v448
        %v1737 = vunpack.c.h.b16 %v448
        %v1738 = vunpack.c.l.b16 %v449
        %v1739 = vunpack.c.h.b16 %v449
        %v1740 = vunpack.c.l.b16 %v450
        %v1741 = vunpack.c.h.b16 %v450
        %v1742 = vunpack.c.l.b16 %v451
        %v1743 = vunpack.c.h.b16 %v451
        %v1744 = vunpack.c.l.b16 %v452
        %v1745 = vunpack.c.h.b16 %v452
        %v1746 = vunpack.c.l.b16 %v453
        %v1747 = vunpack.c.h.b16 %v453
        %v1748 = vunpack.c.l.b16 %v454
        %v1749 = vunpack.c.h.b16 %v454
        %v1750 = vunpack.c.l.b16 %v455
        %v1751 = vunpack.c.h.b16 %v455
        %v1752 = vunpack.c.l.b16 %v456
        %v1753 = vunpack.c.h.b16 %v456
        %v1754 = vunpack.c.l.b16 %v457
        %v1755 = vunpack.c.h.b16 %v457
        %v1756 = vunpack.c.l.b16 %v458
        %v1757 = vunpack.c.h.b16 %v458
        %v1758 = vunpack.c.l.b16 %v459
        %v1759 = vunpack.c.h.b16 %v459
        %v1760 = vunpack.c.l.b16 %v460
        %v1761 = vunpack.c.h.b16 %v460
        %v1762 = vunpack.c.l.b16 %v461
        %v1763 = vunpack.c.h.b16 %v461
        %v1764 = vunpack.c.l.b16 %v462
        %v1765 = vunpack.c.h.b16 %v462
        %v1766 = vunpack.c.l.b16 %v463
        %v1767 = vunpack.c.h.b16 %v463
        %v1768 = vunpack.c.l.b16 %v464
        %v1769 = vunpack.c.h.b16 %v464
        %v1770 = vunpack.c.l.b16 %v465
        %v1771 = vunpack.c.h.b16 %v465
        %v1772 = vunpack.c.l.b16 %v466
        %v1773 = vunpack.c.h.b16 %v466
        %v1774 = vunpack.c.l.b16 %v467
        %v1775 = vunpack.c.h.b16 %v467
        %v1776 = vunpack.c.l.b16 %v468
        %v1777 = vunpack.c.h.b16 %v468
        %v1778 = vunpack.c.l.b16 %v469
        %v1779 = vunpack.c.h.b16 %v469
        %v1780 = vunpack.c.l.b16 %v470
        %v1781 = vunpack.c.h.b16 %v470
        %v1782 = vunpack.c.l.b16 %v471
        %v1783 = vunpack.c.h.b16 %v471
        %v1784 = vunpack.c.l.b16 %v472
        %v1785 = vunpack.c.h.b16 %v472
        %v1786 = vunpack.c.l.b16 %v473
        %v1787 = vunpack.c.h.b16 %v473
        %v1788 = vunpack.c.l.b16 %v474
        %v1789 = vunpack.c.h.b16 %v474
        %v1790 = vunpack.c.l.b16 %v475
        %v1791 = vunpack.c.h.b16 %v475
        %v1792 = vunpack.c.l.b16 %v476
        %v1793 = vunpack.c.h.b16 %v476
        %v1794 = vunpack.c.l.b16 %v477
        %v1795 = vunpack.c.h.b16 %v477
        %v1796 = vunpack.c.l.b16 %v478
        %v1797 = vunpack.c.h.b16 %v478
        %v1798 = vunpack.c.l.b16 %v479
        %v1799 = vunpack.c.h.b16 %v479
        %v1800 = vunpack.c.l.b16 %v480
        %v1801 = vunpack.c.h.b16 %v480
        %v1802 = vunpack.c.l.b16 %v481
        %v1803 = vunpack.c.h.b16 %v481
        %v1804 = vunpack.c.l.b16 %v482
        %v1805 = vunpack.c.h.b16 %v482
        %v1806 = vunpack.c.l.b16 %v483
        %v1807 = vunpack.c.h.b16 %v483
        %v1808 = vunpack.c.l.b16 %v484
        %v1809 = vunpack.c.h.b16 %v484
        %v1810 = vunpack.c.l.b16 %v485
        %v1811 = vunpack.c.h.b16 %v485
        %v1812 = vunpack.c.l.b16 %v486
        %v1813 = vunpack.c.h.b16 %v486
        %v1814 = vunpack.c.l.b16 %v487
        %v1815 = vunpack.c.h.b16 %v487
        %v1816 = vunpack.c.l.b16 %v488
        %v1817 = vunpack.c.h.b16 %v488
        %v1818 = vunpack.c.l.b16 %v489
        %v1819 = vunpack.c.h.b16 %v489
        %v1820 = vunpack.c.l.b16 %v490
        %v1821 = vunpack.c.h.b16 %v490
        %v1822 = vunpack.c.l.b16 %v491
        %v1823 = vunpack.c.h.b16 %v491
        %v1824 = vunpack.c.l.b16 %v492
        %v1825 = vunpack.c.h.b16 %v492
        %v1826 = vunpack.c.l.b16 %v493
        %v1827 = vunpack.c.h.b16 %v493
        %v1828 = vunpack.c.l.b16 %v494
        %v1829 = vunpack.c.h.b16 %v494
        %v1830 = vunpack.c.l.b16 %v495
        %v1831 = vunpack.c.h.b16 %v495
        %v1832 = vunpack.c.l.b16 %v496
        %v1833 = vunpack.c.h.b16 %v496
        %v1834 = vunpack.c.l.b16 %v497
        %v1835 = vunpack.c.h.b16 %v497
        %v1836 = vunpack.c.l.b16 %v498
        %v1837 = vunpack.c.h.b16 %v498
        %v1838 = vunpack.c.l.b16 %v499
        %v1839 = vunpack.c.h.b16 %v499
        %v1840 = vunpack.c.l.b16 %v500
        %v1841 = vunpack.c.h.b16 %v500
        %v1842 = vunpack.c.l.b16 %v501
        %v1843 = vunpack.c.h.b16 %v501
        %v1844 = vunpack.c.l.b16 %v502
        %v1845 = vunpack.c.h.b16 %v502
        %v1846 = vunpack.c.l.b16 %v503
        %v1847 = vunpack.c.h.b16 %v503
        %v1848 = vunpack.c.l.b16 %v504
        %v1849 = vunpack.c.h.b16 %v504
        %v1850 = vunpack.c.l.b16 %v505
        %v1851 = vunpack.c.h.b16 %v505
        %v1852 = vunpack.c.l.b16 %v506
        %v1853 = vunpack.c.h.b16 %v506
        %v1854 = vunpack.c.l.b16 %v507
        %v1855 = vunpack.c.h.b16 %v507
        %v1856 = vunpack.c.l.b16 %v508
        %v1857 = vunpack.c.h.b16 %v508
        %v1858 = vunpack.c.l.b16 %v509
        %v1859 = vunpack.c.h.b16 %v509
        %v1860 = vunpack.c.l.b16 %v510
        %v1861 = vunpack.c.h.b16 %v510
        %v1862 = vunpack.c.l.b16 %v511
        %v1863 = vunpack.c.h.b16 %v511
        %v1864 = vunpack.c.l.b16 %v512
        %v1865 = vunpack.c.h.b16 %v512
        %v1866 = vunpack.c.l.b16 %v513
        %v1867 = vunpack.c.h.b16 %v513
        %v1868 = vunpack.c.l.b16 %v514
        %v1869 = vunpack.c.h.b16 %v514
        %v1870 = vunpack.c.l.b16 %v515
        %v1871 = vunpack.c.h.b16 %v515
        %v1872 = vunpack.c.l.b16 %v516
        %v1873 = vunpack.c.h.b16 %v516
        %v1874 = vunpack.c.l.b16 %v517
        %v1875 = vunpack.c.h.b16 %v517
        %v1876 = vunpack.c.l.b16 %v518
        %v1877 = vunpack.c.h.b16 %v518
        %v1878 = vunpack.c.l.b16 %v519
        %v1879 = vunpack.c.h.b16 %v519
        %v1880 = vunpack.c.l.b16 %v520
        %v1881 = vunpack.c.h.b16 %v520
        %v1882 = vunpack.c.l.b16 %v521
        %v1883 = vunpack.c.h.b16 %v521
        %v1884 = vunpack.c.l.b16 %v522
        %v1885 = vunpack.c.h.b16 %v522
        %v1886 = vunpack.c.l.b16 %v523
        %v1887 = vunpack.c.h.b16 %v523
        %v1888 = vunpack.c.l.b16 %v524
        %v1889 = vunpack.c.h.b16 %v524
        %v1890 = vunpack.c.l.b16 %v525
        %v1891 = vunpack.c.h.b16 %v525
        %v1892 = vunpack.c.l.b16 %v526
        %v1893 = vunpack.c.h.b16 %v526
        %v1894 = vunpack.c.l.b16 %v527
        %v1895 = vunpack.c.h.b16 %v527
        %v1896 = vunpack.c.l.b16 %v528
        %v1897 = vunpack.c.h.b16 %v528
        %v1898 = vunpack.c.l.b16 %v529
        %v1899 = vunpack.c.h.b16 %v529
        %v1900 = vunpack.c.l.b16 %v530
        %v1901 = vunpack.c.h.b16 %v530
        %v1902 = vunpack.c.l.b16 %v531
        %v1903 = vunpack.c.h.b16 %v531
        %v1904 = vunpack.c.l.b16 %v532
        %v1905 = vunpack.c.h.b16 %v532
        %v1906 = vunpack.c.l.b16 %v533
        %v1907 = vunpack.c.h.b16 %v533
        %v1908 = vunpack.c.l.b16 %v534
        %v1909 = vunpack.c.h.b16 %v534
        %v1910 = vunpack.c.l.b16 %v535
        %v1911 = vunpack.c.h.b16 %v535
        %v1912 = vunpack.c.l.b16 %v536
        %v1913 = vunpack.c.h.b16 %v536
        %v1914 = vunpack.c.l.b16 %v537
        %v1915 = vunpack.c.h.b16 %v537
        %v1916 = vunpack.c.l.b16 %v538
        %v1917 = vunpack.c.h.b16 %v538
        %v1918 = vunpack.c.l.b16 %v539
        %v1919 = vunpack.c.h.b16 %v539
        %v1920 = vunpack.c.l.b16 %v540
        %v1921 = vunpack.c.h.b16 %v540
        %v1922 = vunpack.c.l.b16 %v541
        %v1923 = vunpack.c.h.b16 %v541
        %v1924 = vunpack.c.l.b16 %v542
        %v1925 = vunpack.c.h.b16 %v542
        %v1926 = vunpack.c.l.b16 %v543
        %v1927 = vunpack.c.h.b16 %v543
        %v1928 = vunpack.c.l.b16 %v544
        %v1929 = vunpack.c.h.b16 %v544
        %v1930 = vunpack.c.l.b16 %v545
        %v1931 = vunpack.c.h.b16 %v545
        %v1932 = vunpack.c.l.b16 %v546
        %v1933 = vunpack.c.h.b16 %v546
        %v1934 = vunpack.c.l.b16 %v547
        %v1935 = vunpack.c.h.b16 %v547
        %v1936 = vunpack.c.l.b16 %v548
        %v1937 = vunpack.c.h.b16 %v548
        %v1938 = vunpack.c.l.b16 %v549
        %v1939 = vunpack.c.h.b16 %v549
        %v1940 = vunpack.c.l.b16 %v550
        %v1941 = vunpack.c.h.b16 %v550
        %v1942 = vunpack.c.l.b16 %v551
        %v1943 = vunpack.c.h.b16 %v551
        %v1944 = vunpack.c.l.b16 %v552
        %v1945 = vunpack.c.h.b16 %v552
        %v1946 = vunpack.c.l.b16 %v553
        %v1947 = vunpack.c.h.b16 %v553
        %v1948 = vunpack.c.l.b16 %v554
        %v1949 = vunpack.c.h.b16 %v554
        %v1950 = vunpack.c.l.b16 %v555
        %v1951 = vunpack.c.h.b16 %v555
        %v1952 = vunpack.c.l.b16 %v556
        %v1953 = vunpack.c.h.b16 %v556
        %v1954 = vunpack.c.l.b16 %v557
        %v1955 = vunpack.c.h.b16 %v557
        %v1956 = vunpack.c.l.b16 %v558
        %v1957 = vunpack.c.h.b16 %v558
        %v1958 = vunpack.c.l.b16 %v559
        %v1959 = vunpack.c.h.b16 %v559
        %v1960 = vunpack.c.l.b16 %v560
        %v1961 = vunpack.c.h.b16 %v560
        %v1962 = vunpack.c.l.b16 %v561
        %v1963 = vunpack.c.h.b16 %v561
        %v1964 = vunpack.c.l.b16 %v562
        %v1965 = vunpack.c.h.b16 %v562
        %v1966 = vunpack.c.l.b16 %v563
        %v1967 = vunpack.c.h.b16 %v563
        %v1968 = vunpack.c.l.b16 %v564
        %v1969 = vunpack.c.h.b16 %v564
        %v1970 = vunpack.c.l.b16 %v565
        %v1971 = vunpack.c.h.b16 %v565
        %v1972 = vunpack.c.l.b16 %v566
        %v1973 = vunpack.c.h.b16 %v566
        %v1974 = vunpack.c.l.b16 %v567
        %v1975 = vunpack.c.h.b16 %v567
        %v1976 = vunpack.c.l.b16 %v568
        %v1977 = vunpack.c.h.b16 %v568
        %v1978 = vunpack.c.l.b16 %v569
        %v1979 = vunpack.c.h.b16 %v569
        %v1980 = vunpack.c.l.b16 %v570
        %v1981 = vunpack.c.h.b16 %v570
        %v1982 = vunpack.c.l.b16 %v571
        %v1983 = vunpack.c.h.b16 %v571
        %v1984 = vunpack.c.l.b16 %v572
        %v1985 = vunpack.c.h.b16 %v572
        %v1986 = vunpack.c.l.b16 %v573
        %v1987 = vunpack.c.h.b16 %v573
        %v1988 = vunpack.c.l.b16 %v574
        %v1989 = vunpack.c.h.b16 %v574
        %v1990 = vunpack.c.l.b16 %v575
        %v1991 = vunpack.c.h.b16 %v575
        %v1992 = vunpack.c.l.b16 %v576
        %v1993 = vunpack.c.h.b16 %v576
        %v1994 = vunpack.c.l.b16 %v577
        %v1995 = vunpack.c.h.b16 %v577
        %v1996 = vunpack.c.l.b16 %v578
        %v1997 = vunpack.c.h.b16 %v578
        %v1998 = vunpack.c.l.b16 %v579
        %v1999 = vunpack.c.h.b16 %v579
        %v2000 = vunpack.c.l.b16 %v580
        %v2001 = vunpack.c.h.b16 %v580
        %v2002 = vunpack.c.l.b16 %v581
        %v2003 = vunpack.c.h.b16 %v581
        %v2004 = vunpack.c.l.b16 %v582
        %v2005 = vunpack.c.h.b16 %v582
        %v2006 = vunpack.c.l.b16 %v583
        %v2007 = vunpack.c.h.b16 %v583
        %v2008 = vunpack.c.l.b16 %v584
        %v2009 = vunpack.c.h.b16 %v584
        %v2010 = vunpack.c.l.b16 %v585
        %v2011 = vunpack.c.h.b16 %v585
        %v2012 = vunpack.c.l.b16 %v586
        %v2013 = vunpack.c.h.b16 %v586
        %v2014 = vunpack.c.l.b16 %v587
        %v2015 = vunpack.c.h.b16 %v587
        %v2016 = vunpack.c.l.b16 %v588
        %v2017 = vunpack.c.h.b16 %v588
        %v2018 = vunpack.c.l.b16 %v589
        %v2019 = vunpack.c.h.b16 %v589
        %v2020 = vunpack.c.l.b16 %v590
        %v2021 = vunpack.c.h.b16 %v590
        %v2022 = vunpack.c.l.b16 %v591
        %v2023 = vunpack.c.h.b16 %v591
        %v2024 = vunpack.c.l.b16 %v592
        %v2025 = vunpack.c.h.b16 %v592
        %v2026 = vunpack.c.l.b16 %v593
        %v2027 = vunpack.c.h.b16 %v593
        %v2028 = vunpack.c.l.b16 %v594
        %v2029 = vunpack.c.h.b16 %v594
        %v2030 = vunpack.c.l.b16 %v595
        %v2031 = vunpack.c.h.b16 %v595
        %v2032 = vunpack.c.l.b16 %v596
        %v2033 = vunpack.c.h.b16 %v596
        %v2034 = vunpack.c.l.b16 %v597
        %v2035 = vunpack.c.h.b16 %v597
        %v2036 = vunpack.c.l.b16 %v598
        %v2037 = vunpack.c.h.b16 %v598
        %v2038 = vunpack.c.l.b16 %v599
        %v2039 = vunpack.c.h.b16 %v599
        %v2040 = vunpack.c.l.b16 %v600
        %v2041 = vunpack.c.h.b16 %v600
        %v2042 = vunpack.c.l.b16 %v601
        %v2043 = vunpack.c.h.b16 %v601
        %v2044 = vunpack.c.l.b16 %v602
        %v2045 = vunpack.c.h.b16 %v602
        %v2046 = vunpack.c.l.b16 %v603
        %v2047 = vunpack.c.h.b16 %v603
        %v2048 = vunpack.c.l.b16 %v604
        %v2049 = vunpack.c.h.b16 %v604
        %v2050 = vunpack.c.l.b16 %v605
        %v2051 = vunpack.c.h.b16 %v605
        %v2052 = vunpack.c.l.b16 %v606
        %v2053 = vunpack.c.h.b16 %v606
        %v2054 = vunpack.c.l.b16 %v607
        %v2055 = vunpack.c.h.b16 %v607
        %v2056 = vunpack.c.l.b16 %v608
        %v2057 = vunpack.c.h.b16 %v608
        %v2058 = vunpack.c.l.b16 %v609
        %v2059 = vunpack.c.h.b16 %v609
        %v2060 = vunpack.c.l.b16 %v610
        %v2061 = vunpack.c.h.b16 %v610
        %v2062 = vunpack.c.l.b16 %v611
        %v2063 = vunpack.c.h.b16 %v611
        %v2064 = vunpack.c.l.b16 %v612
        %v2065 = vunpack.c.h.b16 %v612
        %v2066 = vunpack.c.l.b16 %v613
        %v2067 = vunpack.c.h.b16 %v613
        %v2068 = vunpack.c.l.b16 %v614
        %v2069 = vunpack.c.h.b16 %v614
        %v2070 = vunpack.c.l.b16 %v615
        %v2071 = vunpack.c.h.b16 %v615
        %v2072 = vunpack.c.l.b16 %v616
        %v2073 = vunpack.c.h.b16 %v616
        %v2074 = vunpack.c.l.b16 %v617
        %v2075 = vunpack.c.h.b16 %v617
        %v2076 = vunpack.c.l.b16 %v618
        %v2077 = vunpack.c.h.b16 %v618
        %v2078 = vunpack.c.l.b16 %v619
        %v2079 = vunpack.c.h.b16 %v619
        %v2080 = vunpack.c.l.b16 %v620
        %v2081 = vunpack.c.h.b16 %v620
        %v2082 = vunpack.c.l.b16 %v621
        %v2083 = vunpack.c.h.b16 %v621
        %v2084 = vunpack.c.l.b16 %v622
        %v2085 = vunpack.c.h.b16 %v622
        %v2086 = vunpack.c.l.b16 %v623
        %v2087 = vunpack.c.h.b16 %v623
        %v2088 = vunpack.c.l.b16 %v624
        %v2089 = vunpack.c.h.b16 %v624
        %v2090 = vunpack.c.l.b16 %v625
        %v2091 = vunpack.c.h.b16 %v625
        %v2092 = vunpack.c.l.b16 %v626
        %v2093 = vunpack.c.h.b16 %v626
        %v2094 = vunpack.c.l.b16 %v627
        %v2095 = vunpack.c.h.b16 %v627
        %v2096 = vunpack.c.l.b16 %v628
        %v2097 = vunpack.c.h.b16 %v628
        %v2098 = vunpack.c.l.b16 %v629
        %v2099 = vunpack.c.h.b16 %v629
        %v2100 = vunpack.c.l.b16 %v630
        %v2101 = vunpack.c.h.b16 %v630
        %v2102 = vunpack.c.l.b16 %v631
        %v2103 = vunpack.c.h.b16 %v631
        %v2104 = vunpack.c.l.b16 %v632
        %v2105 = vunpack.c.h.b16 %v632
        %v2106 = vunpack.c.l.b16 %v633
        %v2107 = vunpack.c.h.b16 %v633
        %v2108 = vunpack.c.l.b16 %v634
        %v2109 = vunpack.c.h.b16 %v634
        %v2110 = vunpack.c.l.b16 %v635
        %v2111 = vunpack.c.h.b16 %v635
        %v2112 = vunpack.c.l.b16 %v636
        %v2113 = vunpack.c.h.b16 %v636
        %v2114 = vunpack.c.l.b16 %v637
        %v2115 = vunpack.c.h.b16 %v637
        %v2116 = vunpack.c.l.b16 %v638
        %v2117 = vunpack.c.h.b16 %v638
        %v2118 = vunpack.c.l.b16 %v639
        %v2119 = vunpack.c.h.b16 %v639
        %v2120 = vunpack.c.l.b16 %v640
        %v2121 = vunpack.c.h.b16 %v640
        %v2122 = vunpack.c.l.b16 %v641
        %v2123 = vunpack.c.h.b16 %v641
        %v2124 = vunpack.c.l.b16 %v642
        %v2125 = vunpack.c.h.b16 %v642
        %v2126 = vunpack.c.l.b16 %v643
        %v2127 = vunpack.c.h.b16 %v643
        %v2128 = vunpack.c.l.b16 %v644
        %v2129 = vunpack.c.h.b16 %v644
        %v2130 = vunpack.c.l.b16 %v645
        %v2131 = vunpack.c.h.b16 %v645
        %v2132 = vunpack.c.l.b16 %v646
        %v2133 = vunpack.c.h.b16 %v646
        %v2134 = vunpack.c.l.b16 %v647
        %v2135 = vunpack.c.h.b16 %v647
        %v2136 = vunpack.c.l.b16 %v648
        %v2137 = vunpack.c.h.b16 %v648
        %v2138 = vunpack.c.l.b16 %v649
        %v2139 = vunpack.c.h.b16 %v649
        %v2140 = vunpack.c.l.b16 %v650
        %v2141 = vunpack.c.h.b16 %v650
        %v2142 = vunpack.c.l.b16 %v651
        %v2143 = vunpack.c.h.b16 %v651
        %v2144 = vunpack.c.l.b16 %v652
        %v2145 = vunpack.c.h.b16 %v652
        %v2146 = vunpack.c.l.b16 %v653
        %v2147 = vunpack.c.h.b16 %v653
        %v2148 = vunpack.c.l.b16 %v654
        %v2149 = vunpack.c.h.b16 %v654
        %v2150 = vunpack.c.l.b16 %v655
        %v2151 = vunpack.c.h.b16 %v655
        %v2152 = vunpack.c.l.b16 %v656
        %v2153 = vunpack.c.h.b16 %v656
        %v2154 = vunpack.c.l.b16 %v657
        %v2155 = vunpack.c.h.b16 %v657
        %v2156 = vunpack.c.l.b16 %v658
        %v2157 = vunpack.c.h.b16 %v658
        %v2158 = vunpack.c.l.b16 %v659
        %v2159 = vunpack.c.h.b16 %v659
        %v2160 = vunpack.c.l.b16 %v660
        %v2161 = vunpack.c.h.b16 %v660
        %v2162 = vunpack.c.l.b16 %v661
        %v2163 = vunpack.c.h.b16 %v661
        %v2164 = vunpack.c.l.b16 %v662
        %v2165 = vunpack.c.h.b16 %v662
        %v2166 = vunpack.c.l.b16 %v663
        %v2167 = vunpack.c.h.b16 %v663
        %v2168 = vunpack.c.l.b16 %v664
        %v2169 = vunpack.c.h.b16 %v664
        %v2170 = vunpack.c.l.b16 %v665
        %v2171 = vunpack.c.h.b16 %v665
        %v2172 = vunpack.c.l.b16 %v666
        %v2173 = vunpack.c.h.b16 %v666
        %v2174 = vunpack.c.l.b16 %v667
        %v2175 = vunpack.c.h.b16 %v667
        %v2176 = vunpack.c.l.b16 %v668
        %v2177 = vunpack.c.h.b16 %v668
        %v2178 = vunpack.c.l.b16 %v669
        %v2179 = vunpack.c.h.b16 %v669
        %v2180 = vunpack.c.l.b16 %v670
        %v2181 = vunpack.c.h.b16 %v670
        %v2182 = vunpack.c.l.b16 %v671
        %v2183 = vunpack.c.h.b16 %v671
        %v2184 = vunpack.c.l.b16 %v672
        %v2185 = vunpack.c.h.b16 %v672
        %v2186 = vunpack.c.l.b16 %v673
        %v2187 = vunpack.c.h.b16 %v673
        %v2188 = vunpack.c.l.b16 %v674
        %v2189 = vunpack.c.h.b16 %v674
        %v2190 = vunpack.c.l.b16 %v675
        %v2191 = vunpack.c.h.b16 %v675
        %v2192 = vunpack.c.l.b16 %v676
        %v2193 = vunpack.c.h.b16 %v676
        %v2194 = vunpack.c.l.b16 %v677
        %v2195 = vunpack.c.h.b16 %v677
        %v2196 = vunpack.c.l.b16 %v678
        %v2197 = vunpack.c.h.b16 %v678
        %v2198 = vunpack.c.l.b16 %v679
        %v2199 = vunpack.c.h.b16 %v679
        %v2200 = vunpack.c.l.b16 %v680
        %v2201 = vunpack.c.h.b16 %v680
        %v2202 = vunpack.c.l.b16 %v681
        %v2203 = vunpack.c.h.b16 %v681
        %v2204 = vunpack.c.l.b16 %v682
        %v2205 = vunpack.c.h.b16 %v682
        %v2206 = vunpack.c.l.b16 %v683
        %v2207 = vunpack.c.h.b16 %v683
        %v2208 = vunpack.c.l.b16 %v684
        %v2209 = vunpack.c.h.b16 %v684
        %v2210 = vunpack.c.l.b16 %v685
        %v2211 = vunpack.c.h.b16 %v685
        %v2212 = vunpack.c.l.b16 %v686
        %v2213 = vunpack.c.h.b16 %v686
        %v2214 = vunpack.c.l.b16 %v687
        %v2215 = vunpack.c.h.b16 %v687
        %v2216 = vunpack.c.l.b16 %v688
        %v2217 = vunpack.c.h.b16 %v688
        %v2218 = vunpack.c.l.b16 %v689
        %v2219 = vunpack.c.h.b16 %v689
        %v2220 = vunpack.c.l.b16 %v690
        %v2221 = vunpack.c.h.b16 %v690
        %v2222 = vunpack.c.l.b16 %v691
        %v2223 = vunpack.c.h.b16 %v691
        %v2224 = vunpack.c.l.b16 %v692
        %v2225 = vunpack.c.h.b16 %v692
        %v2226 = vunpack.c.l.b16 %v693
        %v2227 = vunpack.c.h.b16 %v693
        %v2228 = vunpack.c.l.b16 %v694
        %v2229 = vunpack.c.h.b16 %v694
        %v2230 = vunpack.c.l.b16 %v695
        %v2231 = vunpack.c.h.b16 %v695
        %v2232 = vunpack.c.l.b16 %v696
        %v2233 = vunpack.c.h.b16 %v696
        %v2234 = vunpack.c.l.b16 %v697
        %v2235 = vunpack.c.h.b16 %v697
        %v2236 = vunpack.c.l.b16 %v698
        %v2237 = vunpack.c.h.b16 %v698
        %v2238 = vunpack.c.l.b16 %v699
        %v2239 = vunpack.c.h.b16 %v699
        %v2240 = vunpack.c.l.b16 %v700
        %v2241 = vunpack.c.h.b16 %v700
        %v2242 = vunpack.c.l.b16 %v701
        %v2243 = vunpack.c.h.b16 %v701
        %v2244 = vunpack.c.l.b16 %v702
        %v2245 = vunpack.c.h.b16 %v702
        %v2246 = vunpack.c.l.b16 %v703
        %v2247 = vunpack.c.h.b16 %v703
        %v2248 = vunpack.c.l.b16 %v704
        %v2249 = vunpack.c.h.b16 %v704
        %v2250 = vunpack.c.l.b16 %v705
        %v2251 = vunpack.c.h.b16 %v705
        %v2252 = vunpack.c.l.b16 %v706
        %v2253 = vunpack.c.h.b16 %v706
        %v2254 = vunpack.c.l.b16 %v707
        %v2255 = vunpack.c.h.b16 %v707
        %v2256 = vunpack.c.l.b16 %v708
        %v2257 = vunpack.c.h.b16 %v708
        %v2258 = vunpack.c.l.b16 %v709
        %v2259 = vunpack.c.h.b16 %v709
        %v2260 = vunpack.c.l.b16 %v710
        %v2261 = vunpack.c.h.b16 %v710
        %v2262 = vunpack.c.l.b16 %v711
        %v2263 = vunpack.c.h.b16 %v711
        %v2264 = vunpack.c.l.b16 %v712
        %v2265 = vunpack.c.h.b16 %v712
        %v2266 = vunpack.c.l.b16 %v713
        %v2267 = vunpack.c.h.b16 %v713
        %v2268 = vunpack.c.l.b16 %v714
        %v2269 = vunpack.c.h.b16 %v714
        %v2270 = vunpack.c.l.b16 %v715
        %v2271 = vunpack.c.h.b16 %v715
        %v2272 = vunpack.c.l.b16 %v716
        %v2273 = vunpack.c.h.b16 %v716
        %v2274 = vunpack.c.l.b16 %v717
        %v2275 = vunpack.c.h.b16 %v717
        %v2276 = vunpack.c.l.b16 %v718
        %v2277 = vunpack.c.h.b16 %v718
        %v2278 = vunpack.c.l.b16 %v719
        %v2279 = vunpack.c.h.b16 %v719
        %v2280 = vunpack.c.l.b16 %v720
        %v2281 = vunpack.c.h.b16 %v720
        %v2282 = vunpack.c.l.b16 %v721
        %v2283 = vunpack.c.h.b16 %v721
        %v2284 = vunpack.c.l.b16 %v722
        %v2285 = vunpack.c.h.b16 %v722
        %v2286 = vunpack.c.l.b16 %v723
        %v2287 = vunpack.c.h.b16 %v723
        %v2288 = vunpack.c.l.b16 %v724
        %v2289 = vunpack.c.h.b16 %v724
        %v2290 = vunpack.c.l.b16 %v725
        %v2291 = vunpack.c.h.b16 %v725
        %v2292 = vunpack.c.l.b16 %v726
        %v2293 = vunpack.c.h.b16 %v726
        %v2294 = vunpack.c.l.b16 %v727
        %v2295 = vunpack.c.h.b16 %v727
        %v2296 = vunpack.c.l.b16 %v728
        %v2297 = vunpack.c.h.b16 %v728
        %v2298 = vunpack.c.l.b16 %v729
        %v2299 = vunpack.c.h.b16 %v729
        %v2300 = vunpack.c.l.b16 %v730
        %v2301 = vunpack.c.h.b16 %v730
        %v2302 = vunpack.c.l.b16 %v731
        %v2303 = vunpack.c.h.b16 %v731
        %v2304 = vunpack.c.l.b16 %v732
        %v2305 = vunpack.c.h.b16 %v732
        %v2306 = vunpack.c.l.b16 %v733
        %v2307 = vunpack.c.h.b16 %v733
        %v2308 = vunpack.c.l.b16 %v734
        %v2309 = vunpack.c.h.b16 %v734
        %v2310 = vunpack.c.l.b16 %v735
        %v2311 = vunpack.c.h.b16 %v735
        %v2312 = vunpack.c.l.b16 %v736
        %v2313 = vunpack.c.h.b16 %v736
        %v2314 = vunpack.c.l.b16 %v737
        %v2315 = vunpack.c.h.b16 %v737
        %v2316 = vunpack.c.l.b16 %v738
        %v2317 = vunpack.c.h.b16 %v738
        %v2318 = vunpack.c.l.b16 %v739
        %v2319 = vunpack.c.h.b16 %v739
        %v2320 = vunpack.c.l.b16 %v740
        %v2321 = vunpack.c.h.b16 %v740
        %v2322 = vunpack.c.l.b16 %v741
        %v2323 = vunpack.c.h.b16 %v741
        %v2324 = vunpack.c.l.b16 %v742
        %v2325 = vunpack.c.h.b16 %v742
        %v2326 = vunpack.c.l.b16 %v743
        %v2327 = vunpack.c.h.b16 %v743
        %v2328 = vunpack.c.l.b16 %v744
        %v2329 = vunpack.c.h.b16 %v744
        %v2330 = vunpack.c.l.b16 %v745
        %v2331 = vunpack.c.h.b16 %v745
        %v2332 = vunpack.c.l.b16 %v746
        %v2333 = vunpack.c.h.b16 %v746
        %v2334 = vunpack.c.l.b16 %v747
        %v2335 = vunpack.c.h.b16 %v747
        %v2336 = vunpack.c.l.b16 %v748
        %v2337 = vunpack.c.h.b16 %v748
        %v2338 = vunpack.c.l.b16 %v749
        %v2339 = vunpack.c.h.b16 %v749
        %v2340 = vunpack.c.l.b16 %v750
        %v2341 = vunpack.c.h.b16 %v750
        %v2342 = vunpack.c.l.b16 %v751
        %v2343 = vunpack.c.h.b16 %v751
        %v2344 = vunpack.c.l.b16 %v752
        %v2345 = vunpack.c.h.b16 %v752
        %v2346 = vunpack.c.l.b16 %v753
        %v2347 = vunpack.c.h.b16 %v753
        %v2348 = vunpack.c.l.b16 %v754
        %v2349 = vunpack.c.h.b16 %v754
        %v2350 = vunpack.c.l.b16 %v755
        %v2351 = vunpack.c.h.b16 %v755
        %v2352 = vunpack.c.l.b16 %v756
        %v2353 = vunpack.c.h.b16 %v756
        %v2354 = vunpack.c.l.b16 %v757
        %v2355 = vunpack.c.h.b16 %v757
        %v2356 = vunpack.c.l.b16 %v758
        %v2357 = vunpack.c.h.b16 %v758
        %v2358 = vunpack.c.l.b16 %v759
        %v2359 = vunpack.c.h.b16 %v759
        %v2360 = vunpack.c.l.b16 %v760
        %v2361 = vunpack.c.h.b16 %v760
        %v2362 = vunpack.c.l.b16 %v761
        %v2363 = vunpack.c.h.b16 %v761
        %v2364 = vunpack.c.l.b16 %v762
        %v2365 = vunpack.c.h.b16 %v762
        %v2366 = vunpack.c.l.b16 %v763
        %v2367 = vunpack.c.h.b16 %v763
        %v2368 = vunpack.c.l.b16 %v764
        %v2369 = vunpack.c.h.b16 %v764
        %v2370 = vunpack.c.l.b16 %v765
        %v2371 = vunpack.c.h.b16 %v765
        %v2372 = vunpack.c.l.b16 %v766
        %v2373 = vunpack.c.h.b16 %v766
        %v2374 = vunpack.c.l.b16 %v767
        %v2375 = vunpack.c.h.b16 %v767
        %v2376 = vpack.c.b16 %v1360, %v1352
        %v2377 = vpack.c.b16 %v1361, %v1353
        %v2378 = vpack.c.b16 %v1362, %v1354
        %v2379 = vpack.c.b16 %v1363, %v1355
        %v2380 = vpack.c.b16 %v1364, %v1356
        %v2381 = vpack.c.b16 %v1365, %v1357
        %v2382 = vpack.c.b16 %v1366, %v1358
        %v2383 = vpack.c.b16 %v1367, %v1359
        %v2384 = vpack.c.b16 %v1376, %v1368
        %v2385 = vpack.c.b16 %v1377, %v1369
        %v2386 = vpack.c.b16 %v1378, %v1370
        %v2387 = vpack.c.b16 %v1379, %v1371
        %v2388 = vpack.c.b16 %v1380, %v1372
        %v2389 = vpack.c.b16 %v1381, %v1373
        %v2390 = vpack.c.b16 %v1382, %v1374
        %v2391 = vpack.c.b16 %v1383, %v1375
        %v2392 = vpack.c.b16 %v1392, %v1384
        %v2393 = vpack.c.b16 %v1393, %v1385
        %v2394 = vpack.c.b16 %v1394, %v1386
        %v2395 = vpack.c.b16 %v1395, %v1387
        %v2396 = vpack.c.b16 %v1396, %v1388
        %v2397 = vpack.c.b16 %v1397, %v1389
        %v2398 = vpack.c.b16 %v1398, %v1390
        %v2399 = vpack.c.b16 %v1399, %v1391
        %v2400 = vpack.c.b16 %v1408, %v1400
        %v2401 = vpack.c.b16 %v1409, %v1401
        %v2402 = vpack.c.b16 %v1410, %v1402
        %v2403 = vpack.c.b16 %v1411, %v1403
        %v2404 = vpack.c.b16 %v1412, %v1404
        %v2405 = vpack.c.b16 %v1413, %v1405
        %v2406 = vpack.c.b16 %v1414, %v1406
        %v2407 = vpack.c.b16 %v1415, %v1407
        %v2408 = vpack.c.b16 %v1424, %v1416
        %v2409 = vpack.c.b16 %v1425, %v1417
        %v2410 = vpack.c.b16 %v1426, %v1418
        %v2411 = vpack.c.b16 %v1427, %v1419
        %v2412 = vpack.c.b16 %v1428, %v1420
        %v2413 = vpack.c.b16 %v1429, %v1421
        %v2414 = vpack.c.b16 %v1430, %v1422
        %v2415 = vpack.c.b16 %v1431, %v1423
        %v2416 = vpack.c.b16 %v1440, %v1432
        %v2417 = vpack.c.b16 %v1441, %v1433
        %v2418 = vpack.c.b16 %v1442, %v1434
        %v2419 = vpack.c.b16 %v1443, %v1435
        %v2420 = vpack.c.b16 %v1444, %v1436
        %v2421 = vpack.c.b16 %v1445, %v1437
        %v2422 = vpack.c.b16 %v1446, %v1438
        %v2423 = vpack.c.b16 %v1447, %v1439
        %v2424 = vpack.c.b16 %v1456, %v1448
        %v2425 = vpack.c.b16 %v1457, %v1449
        %v2426 = vpack.c.b16 %v1458, %v1450
        %v2427 = vpack.c.b16 %v1459, %v1451
        %v2428 = vpack.c.b16 %v1460, %v1452
        %v2429 = vpack.c.b16 %v1461, %v1453
        %v2430 = vpack.c.b16 %v1462, %v1454
        %v2431 = vpack.c.b16 %v1463, %v1455
        %v2432 = vpack.c.b16 %v1472, %v1464
        %v2433 = vpack.c.b16 %v1473, %v1465
        %v2434 = vpack.c.b16 %v1474, %v1466
        %v2435 = vpack.c.b16 %v1475, %v1467
        %v2436 = vpack.c.b16 %v1476, %v1468
        %v2437 = vpack.c.b16 %v1477, %v1469
        %v2438 = vpack.c.b16 %v1478, %v1470
        %v2439 = vpack.c.b16 %v1479, %v1471
        %v2440 = vpack.c.b16 %v1488, %v1480
        %v2441 = vpack.c.b16 %v1489, %v1481
        %v2442 = vpack.c.b16 %v1490, %v1482
        %v2443 = vpack.c.b16 %v1491, %v1483
        %v2444 = vpack.c.b16 %v1492, %v1484
        %v2445 = vpack.c.b16 %v1493, %v1485
        %v2446 = vpack.c.b16 %v1494, %v1486
        %v2447 = vpack.c.b16 %v1495, %v1487
        %v2448 = vpack.c.b16 %v1504, %v1496
        %v2449 = vpack.c.b16 %v1505, %v1497
        %v2450 = vpack.c.b16 %v1506, %v1498
        %v2451 = vpack.c.b16 %v1507, %v1499
        %v2452 = vpack.c.b16 %v1508, %v1500
        %v2453 = vpack.c.b16 %v1509, %v1501
        %v2454 = vpack.c.b16 %v1510, %v1502
        %v2455 = vpack.c.b16 %v1511, %v1503
        %v2456 = vpack.c.b16 %v1520, %v1512
        %v2457 = vpack.c.b16 %v1521, %v1513
        %v2458 = vpack.c.b16 %v1522, %v1514
        %v2459 = vpack.c.b16 %v1523, %v1515
        %v2460 = vpack.c.b16 %v1524, %v1516
        %v2461 = vpack.c.b16 %v1525, %v1517
        %v2462 = vpack.c.b16 %v1526, %v1518
        %v2463 = vpack.c.b16 %v1527, %v1519
        %v2464 = vpack.c.b16 %v1536, %v1528
        %v2465 = vpack.c.b16 %v1537, %v1529
        %v2466 = vpack.c.b16 %v1538, %v1530
        %v2467 = vpack.c.b16 %v1539, %v1531
        %v2468 = vpack.c.b16 %v1540, %v1532
        %v2469 = vpack.c.b16 %v1541, %v1533
        %v2470 = vpack.c.b16 %v1542, %v1534
        %v2471 = vpack.c.b16 %v1543, %v1535
        %v2472 = vpack.c.b16 %v1552, %v1544
        %v2473 = vpack.c.b16 %v1553, %v1545
        %v2474 = vpack.c.b16 %v1554, %v1546
        %v2475 = vpack.c.b16 %v1555, %v1547
        %v2476 = vpack.c.b16 %v1556, %v1548
        %v2477 = vpack.c.b16 %v1557, %v1549
        %v2478 = vpack.c.b16 %v1558, %v1550
        %v2479 = vpack.c.b16 %v1559, %v1551
        %v2480 = vpack.c.b16 %v1568, %v1560
        %v2481 = vpack.c.b16 %v1569, %v1561
        %v2482 = vpack.c.b16 %v1570, %v1562
        %v2483 = vpack.c.b16 %v1571, %v1563
        %v2484 = vpack.c.b16 %v1572, %v1564
        %v2485 = vpack.c.b16 %v1573, %v1565
        %v2486 = vpack.c.b16 %v1574, %v1566
        %v2487 = vpack.c.b16 %v1575, %v1567
        %v2488 = vpack.c.b16 %v1584, %v1576
        %v2489 = vpack.c.b16 %v1585, %v1577
        %v2490 = vpack.c.b16 %v1586, %v1578
        %v2491 = vpack.c.b16 %v1587, %v1579
        %v2492 = vpack.c.b16 %v1588, %v1580
        %v2493 = vpack.c.b16 %v1589, %v1581
        %v2494 = vpack.c.b16 %v1590, %v1582
        %v2495 = vpack.c.b16 %v1591, %v1583
        %v2496 = vpack.c.b16 %v1600, %v1592
        %v2497 = vpack.c.b16 %v1601, %v1593
        %v2498 = vpack.c.b16 %v1602, %v1594
        %v2499 = vpack.c.b16 %v1603, %v1595
        %v2500 = vpack.c.b16 %v1604, %v1596
        %v2501 = vpack.c.b16 %v1605, %v1597
        %v2502 = vpack.c.b16 %v1606, %v1598
        %v2503 = vpack.c.b16 %v1607, %v1599
        %v2504 = vpack.c.b16 %v1616, %v1608
        %v2505 = vpack.c.b16 %v1617, %v1609
        %v2506 = vpack.c.b16 %v1618, %v1610
        %v2507 = vpack.c.b16 %v1619, %v1611
        %v2508 = vpack.c.b16 %v1620, %v1612
        %v2509 = vpack.c.b16 %v1621, %v1613
        %v2510 = vpack.c.b16 %v1622, %v1614
        %v2511 = vpack.c.b16 %v1623, %v1615
        %v2512 = vpack.c.b16 %v1632, %v1624
        %v2513 = vpack.c.b16 %v1633, %v1625
        %v2514 = vpack.c.b16 %v1634, %v1626
        %v2515 = vpack.c.b16 %v1635, %v1627
        %v2516 = vpack.c.b16 %v1636, %v1628
        %v2517 = vpack.c.b16 %v1637, %v1629
        %v2518 = vpack.c.b16 %v1638, %v1630
        %v2519 = vpack.c.b16 %v1639, %v1631
        %v2520 = vpack.c.b16 %v1648, %v1640
        %v2521 = vpack.c.b16 %v1649, %v1641
        %v2522 = vpack.c.b16 %v1650, %v1642
        %v2523 = vpack.c.b16 %v1651, %v1643
        %v2524 = vpack.c.b16 %v1652, %v1644
        %v2525 = vpack.c.b16 %v1653, %v1645
        %v2526 = vpack.c.b16 %v1654, %v1646
        %v2527 = vpack.c.b16 %v1655, %v1647
        %v2528 = vpack.c.b16 %v1664, %v1656
        %v2529 = vpack.c.b16 %v1665, %v1657
        %v2530 = vpack.c.b16 %v1666, %v1658
        %v2531 = vpack.c.b16 %v1667, %v1659
        %v2532 = vpack.c.b16 %v1668, %v1660
        %v2533 = vpack.c.b16 %v1669, %v1661
        %v2534 = vpack.c.b16 %v1670, %v1662
        %v2535 = vpack.c.b16 %v1671, %v1663
        %v2536 = vpack.c.b16 %v1680, %v1672
        %v2537 = vpack.c.b16 %v1681, %v1673
        %v2538 = vpack.c.b16 %v1682, %v1674
        %v2539 = vpack.c.b16 %v1683, %v1675
        %v2540 = vpack.c.b16 %v1684, %v1676
        %v2541 = vpack.c.b16 %v1685, %v1677
        %v2542 = vpack.c.b16 %v1686, %v1678
        %v2543 = vpack.c.b16 %v1687, %v1679
        %v2544 = vpack.c.b16 %v1696, %v1688
        %v2545 = vpack.c.b16 %v1697, %v1689
        %v2546 = vpack.c.b16 %v1698, %v1690
        %v2547 = vpack.c.b16 %v1699, %v1691
        %v2548 = vpack.c.b16 %v1700, %v1692
        %v2549 = vpack.c.b16 %v1701, %v1693
        %v2550 = vpack.c.b16 %v1702, %v1694
        %v2551 = vpack.c.b16 %v1703, %v1695
        %v2552 = vpack.c.b16 %v1712, %v1704
        %v2553 = vpack.c.b16 %v1713, %v1705
        %v2554 = vpack.c.b16 %v1714, %v1706
        %v2555 = vpack.c.b16 %v1715, %v1707
        %v2556 = vpack.c.b16 %v1716, %v1708
        %v2557 = vpack.c.b16 %v1717, %v1709
        %v2558 = vpack.c.b16 %v1718, %v1710
        %v2559 = vpack.c.b16 %v1719, %v1711
        %v2560 = vpack.c.b16 %v1728, %v1720
        %v2561 = vpack.c.b16 %v1729, %v1721
        %v2562 = vpack.c.b16 %v1730, %v1722
        %v2563 = vpack.c.b16 %v1731, %v1723
        %v2564 = vpack.c.b16 %v1732, %v1724
        %v2565 = vpack.c.b16 %v1733, %v1725
        %v2566 = vpack.c.b16 %v1734, %v1726
        %v2567 = vpack.c.b16 %v1735, %v1727
        %v2568 = vpack.c.b16 %v1744, %v1736
        %v2569 = vpack.c.b16 %v1745, %v1737
        %v2570 = vpack.c.b16 %v1746, %v1738
        %v2571 = vpack.c.b16 %v1747, %v1739
        %v2572 = vpack.c.b16 %v1748, %v1740
        %v2573 = vpack.c.b16 %v1749, %v1741
        %v2574 = vpack.c.b16 %v1750, %v1742
        %v2575 = vpack.c.b16 %v1751, %v1743
        %v2576 = vpack.c.b16 %v1760, %v1752
        %v2577 = vpack.c.b16 %v1761, %v1753
        %v2578 = vpack.c.b16 %v1762, %v1754
        %v2579 = vpack.c.b16 %v1763, %v1755
        %v2580 = vpack.c.b16 %v1764, %v1756
        %v2581 = vpack.c.b16 %v1765, %v1757
        %v2582 = vpack.c.b16 %v1766, %v1758
        %v2583 = vpack.c.b16 %v1767, %v1759
        %v2584 = vpack.c.b16 %v1776, %v1768
        %v2585 = vpack.c.b16 %v1777, %v1769
        %v2586 = vpack.c.b16 %v1778, %v1770
        %v2587 = vpack.c.b16 %v1779, %v1771
        %v2588 = vpack.c.b16 %v1780, %v1772
        %v2589 = vpack.c.b16 %v1781, %v1773
        %v2590 = vpack.c.b16 %v1782, %v1774
        %v2591 = vpack.c.b16 %v1783, %v1775
        %v2592 = vpack.c.b16 %v1792, %v1784
        %v2593 = vpack.c.b16 %v1793, %v1785
        %v2594 = vpack.c.b16 %v1794, %v1786
        %v2595 = vpack.c.b16 %v1795, %v1787
        %v2596 = vpack.c.b16 %v1796, %v1788
        %v2597 = vpack.c.b16 %v1797, %v1789
        %v2598 = vpack.c.b16 %v1798, %v1790
        %v2599 = vpack.c.b16 %v1799, %v1791
        %v2600 = vpack.c.b16 %v1808, %v1800
        %v2601 = vpack.c.b16 %v1809, %v1801
        %v2602 = vpack.c.b16 %v1810, %v1802
        %v2603 = vpack.c.b16 %v1811, %v1803
        %v2604 = vpack.c.b16 %v1812, %v1804
        %v2605 = vpack.c.b16 %v1813, %v1805
        %v2606 = vpack.c.b16 %v1814, %v1806
        %v2607 = vpack.c.b16 %v1815, %v1807
        %v2608 = vpack.c.b16 %v1824, %v1816
        %v2609 = vpack.c.b16 %v1825, %v1817
        %v2610 = vpack.c.b16 %v1826, %v1818
        %v2611 = vpack.c.b16 %v1827, %v1819
        %v2612 = vpack.c.b16 %v1828, %v1820
        %v2613 = vpack.c.b16 %v1829, %v1821
        %v2614 = vpack.c.b16 %v1830, %v1822
        %v2615 = vpack.c.b16 %v1831, %v1823
        %v2616 = vpack.c.b16 %v1840, %v1832
        %v2617 = vpack.c.b16 %v1841, %v1833
        %v2618 = vpack.c.b16 %v1842, %v1834
        %v2619 = vpack.c.b16 %v1843, %v1835
        %v2620 = vpack.c.b16 %v1844, %v1836
        %v2621 = vpack.c.b16 %v1845, %v1837
        %v2622 = vpack.c.b16 %v1846, %v1838
        %v2623 = vpack.c.b16 %v1847, %v1839
        %v2624 = vpack.c.b16 %v1856, %v1848
        %v2625 = vpack.c.b16 %v1857, %v1849
        %v2626 = vpack.c.b16 %v1858, %v1850
        %v2627 = vpack.c.b16 %v1859, %v1851
        %v2628 = vpack.c.b16 %v1860, %v1852
        %v2629 = vpack.c.b16 %v1861, %v1853
        %v2630 = vpack.c.b16 %v1862, %v1854
        %v2631 = vpack.c.b16 %v1863, %v1855
        %v2632 = vpack.c.b16 %v1872, %v1864
        %v2633 = vpack.c.b16 %v1873, %v1865
        %v2634 = vpack.c.b16 %v1874, %v1866
        %v2635 = vpack.c.b16 %v1875, %v1867
        %v2636 = vpack.c.b16 %v1876, %v1868
        %v2637 = vpack.c.b16 %v1877, %v1869
        %v2638 = vpack.c.b16 %v1878, %v1870
        %v2639 = vpack.c.b16 %v1879, %v1871
        %v2640 = vpack.c.b16 %v1888, %v1880
        %v2641 = vpack.c.b16 %v1889, %v1881
        %v2642 = vpack.c.b16 %v1890, %v1882
        %v2643 = vpack.c.b16 %v1891, %v1883
        %v2644 = vpack.c.b16 %v1892, %v1884
        %v2645 = vpack.c.b16 %v1893, %v1885
        %v2646 = vpack.c.b16 %v1894, %v1886
        %v2647 = vpack.c.b16 %v1895, %v1887
        %v2648 = vpack.c.b16 %v1904, %v1896
        %v2649 = vpack.c.b16 %v1905, %v1897
        %v2650 = vpack.c.b16 %v1906, %v1898
        %v2651 = vpack.c.b16 %v1907, %v1899
        %v2652 = vpack.c.b16 %v1908, %v1900
        %v2653 = vpack.c.b16 %v1909, %v1901
        %v2654 = vpack.c.b16 %v1910, %v1902
        %v2655 = vpack.c.b16 %v1911, %v1903
        %v2656 = vpack.c.b16 %v1920, %v1912
        %v2657 = vpack.c.b16 %v1921, %v1913
        %v2658 = vpack.c.b16 %v1922, %v1914
        %v2659 = vpack.c.b16 %v1923, %v1915
        %v2660 = vpack.c.b16 %v1924, %v1916
        %v2661 = vpack.c.b16 %v1925, %v1917
        %v2662 = vpack.c.b16 %v1926, %v1918
        %v2663 = vpack.c.b16 %v1927, %v1919
        %v2664 = vpack.c.b16 %v1936, %v1928
        %v2665 = vpack.c.b16 %v1937, %v1929
        %v2666 = vpack.c.b16 %v1938, %v1930
        %v2667 = vpack.c.b16 %v1939, %v1931
        %v2668 = vpack.c.b16 %v1940, %v1932
        %v2669 = vpack.c.b16 %v1941, %v1933
        %v2670 = vpack.c.b16 %v1942, %v1934
        %v2671 = vpack.c.b16 %v1943, %v1935
        %v2672 = vpack.c.b16 %v1952, %v1944
        %v2673 = vpack.c.b16 %v1953, %v1945
        %v2674 = vpack.c.b16 %v1954, %v1946
        %v2675 = vpack.c.b16 %v1955, %v1947
        %v2676 = vpack.c.b16 %v1956, %v1948
        %v2677 = vpack.c.b16 %v1957, %v1949
        %v2678 = vpack.c.b16 %v1958, %v1950
        %v2679 = vpack.c.b16 %v1959, %v1951
        %v2680 = vpack.c.b16 %v1968, %v1960
        %v2681 = vpack.c.b16 %v1969, %v1961
        %v2682 = vpack.c.b16 %v1970, %v1962
        %v2683 = vpack.c.b16 %v1971, %v1963
        %v2684 = vpack.c.b16 %v1972, %v1964
        %v2685 = vpack.c.b16 %v1973, %v1965
        %v2686 = vpack.c.b16 %v1974, %v1966
        %v2687 = vpack.c.b16 %v1975, %v1967
        %v2688 = vpack.c.b16 %v1984, %v1976
        %v2689 = vpack.c.b16 %v1985, %v1977
        %v2690 = vpack.c.b16 %v1986, %v1978
        %v2691 = vpack.c.b16 %v1987, %v1979
        %v2692 = vpack.c.b16 %v1988, %v1980
        %v2693 = vpack.c.b16 %v1989, %v1981
        %v2694 = vpack.c.b16 %v1990, %v1982
        %v2695 = vpack.c.b16 %v1991, %v1983
        %v2696 = vpack.c.b16 %v2000, %v1992
        %v2697 = vpack.c.b16 %v2001, %v1993
        %v2698 = vpack.c.b16 %v2002, %v1994
        %v2699 = vpack.c.b16 %v2003, %v1995
        %v2700 = vpack.c.b16 %v2004, %v1996
        %v2701 = vpack.c.b16 %v2005, %v1997
        %v2702 = vpack.c.b16 %v2006, %v1998
        %v2703 = vpack.c.b16 %v2007, %v1999
        %v2704 = vpack.c.b16 %v2016, %v2008
        %v2705 = vpack.c.b16 %v2017, %v2009
        %v2706 = vpack.c.b16 %v2018, %v2010
        %v2707 = vpack.c.b16 %v2019, %v2011
        %v2708 = vpack.c.b16 %v2020, %v2012
        %v2709 = vpack.c.b16 %v2021, %v2013
        %v2710 = vpack.c.b16 %v2022, %v2014
        %v2711 = vpack.c.b16 %v2023, %v2015
        %v2712 = vpack.c.b16 %v2032, %v2024
        %v2713 = vpack.c.b16 %v2033, %v2025
        %v2714 = vpack.c.b16 %v2034, %v2026
        %v2715 = vpack.c.b16 %v2035, %v2027
        %v2716 = vpack.c.b16 %v2036, %v2028
        %v2717 = vpack.c.b16 %v2037, %v2029
        %v2718 = vpack.c.b16 %v2038, %v2030
        %v2719 = vpack.c.b16 %v2039, %v2031
        %v2720 = vpack.c.b16 %v2048, %v2040
        %v2721 = vpack.c.b16 %v2049, %v2041
        %v2722 = vpack.c.b16 %v2050, %v2042
        %v2723 = vpack.c.b16 %v2051, %v2043
        %v2724 = vpack.c.b16 %v2052, %v2044
        %v2725 = vpack.c.b16 %v2053, %v2045
        %v2726 = vpack.c.b16 %v2054, %v2046
        %v2727 = vpack.c.b16 %v2055, %v2047
        %v2728 = vpack.c.b16 %v2064, %v2056
        %v2729 = vpack.c.b16 %v2065, %v2057
        %v2730 = vpack.c.b16 %v2066, %v2058
        %v2731 = vpack.c.b16 %v2067, %v2059
        %v2732 = vpack.c.b16 %v2068, %v2060
        %v2733 = vpack.c.b16 %v2069, %v2061
        %v2734 = vpack.c.b16 %v2070, %v2062
        %v2735 = vpack.c.b16 %v2071, %v2063
        %v2736 = vpack.c.b16 %v2080, %v2072
        %v2737 = vpack.c.b16 %v2081, %v2073
        %v2738 = vpack.c.b16 %v2082, %v2074
        %v2739 = vpack.c.b16 %v2083, %v2075
        %v2740 = vpack.c.b16 %v2084, %v2076
        %v2741 = vpack.c.b16 %v2085, %v2077
        %v2742 = vpack.c.b16 %v2086, %v2078
        %v2743 = vpack.c.b16 %v2087, %v2079
        %v2744 = vpack.c.b16 %v2096, %v2088
        %v2745 = vpack.c.b16 %v2097, %v2089
        %v2746 = vpack.c.b16 %v2098, %v2090
        %v2747 = vpack.c.b16 %v2099, %v2091
        %v2748 = vpack.c.b16 %v2100, %v2092
        %v2749 = vpack.c.b16 %v2101, %v2093
        %v2750 = vpack.c.b16 %v2102, %v2094
        %v2751 = vpack.c.b16 %v2103, %v2095
        %v2752 = vpack.c.b16 %v2112, %v2104
        %v2753 = vpack.c.b16 %v2113, %v2105
        %v2754 = vpack.c.b16 %v2114, %v2106
        %v2755 = vpack.c.b16 %v2115, %v2107
        %v2756 = vpack.c.b16 %v2116, %v2108
        %v2757 = vpack.c.b16 %v2117, %v2109
        %v2758 = vpack.c.b16 %v2118, %v2110
        %v2759 = vpack.c.b16 %v2119, %v2111
        %v2760 = vpack.c.b16 %v2128, %v2120
        %v2761 = vpack.c.b16 %v2129, %v2121
        %v2762 = vpack.c.b16 %v2130, %v2122
        %v2763 = vpack.c.b16 %v2131, %v2123
        %v2764 = vpack.c.b16 %v2132, %v2124
        %v2765 = vpack.c.b16 %v2133, %v2125
        %v2766 = vpack.c.b16 %v2134, %v2126
        %v2767 = vpack.c.b16 %v2135, %v2127
        %v2768 = vpack.c.b16 %v2144, %v2136
        %v2769 = vpack.c.b16 %v2145, %v2137
        %v2770 = vpack.c.b16 %v2146, %v2138
        %v2771 = vpack.c.b16 %v2147, %v2139
        %v2772 = vpack.c.b16 %v2148, %v2140
        %v2773 = vpack.c.b16 %v2149, %v2141
        %v2774 = vpack.c.b16 %v2150, %v2142
        %v2775 = vpack.c.b16 %v2151, %v2143
        %v2776 = vpack.c.b16 %v2160, %v2152
        %v2777 = vpack.c.b16 %v2161, %v2153
        %v2778 = vpack.c.b16 %v2162, %v2154
        %v2779 = vpack.c.b16 %v2163, %v2155
        %v2780 = vpack.c.b16 %v2164, %v2156
        %v2781 = vpack.c.b16 %v2165, %v2157
        %v2782 = vpack.c.b16 %v2166, %v2158
        %v2783 = vpack.c.b16 %v2167, %v2159
        %v2784 = vpack.c.b16 %v2176, %v2168
        %v2785 = vpack.c.b16 %v2177, %v2169
        %v2786 = vpack.c.b16 %v2178, %v2170
        %v2787 = vpack.c.b16 %v2179, %v2171
        %v2788 = vpack.c.b16 %v2180, %v2172
        %v2789 = vpack.c.b16 %v2181, %v2173
        %v2790 = vpack.c.b16 %v2182, %v2174
        %v2791 = vpack.c.b16 %v2183, %v2175
        %v2792 = vpack.c.b16 %v2192, %v2184
        %v2793 = vpack.c.b16 %v2193, %v2185
        %v2794 = vpack.c.b16 %v2194, %v2186
        %v2795 = vpack.c.b16 %v2195, %v2187
        %v2796 = vpack.c.b16 %v2196, %v2188
        %v2797 = vpack.c.b16 %v2197, %v2189
        %v2798 = vpack.c.b16 %v2198, %v2190
        %v2799 = vpack.c.b16 %v2199, %v2191
        %v2800 = vpack.c.b16 %v2208, %v2200
        %v2801 = vpack.c.b16 %v2209, %v2201
        %v2802 = vpack.c.b16 %v2210, %v2202
        %v2803 = vpack.c.b16 %v2211, %v2203
        %v2804 = vpack.c.b16 %v2212, %v2204
        %v2805 = vpack.c.b16 %v2213, %v2205
        %v2806 = vpack.c.b16 %v2214, %v2206
        %v2807 = vpack.c.b16 %v2215, %v2207
        %v2808 = vpack.c.b16 %v2224, %v2216
        %v2809 = vpack.c.b16 %v2225, %v2217
        %v2810 = vpack.c.b16 %v2226, %v2218
        %v2811 = vpack.c.b16 %v2227, %v2219
        %v2812 = vpack.c.b16 %v2228, %v2220
        %v2813 = vpack.c.b16 %v2229, %v2221
        %v2814 = vpack.c.b16 %v2230, %v2222
        %v2815 = vpack.c.b16 %v2231, %v2223
        %v2816 = vpack.c.b16 %v2240, %v2232
        %v2817 = vpack.c.b16 %v2241, %v2233
        %v2818 = vpack.c.b16 %v2242, %v2234
        %v2819 = vpack.c.b16 %v2243, %v2235
        %v2820 = vpack.c.b16 %v2244, %v2236
        %v2821 = vpack.c.b16 %v2245, %v2237
        %v2822 = vpack.c.b16 %v2246, %v2238
        %v2823 = vpack.c.b16 %v2247, %v2239
        %v2824 = vpack.c.b16 %v2256, %v2248
        %v2825 = vpack.c.b16 %v2257, %v2249
        %v2826 = vpack.c.b16 %v2258, %v2250
        %v2827 = vpack.c.b16 %v2259, %v2251
        %v2828 = vpack.c.b16 %v2260, %v2252
        %v2829 = vpack.c.b16 %v2261, %v2253
        %v2830 = vpack.c.b16 %v2262, %v2254
        %v2831 = vpack.c.b16 %v2263, %v2255
        %v2832 = vpack.c.b16 %v2272, %v2264
        %v2833 = vpack.c.b16 %v2273, %v2265
        %v2834 = vpack.c.b16 %v2274, %v2266
        %v2835 = vpack.c.b16 %v2275, %v2267
        %v2836 = vpack.c.b16 %v2276, %v2268
        %v2837 = vpack.c.b16 %v2277, %v2269
        %v2838 = vpack.c.b16 %v2278, %v2270
        %v2839 = vpack.c.b16 %v2279, %v2271
        %v2840 = vpack.c.b16 %v2288, %v2280
        %v2841 = vpack.c.b16 %v2289, %v2281
        %v2842 = vpack.c.b16 %v2290, %v2282
        %v2843 = vpack.c.b16 %v2291, %v2283
        %v2844 = vpack.c.b16 %v2292, %v2284
        %v2845 = vpack.c.b16 %v2293, %v2285
        %v2846 = vpack.c.b16 %v2294, %v2286
        %v2847 = vpack.c.b16 %v2295, %v2287
        %v2848 = vpack.c.b16 %v2304, %v2296
        %v2849 = vpack.c.b16 %v2305, %v2297
        %v2850 = vpack.c.b16 %v2306, %v2298
        %v2851 = vpack.c.b16 %v2307, %v2299
        %v2852 = vpack.c.b16 %v2308, %v2300
        %v2853 = vpack.c.b16 %v2309, %v2301
        %v2854 = vpack.c.b16 %v2310, %v2302
        %v2855 = vpack.c.b16 %v2311, %v2303
        %v2856 = vpack.c.b16 %v2320, %v2312
        %v2857 = vpack.c.b16 %v2321, %v2313
        %v2858 = vpack.c.b16 %v2322, %v2314
        %v2859 = vpack.c.b16 %v2323, %v2315
        %v2860 = vpack.c.b16 %v2324, %v2316
        %v2861 = vpack.c.b16 %v2325, %v2317
        %v2862 = vpack.c.b16 %v2326, %v2318
        %v2863 = vpack.c.b16 %v2327, %v2319
        %v2864 = vpack.c.b16 %v2336, %v2328
        %v2865 = vpack.c.b16 %v2337, %v2329
        %v2866 = vpack.c.b16 %v2338, %v2330
        %v2867 = vpack.c.b16 %v2339, %v2331
        %v2868 = vpack.c.b16 %v2340, %v2332
        %v2869 = vpack.c.b16 %v2341, %v2333
        %v2870 = vpack.c.b16 %v2342, %v2334
        %v2871 = vpack.c.b16 %v2343, %v2335
        %v2872 = vpack.c.b16 %v2352, %v2344
        %v2873 = vpack.c.b16 %v2353, %v2345
        %v2874 = vpack.c.b16 %v2354, %v2346
        %v2875 = vpack.c.b16 %v2355, %v2347
        %v2876 = vpack.c.b16 %v2356, %v2348
        %v2877 = vpack.c.b16 %v2357, %v2349
        %v2878 = vpack.c.b16 %v2358, %v2350
        %v2879 = vpack.c.b16 %v2359, %v2351
        %v2880 = vpack.c.b16 %v2368, %v2360
        %v2881 = vpack.c.b16 %v2369, %v2361
        %v2882 = vpack.c.b16 %v2370, %v2362
        %v2883 = vpack.c.b16 %v2371, %v2363
        %v2884 = vpack.c.b16 %v2372, %v2364
        %v2885 = vpack.c.b16 %v2373, %v2365
        %v2886 = vpack.c.b16 %v2374, %v2366
        %v2887 = vpack.c.b16 %v2375, %v2367
        %3400 = vmatprep.subr.bf16.mxu0 %v2433
        %3401 = vmatpush1.bf16.msra.mxu0 %v2432
        %3402 = vmatprep.subr.bf16.mxu0 %v2425
        %3403 = vmatpush1.bf16.msra.mxu0 %v2424
        %3404 = vmatprep.subr.bf16.mxu0 %v2417
        %3405 = vmatpush1.bf16.msra.mxu0 %v2416
        %3406 = vmatprep.subr.bf16.mxu0 %v2409
        %3407 = vmatpush1.bf16.msra.mxu0 %v2408
        %3408 = vmatprep.subr.bf16.mxu0 %v2401
        %3409 = vmatpush1.bf16.msra.mxu0 %v2400
        %3410 = vmatprep.subr.bf16.mxu0 %v2393
        %3411 = vmatpush1.bf16.msra.mxu0 %v2392
        %3412 = vmatprep.subr.bf16.mxu0 %v2385
        %3413 = vmatpush1.bf16.msra.mxu0 %v2384
        %3414 = vmatprep.subr.bf16.mxu0 %v2377
        %3415 = vmatpush1.bf16.msra.mxu0 %v2376
        %3416 = vmatprep.subr.bf16.mxu0 %v2497
        %3417 = vmatpush2.bf16.msra.mxu0 %v2496
        %3418 = vmatprep.subr.bf16.mxu0 %v2489
        %3419 = vmatpush2.bf16.msra.mxu0 %v2488
        %3420 = vmatprep.subr.bf16.mxu0 %v2481
        %3421 = vmatpush2.bf16.msra.mxu0 %v2480
        %3422 = vmatprep.subr.bf16.mxu0 %v2473
        %3423 = vmatpush2.bf16.msra.mxu0 %v2472
        %3424 = vmatprep.subr.bf16.mxu0 %v2465
        %3425 = vmatpush2.bf16.msra.mxu0 %v2464
        %3426 = vmatprep.subr.bf16.mxu0 %v2457
        %3427 = vmatpush2.bf16.msra.mxu0 %v2456
        %3428 = vmatprep.subr.bf16.mxu0 %v2449
        %3429 = vmatpush2.bf16.msra.mxu0 %v2448
        %3430 = vmatprep.subr.bf16.mxu0 %v2441
        %3431 = vmatpush2.bf16.msra.mxu0 %v2440
        %3432 = vmatprep.mubr.bf16.mxu0 %v825
        %3433 = vmatmul.mubr.bf16.gmra.mxu0 %v824
        %v3434 = vpop.f32.mrf.mxu0
        %v3435 = vadd.f32 %v775, %v3434
        %v3436 = vpop.f32.mrf.mxu0
        %v3437 = vadd.f32 %v779, %v3436
        %v3438 = vpop.f32.mrf.mxu0
        %v3439 = vpop.f32.mrf.mxu0
        %3440 = vdwg.mxu0
        %3441 = vmatprep.subr.bf16.mxu0 %v2561
        %3442 = vmatpush1.bf16.msra.mxu0 %v2560
        %3443 = vmatprep.subr.bf16.mxu0 %v2553
        %3444 = vmatpush1.bf16.msra.mxu0 %v2552
        %3445 = vmatprep.subr.bf16.mxu0 %v2545
        %3446 = vmatpush1.bf16.msra.mxu0 %v2544
        %3447 = vmatprep.subr.bf16.mxu0 %v2537
        %3448 = vmatpush1.bf16.msra.mxu0 %v2536
        %3449 = vmatprep.subr.bf16.mxu0 %v2529
        %3450 = vmatpush1.bf16.msra.mxu0 %v2528
        %3451 = vmatprep.subr.bf16.mxu0 %v2521
        %3452 = vmatpush1.bf16.msra.mxu0 %v2520
        %3453 = vmatprep.subr.bf16.mxu0 %v2513
        %3454 = vmatpush1.bf16.msra.mxu0 %v2512
        %3455 = vmatprep.subr.bf16.mxu0 %v2505
        %3456 = vmatpush1.bf16.msra.mxu0 %v2504
        %3457 = vmatprep.subr.bf16.mxu0 %v2625
        %3458 = vmatpush2.bf16.msra.mxu0 %v2624
        %3459 = vmatprep.subr.bf16.mxu0 %v2617
        %3460 = vmatpush2.bf16.msra.mxu0 %v2616
        %3461 = vmatprep.subr.bf16.mxu0 %v2609
        %3462 = vmatpush2.bf16.msra.mxu0 %v2608
        %3463 = vmatprep.subr.bf16.mxu0 %v2601
        %3464 = vmatpush2.bf16.msra.mxu0 %v2600
        %3465 = vmatprep.subr.bf16.mxu0 %v2593
        %3466 = vmatpush2.bf16.msra.mxu0 %v2592
        %3467 = vmatprep.subr.bf16.mxu0 %v2585
        %3468 = vmatpush2.bf16.msra.mxu0 %v2584
        %3469 = vmatprep.subr.bf16.mxu0 %v2577
        %3470 = vmatpush2.bf16.msra.mxu0 %v2576
        %3471 = vmatprep.subr.bf16.mxu0 %v2569
        %3472 = vmatpush2.bf16.msra.mxu0 %v2568
        %3473 = vmatprep.mubr.bf16.mxu0 %v827
        %3474 = vmatmul.mubr.bf16.gmra.mxu0 %v826
        %v3475 = vpop.f32.mrf.mxu0
        %v3476 = vadd.f32 %v3435, %v3475
        %v3477 = vpop.f32.mrf.mxu0
        %v3478 = vadd.f32 %v3437, %v3477
        %v3479 = vpop.f32.mrf.mxu0
        %v3480 = vpop.f32.mrf.mxu0
        %3481 = vdwg.mxu0
        %3482 = vmatprep.subr.bf16.mxu0 %v2689
        %3483 = vmatpush1.bf16.msra.mxu0 %v2688
        %3484 = vmatprep.subr.bf16.mxu0 %v2681
        %3485 = vmatpush1.bf16.msra.mxu0 %v2680
        %3486 = vmatprep.subr.bf16.mxu0 %v2673
        %3487 = vmatpush1.bf16.msra.mxu0 %v2672
        %3488 = vmatprep.subr.bf16.mxu0 %v2665
        %3489 = vmatpush1.bf16.msra.mxu0 %v2664
        %3490 = vmatprep.subr.bf16.mxu0 %v2657
        %3491 = vmatpush1.bf16.msra.mxu0 %v2656
        %3492 = vmatprep.subr.bf16.mxu0 %v2649
        %3493 = vmatpush1.bf16.msra.mxu0 %v2648
        %3494 = vmatprep.subr.bf16.mxu0 %v2641
        %3495 = vmatpush1.bf16.msra.mxu0 %v2640
        %3496 = vmatprep.subr.bf16.mxu0 %v2633
        %3497 = vmatpush1.bf16.msra.mxu0 %v2632
        %3498 = vmatprep.subr.bf16.mxu0 %v2753
        %3499 = vmatpush2.bf16.msra.mxu0 %v2752
        %3500 = vmatprep.subr.bf16.mxu0 %v2745
        %3501 = vmatpush2.bf16.msra.mxu0 %v2744
        %3502 = vmatprep.subr.bf16.mxu0 %v2737
        %3503 = vmatpush2.bf16.msra.mxu0 %v2736
        %3504 = vmatprep.subr.bf16.mxu0 %v2729
        %3505 = vmatpush2.bf16.msra.mxu0 %v2728
        %3506 = vmatprep.subr.bf16.mxu0 %v2721
        %3507 = vmatpush2.bf16.msra.mxu0 %v2720
        %3508 = vmatprep.subr.bf16.mxu0 %v2713
        %3509 = vmatpush2.bf16.msra.mxu0 %v2712
        %3510 = vmatprep.subr.bf16.mxu0 %v2705
        %3511 = vmatpush2.bf16.msra.mxu0 %v2704
        %3512 = vmatprep.subr.bf16.mxu0 %v2697
        %3513 = vmatpush2.bf16.msra.mxu0 %v2696
        %3514 = vmatprep.mubr.bf16.mxu0 %v829
        %3515 = vmatmul.mubr.bf16.gmra.mxu0 %v828
        %v3516 = vpop.f32.mrf.mxu0
        %v3517 = vadd.f32 %v3476, %v3516
        %v3518 = vpop.f32.mrf.mxu0
        %v3519 = vadd.f32 %v3478, %v3518
        %v3520 = vpop.f32.mrf.mxu0
        %v3521 = vpop.f32.mrf.mxu0
        %3522 = vdwg.mxu0
        %3523 = vmatprep.subr.bf16.mxu0 %v2817
        %3524 = vmatpush1.bf16.msra.mxu0 %v2816
        %3525 = vmatprep.subr.bf16.mxu0 %v2809
        %3526 = vmatpush1.bf16.msra.mxu0 %v2808
        %3527 = vmatprep.subr.bf16.mxu0 %v2801
        %3528 = vmatpush1.bf16.msra.mxu0 %v2800
        %3529 = vmatprep.subr.bf16.mxu0 %v2793
        %3530 = vmatpush1.bf16.msra.mxu0 %v2792
        %3531 = vmatprep.subr.bf16.mxu0 %v2785
        %3532 = vmatpush1.bf16.msra.mxu0 %v2784
        %3533 = vmatprep.subr.bf16.mxu0 %v2777
        %3534 = vmatpush1.bf16.msra.mxu0 %v2776
        %3535 = vmatprep.subr.bf16.mxu0 %v2769
        %3536 = vmatpush1.bf16.msra.mxu0 %v2768
        %3537 = vmatprep.subr.bf16.mxu0 %v2761
        %3538 = vmatpush1.bf16.msra.mxu0 %v2760
        %3539 = vmatprep.subr.bf16.mxu0 %v2881
        %3540 = vmatpush2.bf16.msra.mxu0 %v2880
        %3541 = vmatprep.subr.bf16.mxu0 %v2873
        %3542 = vmatpush2.bf16.msra.mxu0 %v2872
        %3543 = vmatprep.subr.bf16.mxu0 %v2865
        %3544 = vmatpush2.bf16.msra.mxu0 %v2864
        %3545 = vmatprep.subr.bf16.mxu0 %v2857
        %3546 = vmatpush2.bf16.msra.mxu0 %v2856
        %3547 = vmatprep.subr.bf16.mxu0 %v2849
        %3548 = vmatpush2.bf16.msra.mxu0 %v2848
        %3549 = vmatprep.subr.bf16.mxu0 %v2841
        %3550 = vmatpush2.bf16.msra.mxu0 %v2840
        %3551 = vmatprep.subr.bf16.mxu0 %v2833
        %3552 = vmatpush2.bf16.msra.mxu0 %v2832
        %3553 = vmatprep.subr.bf16.mxu0 %v2825
        %3554 = vmatpush2.bf16.msra.mxu0 %v2824
        %3555 = vmatprep.mubr.bf16.mxu0 %v831
        %3556 = vmatmul.mubr.bf16.gmra.mxu0 %v830
        %v3557 = vpop.f32.mrf.mxu0
        %v3558 = vadd.f32 %v3517, %v3557
        %v3559 = vpop.f32.mrf.mxu0
        %v3560 = vadd.f32 %v3519, %v3559
        %v3561 = vpop.f32.mrf.mxu0
        %v3562 = vpop.f32.mrf.mxu0
        %3563 = vdwg.mxu0
        %3564 = vmatprep.subr.bf16.mxu0 %v2435
        %3565 = vmatpush1.bf16.msra.mxu0 %v2434
        %3566 = vmatprep.subr.bf16.mxu0 %v2427
        %3567 = vmatpush1.bf16.msra.mxu0 %v2426
        %3568 = vmatprep.subr.bf16.mxu0 %v2419
        %3569 = vmatpush1.bf16.msra.mxu0 %v2418
        %3570 = vmatprep.subr.bf16.mxu0 %v2411
        %3571 = vmatpush1.bf16.msra.mxu0 %v2410
        %3572 = vmatprep.subr.bf16.mxu0 %v2403
        %3573 = vmatpush1.bf16.msra.mxu0 %v2402
        %3574 = vmatprep.subr.bf16.mxu0 %v2395
        %3575 = vmatpush1.bf16.msra.mxu0 %v2394
        %3576 = vmatprep.subr.bf16.mxu0 %v2387
        %3577 = vmatpush1.bf16.msra.mxu0 %v2386
        %3578 = vmatprep.subr.bf16.mxu0 %v2379
        %3579 = vmatpush1.bf16.msra.mxu0 %v2378
        %3580 = vmatprep.subr.bf16.mxu0 %v2499
        %3581 = vmatpush2.bf16.msra.mxu0 %v2498
        %3582 = vmatprep.subr.bf16.mxu0 %v2491
        %3583 = vmatpush2.bf16.msra.mxu0 %v2490
        %3584 = vmatprep.subr.bf16.mxu0 %v2483
        %3585 = vmatpush2.bf16.msra.mxu0 %v2482
        %3586 = vmatprep.subr.bf16.mxu0 %v2475
        %3587 = vmatpush2.bf16.msra.mxu0 %v2474
        %3588 = vmatprep.subr.bf16.mxu0 %v2467
        %3589 = vmatpush2.bf16.msra.mxu0 %v2466
        %3590 = vmatprep.subr.bf16.mxu0 %v2459
        %3591 = vmatpush2.bf16.msra.mxu0 %v2458
        %3592 = vmatprep.subr.bf16.mxu0 %v2451
        %3593 = vmatpush2.bf16.msra.mxu0 %v2450
        %3594 = vmatprep.subr.bf16.mxu0 %v2443
        %3595 = vmatpush2.bf16.msra.mxu0 %v2442
        %3596 = vmatprep.mubr.bf16.mxu0 %v825
        %3597 = vmatmul.mubr.bf16.gmra.mxu0 %v824
        %v3598 = vpop.f32.mrf.mxu0
        %v3599 = vadd.f32 %v783, %v3598
        %v3600 = vpop.f32.mrf.mxu0
        %v3601 = vadd.f32 %v787, %v3600
        %v3602 = vpop.f32.mrf.mxu0
        %v3603 = vpop.f32.mrf.mxu0
        %3604 = vdwg.mxu0
        %3605 = vmatprep.subr.bf16.mxu0 %v2563
        %3606 = vmatpush1.bf16.msra.mxu0 %v2562
        %3607 = vmatprep.subr.bf16.mxu0 %v2555
        %3608 = vmatpush1.bf16.msra.mxu0 %v2554
        %3609 = vmatprep.subr.bf16.mxu0 %v2547
        %3610 = vmatpush1.bf16.msra.mxu0 %v2546
        %3611 = vmatprep.subr.bf16.mxu0 %v2539
        %3612 = vmatpush1.bf16.msra.mxu0 %v2538
        %3613 = vmatprep.subr.bf16.mxu0 %v2531
        %3614 = vmatpush1.bf16.msra.mxu0 %v2530
        %3615 = vmatprep.subr.bf16.mxu0 %v2523
        %3616 = vmatpush1.bf16.msra.mxu0 %v2522
        %3617 = vmatprep.subr.bf16.mxu0 %v2515
        %3618 = vmatpush1.bf16.msra.mxu0 %v2514
        %3619 = vmatprep.subr.bf16.mxu0 %v2507
        %3620 = vmatpush1.bf16.msra.mxu0 %v2506
        %3621 = vmatprep.subr.bf16.mxu0 %v2627
        %3622 = vmatpush2.bf16.msra.mxu0 %v2626
        %3623 = vmatprep.subr.bf16.mxu0 %v2619
        %3624 = vmatpush2.bf16.msra.mxu0 %v2618
        %3625 = vmatprep.subr.bf16.mxu0 %v2611
        %3626 = vmatpush2.bf16.msra.mxu0 %v2610
        %3627 = vmatprep.subr.bf16.mxu0 %v2603
        %3628 = vmatpush2.bf16.msra.mxu0 %v2602
        %3629 = vmatprep.subr.bf16.mxu0 %v2595
        %3630 = vmatpush2.bf16.msra.mxu0 %v2594
        %3631 = vmatprep.subr.bf16.mxu0 %v2587
        %3632 = vmatpush2.bf16.msra.mxu0 %v2586
        %3633 = vmatprep.subr.bf16.mxu0 %v2579
        %3634 = vmatpush2.bf16.msra.mxu0 %v2578
        %3635 = vmatprep.subr.bf16.mxu0 %v2571
        %3636 = vmatpush2.bf16.msra.mxu0 %v2570
        %3637 = vmatprep.mubr.bf16.mxu0 %v827
        %3638 = vmatmul.mubr.bf16.gmra.mxu0 %v826
        %v3639 = vpop.f32.mrf.mxu0
        %v3640 = vadd.f32 %v3599, %v3639
        %v3641 = vpop.f32.mrf.mxu0
        %v3642 = vadd.f32 %v3601, %v3641
        %v3643 = vpop.f32.mrf.mxu0
        %v3644 = vpop.f32.mrf.mxu0
        %3645 = vdwg.mxu0
        %3646 = vmatprep.subr.bf16.mxu0 %v2691
        %3647 = vmatpush1.bf16.msra.mxu0 %v2690
        %3648 = vmatprep.subr.bf16.mxu0 %v2683
        %3649 = vmatpush1.bf16.msra.mxu0 %v2682
        %3650 = vmatprep.subr.bf16.mxu0 %v2675
        %3651 = vmatpush1.bf16.msra.mxu0 %v2674
        %3652 = vmatprep.subr.bf16.mxu0 %v2667
        %3653 = vmatpush1.bf16.msra.mxu0 %v2666
        %3654 = vmatprep.subr.bf16.mxu0 %v2659
        %3655 = vmatpush1.bf16.msra.mxu0 %v2658
        %3656 = vmatprep.subr.bf16.mxu0 %v2651
        %3657 = vmatpush1.bf16.msra.mxu0 %v2650
        %3658 = vmatprep.subr.bf16.mxu0 %v2643
        %3659 = vmatpush1.bf16.msra.mxu0 %v2642
        %3660 = vmatprep.subr.bf16.mxu0 %v2635
        %3661 = vmatpush1.bf16.msra.mxu0 %v2634
        %3662 = vmatprep.subr.bf16.mxu0 %v2755
        %3663 = vmatpush2.bf16.msra.mxu0 %v2754
        %3664 = vmatprep.subr.bf16.mxu0 %v2747
        %3665 = vmatpush2.bf16.msra.mxu0 %v2746
        %3666 = vmatprep.subr.bf16.mxu0 %v2739
        %3667 = vmatpush2.bf16.msra.mxu0 %v2738
        %3668 = vmatprep.subr.bf16.mxu0 %v2731
        %3669 = vmatpush2.bf16.msra.mxu0 %v2730
        %3670 = vmatprep.subr.bf16.mxu0 %v2723
        %3671 = vmatpush2.bf16.msra.mxu0 %v2722
        %3672 = vmatprep.subr.bf16.mxu0 %v2715
        %3673 = vmatpush2.bf16.msra.mxu0 %v2714
        %3674 = vmatprep.subr.bf16.mxu0 %v2707
        %3675 = vmatpush2.bf16.msra.mxu0 %v2706
        %3676 = vmatprep.subr.bf16.mxu0 %v2699
        %3677 = vmatpush2.bf16.msra.mxu0 %v2698
        %3678 = vmatprep.mubr.bf16.mxu0 %v829
        %3679 = vmatmul.mubr.bf16.gmra.mxu0 %v828
        %v3680 = vpop.f32.mrf.mxu0
        %v3681 = vadd.f32 %v3640, %v3680
        %v3682 = vpop.f32.mrf.mxu0
        %v3683 = vadd.f32 %v3642, %v3682
        %v3684 = vpop.f32.mrf.mxu0
        %v3685 = vpop.f32.mrf.mxu0
        %3686 = vdwg.mxu0
        %3687 = vmatprep.subr.bf16.mxu0 %v2819
        %3688 = vmatpush1.bf16.msra.mxu0 %v2818
        %3689 = vmatprep.subr.bf16.mxu0 %v2811
        %3690 = vmatpush1.bf16.msra.mxu0 %v2810
        %3691 = vmatprep.subr.bf16.mxu0 %v2803
        %3692 = vmatpush1.bf16.msra.mxu0 %v2802
        %3693 = vmatprep.subr.bf16.mxu0 %v2795
        %3694 = vmatpush1.bf16.msra.mxu0 %v2794
        %3695 = vmatprep.subr.bf16.mxu0 %v2787
        %3696 = vmatpush1.bf16.msra.mxu0 %v2786
        %3697 = vmatprep.subr.bf16.mxu0 %v2779
        %3698 = vmatpush1.bf16.msra.mxu0 %v2778
        %3699 = vmatprep.subr.bf16.mxu0 %v2771
        %3700 = vmatpush1.bf16.msra.mxu0 %v2770
        %3701 = vmatprep.subr.bf16.mxu0 %v2763
        %3702 = vmatpush1.bf16.msra.mxu0 %v2762
        %3703 = vmatprep.subr.bf16.mxu0 %v2883
        %3704 = vmatpush2.bf16.msra.mxu0 %v2882
        %3705 = vmatprep.subr.bf16.mxu0 %v2875
        %3706 = vmatpush2.bf16.msra.mxu0 %v2874
        %3707 = vmatprep.subr.bf16.mxu0 %v2867
        %3708 = vmatpush2.bf16.msra.mxu0 %v2866
        %3709 = vmatprep.subr.bf16.mxu0 %v2859
        %3710 = vmatpush2.bf16.msra.mxu0 %v2858
        %3711 = vmatprep.subr.bf16.mxu0 %v2851
        %3712 = vmatpush2.bf16.msra.mxu0 %v2850
        %3713 = vmatprep.subr.bf16.mxu0 %v2843
        %3714 = vmatpush2.bf16.msra.mxu0 %v2842
        %3715 = vmatprep.subr.bf16.mxu0 %v2835
        %3716 = vmatpush2.bf16.msra.mxu0 %v2834
        %3717 = vmatprep.subr.bf16.mxu0 %v2827
        %3718 = vmatpush2.bf16.msra.mxu0 %v2826
        %3719 = vmatprep.mubr.bf16.mxu0 %v831
        %3720 = vmatmul.mubr.bf16.gmra.mxu0 %v830
        %v3721 = vpop.f32.mrf.mxu0
        %v3722 = vadd.f32 %v3681, %v3721
        %v3723 = vpop.f32.mrf.mxu0
        %v3724 = vadd.f32 %v3683, %v3723
        %v3725 = vpop.f32.mrf.mxu0
        %v3726 = vpop.f32.mrf.mxu0
        %3727 = vdwg.mxu0
        %3728 = vmatprep.subr.bf16.mxu0 %v2437
        %3729 = vmatpush1.bf16.msra.mxu0 %v2436
        %3730 = vmatprep.subr.bf16.mxu0 %v2429
        %3731 = vmatpush1.bf16.msra.mxu0 %v2428
        %3732 = vmatprep.subr.bf16.mxu0 %v2421
        %3733 = vmatpush1.bf16.msra.mxu0 %v2420
        %3734 = vmatprep.subr.bf16.mxu0 %v2413
        %3735 = vmatpush1.bf16.msra.mxu0 %v2412
        %3736 = vmatprep.subr.bf16.mxu0 %v2405
        %3737 = vmatpush1.bf16.msra.mxu0 %v2404
        %3738 = vmatprep.subr.bf16.mxu0 %v2397
        %3739 = vmatpush1.bf16.msra.mxu0 %v2396
        %3740 = vmatprep.subr.bf16.mxu0 %v2389
        %3741 = vmatpush1.bf16.msra.mxu0 %v2388
        %3742 = vmatprep.subr.bf16.mxu0 %v2381
        %3743 = vmatpush1.bf16.msra.mxu0 %v2380
        %3744 = vmatprep.subr.bf16.mxu0 %v2501
        %3745 = vmatpush2.bf16.msra.mxu0 %v2500
        %3746 = vmatprep.subr.bf16.mxu0 %v2493
        %3747 = vmatpush2.bf16.msra.mxu0 %v2492
        %3748 = vmatprep.subr.bf16.mxu0 %v2485
        %3749 = vmatpush2.bf16.msra.mxu0 %v2484
        %3750 = vmatprep.subr.bf16.mxu0 %v2477
        %3751 = vmatpush2.bf16.msra.mxu0 %v2476
        %3752 = vmatprep.subr.bf16.mxu0 %v2469
        %3753 = vmatpush2.bf16.msra.mxu0 %v2468
        %3754 = vmatprep.subr.bf16.mxu0 %v2461
        %3755 = vmatpush2.bf16.msra.mxu0 %v2460
        %3756 = vmatprep.subr.bf16.mxu0 %v2453
        %3757 = vmatpush2.bf16.msra.mxu0 %v2452
        %3758 = vmatprep.subr.bf16.mxu0 %v2445
        %3759 = vmatpush2.bf16.msra.mxu0 %v2444
        %3760 = vmatprep.mubr.bf16.mxu0 %v825
        %3761 = vmatmul.mubr.bf16.gmra.mxu0 %v824
        %v3762 = vpop.f32.mrf.mxu0
        %v3763 = vadd.f32 %v791, %v3762
        %v3764 = vpop.f32.mrf.mxu0
        %v3765 = vadd.f32 %v795, %v3764
        %v3766 = vpop.f32.mrf.mxu0
        %v3767 = vpop.f32.mrf.mxu0
        %3768 = vdwg.mxu0
        %3769 = vmatprep.subr.bf16.mxu0 %v2565
        %3770 = vmatpush1.bf16.msra.mxu0 %v2564
        %3771 = vmatprep.subr.bf16.mxu0 %v2557
        %3772 = vmatpush1.bf16.msra.mxu0 %v2556
        %3773 = vmatprep.subr.bf16.mxu0 %v2549
        %3774 = vmatpush1.bf16.msra.mxu0 %v2548
        %3775 = vmatprep.subr.bf16.mxu0 %v2541
        %3776 = vmatpush1.bf16.msra.mxu0 %v2540
        %3777 = vmatprep.subr.bf16.mxu0 %v2533
        %3778 = vmatpush1.bf16.msra.mxu0 %v2532
        %3779 = vmatprep.subr.bf16.mxu0 %v2525
        %3780 = vmatpush1.bf16.msra.mxu0 %v2524
        %3781 = vmatprep.subr.bf16.mxu0 %v2517
        %3782 = vmatpush1.bf16.msra.mxu0 %v2516
        %3783 = vmatprep.subr.bf16.mxu0 %v2509
        %3784 = vmatpush1.bf16.msra.mxu0 %v2508
        %3785 = vmatprep.subr.bf16.mxu0 %v2629
        %3786 = vmatpush2.bf16.msra.mxu0 %v2628
        %3787 = vmatprep.subr.bf16.mxu0 %v2621
        %3788 = vmatpush2.bf16.msra.mxu0 %v2620
        %3789 = vmatprep.subr.bf16.mxu0 %v2613
        %3790 = vmatpush2.bf16.msra.mxu0 %v2612
        %3791 = vmatprep.subr.bf16.mxu0 %v2605
        %3792 = vmatpush2.bf16.msra.mxu0 %v2604
        %3793 = vmatprep.subr.bf16.mxu0 %v2597
        %3794 = vmatpush2.bf16.msra.mxu0 %v2596
        %3795 = vmatprep.subr.bf16.mxu0 %v2589
        %3796 = vmatpush2.bf16.msra.mxu0 %v2588
        %3797 = vmatprep.subr.bf16.mxu0 %v2581
        %3798 = vmatpush2.bf16.msra.mxu0 %v2580
        %3799 = vmatprep.subr.bf16.mxu0 %v2573
        %3800 = vmatpush2.bf16.msra.mxu0 %v2572
        %3801 = vmatprep.mubr.bf16.mxu0 %v827
        %3802 = vmatmul.mubr.bf16.gmra.mxu0 %v826
        %v3803 = vpop.f32.mrf.mxu0
        %v3804 = vadd.f32 %v3763, %v3803
        %v3805 = vpop.f32.mrf.mxu0
        %v3806 = vadd.f32 %v3765, %v3805
        %v3807 = vpop.f32.mrf.mxu0
        %v3808 = vpop.f32.mrf.mxu0
        %3809 = vdwg.mxu0
        %3810 = vmatprep.subr.bf16.mxu0 %v2693
        %3811 = vmatpush1.bf16.msra.mxu0 %v2692
        %3812 = vmatprep.subr.bf16.mxu0 %v2685
        %3813 = vmatpush1.bf16.msra.mxu0 %v2684
        %3814 = vmatprep.subr.bf16.mxu0 %v2677
        %3815 = vmatpush1.bf16.msra.mxu0 %v2676
        %3816 = vmatprep.subr.bf16.mxu0 %v2669
        %3817 = vmatpush1.bf16.msra.mxu0 %v2668
        %3818 = vmatprep.subr.bf16.mxu0 %v2661
        %3819 = vmatpush1.bf16.msra.mxu0 %v2660
        %3820 = vmatprep.subr.bf16.mxu0 %v2653
        %3821 = vmatpush1.bf16.msra.mxu0 %v2652
        %3822 = vmatprep.subr.bf16.mxu0 %v2645
        %3823 = vmatpush1.bf16.msra.mxu0 %v2644
        %3824 = vmatprep.subr.bf16.mxu0 %v2637
        %3825 = vmatpush1.bf16.msra.mxu0 %v2636
        %3826 = vmatprep.subr.bf16.mxu0 %v2757
        %3827 = vmatpush2.bf16.msra.mxu0 %v2756
        %3828 = vmatprep.subr.bf16.mxu0 %v2749
        %3829 = vmatpush2.bf16.msra.mxu0 %v2748
        %3830 = vmatprep.subr.bf16.mxu0 %v2741
        %3831 = vmatpush2.bf16.msra.mxu0 %v2740
        %3832 = vmatprep.subr.bf16.mxu0 %v2733
        %3833 = vmatpush2.bf16.msra.mxu0 %v2732
        %3834 = vmatprep.subr.bf16.mxu0 %v2725
        %3835 = vmatpush2.bf16.msra.mxu0 %v2724
        %3836 = vmatprep.subr.bf16.mxu0 %v2717
        %3837 = vmatpush2.bf16.msra.mxu0 %v2716
        %3838 = vmatprep.subr.bf16.mxu0 %v2709
        %3839 = vmatpush2.bf16.msra.mxu0 %v2708
        %3840 = vmatprep.subr.bf16.mxu0 %v2701
        %3841 = vmatpush2.bf16.msra.mxu0 %v2700
        %3842 = vmatprep.mubr.bf16.mxu0 %v829
        %3843 = vmatmul.mubr.bf16.gmra.mxu0 %v828
        %v3844 = vpop.f32.mrf.mxu0
        %v3845 = vadd.f32 %v3804, %v3844
        %v3846 = vpop.f32.mrf.mxu0
        %v3847 = vadd.f32 %v3806, %v3846
        %v3848 = vpop.f32.mrf.mxu0
        %v3849 = vpop.f32.mrf.mxu0
        %3850 = vdwg.mxu0
        %3851 = vmatprep.subr.bf16.mxu0 %v2821
        %3852 = vmatpush1.bf16.msra.mxu0 %v2820
        %3853 = vmatprep.subr.bf16.mxu0 %v2813
        %3854 = vmatpush1.bf16.msra.mxu0 %v2812
        %3855 = vmatprep.subr.bf16.mxu0 %v2805
        %3856 = vmatpush1.bf16.msra.mxu0 %v2804
        %3857 = vmatprep.subr.bf16.mxu0 %v2797
        %3858 = vmatpush1.bf16.msra.mxu0 %v2796
        %3859 = vmatprep.subr.bf16.mxu0 %v2789
        %3860 = vmatpush1.bf16.msra.mxu0 %v2788
        %3861 = vmatprep.subr.bf16.mxu0 %v2781
        %3862 = vmatpush1.bf16.msra.mxu0 %v2780
        %3863 = vmatprep.subr.bf16.mxu0 %v2773
        %3864 = vmatpush1.bf16.msra.mxu0 %v2772
        %3865 = vmatprep.subr.bf16.mxu0 %v2765
        %3866 = vmatpush1.bf16.msra.mxu0 %v2764
        %3867 = vmatprep.subr.bf16.mxu0 %v2885
        %3868 = vmatpush2.bf16.msra.mxu0 %v2884
        %3869 = vmatprep.subr.bf16.mxu0 %v2877
        %3870 = vmatpush2.bf16.msra.mxu0 %v2876
        %3871 = vmatprep.subr.bf16.mxu0 %v2869
        %3872 = vmatpush2.bf16.msra.mxu0 %v2868
        %3873 = vmatprep.subr.bf16.mxu0 %v2861
        %3874 = vmatpush2.bf16.msra.mxu0 %v2860
        %3875 = vmatprep.subr.bf16.mxu0 %v2853
        %3876 = vmatpush2.bf16.msra.mxu0 %v2852
        %3877 = vmatprep.subr.bf16.mxu0 %v2845
        %3878 = vmatpush2.bf16.msra.mxu0 %v2844
        %3879 = vmatprep.subr.bf16.mxu0 %v2837
        %3880 = vmatpush2.bf16.msra.mxu0 %v2836
        %3881 = vmatprep.subr.bf16.mxu0 %v2829
        %3882 = vmatpush2.bf16.msra.mxu0 %v2828
        %3883 = vmatprep.mubr.bf16.mxu0 %v831
        %3884 = vmatmul.mubr.bf16.gmra.mxu0 %v830
        %v3885 = vpop.f32.mrf.mxu0
        %v3886 = vadd.f32 %v3845, %v3885
        %v3887 = vpop.f32.mrf.mxu0
        %v3888 = vadd.f32 %v3847, %v3887
        %v3889 = vpop.f32.mrf.mxu0
        %v3890 = vpop.f32.mrf.mxu0
        %3891 = vdwg.mxu0
        %3892 = vmatprep.subr.bf16.mxu0 %v2439
        %3893 = vmatpush1.bf16.msra.mxu0 %v2438
        %3894 = vmatprep.subr.bf16.mxu0 %v2431
        %3895 = vmatpush1.bf16.msra.mxu0 %v2430
        %3896 = vmatprep.subr.bf16.mxu0 %v2423
        %3897 = vmatpush1.bf16.msra.mxu0 %v2422
        %3898 = vmatprep.subr.bf16.mxu0 %v2415
        %3899 = vmatpush1.bf16.msra.mxu0 %v2414
        %3900 = vmatprep.subr.bf16.mxu0 %v2407
        %3901 = vmatpush1.bf16.msra.mxu0 %v2406
        %3902 = vmatprep.subr.bf16.mxu0 %v2399
        %3903 = vmatpush1.bf16.msra.mxu0 %v2398
        %3904 = vmatprep.subr.bf16.mxu0 %v2391
        %3905 = vmatpush1.bf16.msra.mxu0 %v2390
        %3906 = vmatprep.subr.bf16.mxu0 %v2383
        %3907 = vmatpush1.bf16.msra.mxu0 %v2382
        %3908 = vmatprep.subr.bf16.mxu0 %v2503
        %3909 = vmatpush2.bf16.msra.mxu0 %v2502
        %3910 = vmatprep.subr.bf16.mxu0 %v2495
        %3911 = vmatpush2.bf16.msra.mxu0 %v2494
        %3912 = vmatprep.subr.bf16.mxu0 %v2487
        %3913 = vmatpush2.bf16.msra.mxu0 %v2486
        %3914 = vmatprep.subr.bf16.mxu0 %v2479
        %3915 = vmatpush2.bf16.msra.mxu0 %v2478
        %3916 = vmatprep.subr.bf16.mxu0 %v2471
        %3917 = vmatpush2.bf16.msra.mxu0 %v2470
        %3918 = vmatprep.subr.bf16.mxu0 %v2463
        %3919 = vmatpush2.bf16.msra.mxu0 %v2462
        %3920 = vmatprep.subr.bf16.mxu0 %v2455
        %3921 = vmatpush2.bf16.msra.mxu0 %v2454
        %3922 = vmatprep.subr.bf16.mxu0 %v2447
        %3923 = vmatpush2.bf16.msra.mxu0 %v2446
        %3924 = vmatprep.mubr.bf16.mxu0 %v825
        %3925 = vmatmul.mubr.bf16.gmra.mxu0 %v824
        %v3926 = vpop.f32.mrf.mxu0
        %v3927 = vadd.f32 %v799, %v3926
        %v3928 = vpop.f32.mrf.mxu0
        %v3929 = vadd.f32 %v803, %v3928
        %v3930 = vpop.f32.mrf.mxu0
        %v3931 = vpop.f32.mrf.mxu0
        %3932 = vdwg.mxu0
        %3933 = vmatprep.subr.bf16.mxu0 %v2567
        %3934 = vmatpush1.bf16.msra.mxu0 %v2566
        %3935 = vmatprep.subr.bf16.mxu0 %v2559
        %3936 = vmatpush1.bf16.msra.mxu0 %v2558
        %3937 = vmatprep.subr.bf16.mxu0 %v2551
        %3938 = vmatpush1.bf16.msra.mxu0 %v2550
        %3939 = vmatprep.subr.bf16.mxu0 %v2543
        %3940 = vmatpush1.bf16.msra.mxu0 %v2542
        %3941 = vmatprep.subr.bf16.mxu0 %v2535
        %3942 = vmatpush1.bf16.msra.mxu0 %v2534
        %3943 = vmatprep.subr.bf16.mxu0 %v2527
        %3944 = vmatpush1.bf16.msra.mxu0 %v2526
        %3945 = vmatprep.subr.bf16.mxu0 %v2519
        %3946 = vmatpush1.bf16.msra.mxu0 %v2518
        %3947 = vmatprep.subr.bf16.mxu0 %v2511
        %3948 = vmatpush1.bf16.msra.mxu0 %v2510
        %3949 = vmatprep.subr.bf16.mxu0 %v2631
        %3950 = vmatpush2.bf16.msra.mxu0 %v2630
        %3951 = vmatprep.subr.bf16.mxu0 %v2623
        %3952 = vmatpush2.bf16.msra.mxu0 %v2622
        %3953 = vmatprep.subr.bf16.mxu0 %v2615
        %3954 = vmatpush2.bf16.msra.mxu0 %v2614
        %3955 = vmatprep.subr.bf16.mxu0 %v2607
        %3956 = vmatpush2.bf16.msra.mxu0 %v2606
        %3957 = vmatprep.subr.bf16.mxu0 %v2599
        %3958 = vmatpush2.bf16.msra.mxu0 %v2598
        %3959 = vmatprep.subr.bf16.mxu0 %v2591
        %3960 = vmatpush2.bf16.msra.mxu0 %v2590
        %3961 = vmatprep.subr.bf16.mxu0 %v2583
        %3962 = vmatpush2.bf16.msra.mxu0 %v2582
        %3963 = vmatprep.subr.bf16.mxu0 %v2575
        %3964 = vmatpush2.bf16.msra.mxu0 %v2574
        %3965 = vmatprep.mubr.bf16.mxu0 %v827
        %3966 = vmatmul.mubr.bf16.gmra.mxu0 %v826
        %v3967 = vpop.f32.mrf.mxu0
        %v3968 = vadd.f32 %v3927, %v3967
        %v3969 = vpop.f32.mrf.mxu0
        %v3970 = vadd.f32 %v3929, %v3969
        %v3971 = vpop.f32.mrf.mxu0
        %v3972 = vpop.f32.mrf.mxu0
        %3973 = vdwg.mxu0
        %3974 = vmatprep.subr.bf16.mxu0 %v2695
        %3975 = vmatpush1.bf16.msra.mxu0 %v2694
        %3976 = vmatprep.subr.bf16.mxu0 %v2687
        %3977 = vmatpush1.bf16.msra.mxu0 %v2686
        %3978 = vmatprep.subr.bf16.mxu0 %v2679
        %3979 = vmatpush1.bf16.msra.mxu0 %v2678
        %3980 = vmatprep.subr.bf16.mxu0 %v2671
        %3981 = vmatpush1.bf16.msra.mxu0 %v2670
        %3982 = vmatprep.subr.bf16.mxu0 %v2663
        %3983 = vmatpush1.bf16.msra.mxu0 %v2662
        %3984 = vmatprep.subr.bf16.mxu0 %v2655
        %3985 = vmatpush1.bf16.msra.mxu0 %v2654
        %3986 = vmatprep.subr.bf16.mxu0 %v2647
        %3987 = vmatpush1.bf16.msra.mxu0 %v2646
        %3988 = vmatprep.subr.bf16.mxu0 %v2639
        %3989 = vmatpush1.bf16.msra.mxu0 %v2638
        %3990 = vmatprep.subr.bf16.mxu0 %v2759
        %3991 = vmatpush2.bf16.msra.mxu0 %v2758
        %3992 = vmatprep.subr.bf16.mxu0 %v2751
        %3993 = vmatpush2.bf16.msra.mxu0 %v2750
        %3994 = vmatprep.subr.bf16.mxu0 %v2743
        %3995 = vmatpush2.bf16.msra.mxu0 %v2742
        %3996 = vmatprep.subr.bf16.mxu0 %v2735
        %3997 = vmatpush2.bf16.msra.mxu0 %v2734
        %3998 = vmatprep.subr.bf16.mxu0 %v2727
        %3999 = vmatpush2.bf16.msra.mxu0 %v2726
        %4000 = vmatprep.subr.bf16.mxu0 %v2719
        %4001 = vmatpush2.bf16.msra.mxu0 %v2718
        %4002 = vmatprep.subr.bf16.mxu0 %v2711
        %4003 = vmatpush2.bf16.msra.mxu0 %v2710
        %4004 = vmatprep.subr.bf16.mxu0 %v2703
        %4005 = vmatpush2.bf16.msra.mxu0 %v2702
        %4006 = vmatprep.mubr.bf16.mxu0 %v829
        %4007 = vmatmul.mubr.bf16.gmra.mxu0 %v828
        %v4008 = vpop.f32.mrf.mxu0
        %v4009 = vadd.f32 %v3968, %v4008
        %v4010 = vpop.f32.mrf.mxu0
        %v4011 = vadd.f32 %v3970, %v4010
        %v4012 = vpop.f32.mrf.mxu0
        %v4013 = vpop.f32.mrf.mxu0
        %4014 = vdwg.mxu0
        %4015 = vmatprep.subr.bf16.mxu0 %v2823
        %4016 = vmatpush1.bf16.msra.mxu0 %v2822
        %4017 = vmatprep.subr.bf16.mxu0 %v2815
        %4018 = vmatpush1.bf16.msra.mxu0 %v2814
        %4019 = vmatprep.subr.bf16.mxu0 %v2807
        %4020 = vmatpush1.bf16.msra.mxu0 %v2806
        %4021 = vmatprep.subr.bf16.mxu0 %v2799
        %4022 = vmatpush1.bf16.msra.mxu0 %v2798
        %4023 = vmatprep.subr.bf16.mxu0 %v2791
        %4024 = vmatpush1.bf16.msra.mxu0 %v2790
        %4025 = vmatprep.subr.bf16.mxu0 %v2783
        %4026 = vmatpush1.bf16.msra.mxu0 %v2782
        %4027 = vmatprep.subr.bf16.mxu0 %v2775
        %4028 = vmatpush1.bf16.msra.mxu0 %v2774
        %4029 = vmatprep.subr.bf16.mxu0 %v2767
        %4030 = vmatpush1.bf16.msra.mxu0 %v2766
        %4031 = vmatprep.subr.bf16.mxu0 %v2887
        %4032 = vmatpush2.bf16.msra.mxu0 %v2886
        %4033 = vmatprep.subr.bf16.mxu0 %v2879
        %4034 = vmatpush2.bf16.msra.mxu0 %v2878
        %4035 = vmatprep.subr.bf16.mxu0 %v2871
        %4036 = vmatpush2.bf16.msra.mxu0 %v2870
        %4037 = vmatprep.subr.bf16.mxu0 %v2863
        %4038 = vmatpush2.bf16.msra.mxu0 %v2862
        %4039 = vmatprep.subr.bf16.mxu0 %v2855
        %4040 = vmatpush2.bf16.msra.mxu0 %v2854
        %4041 = vmatprep.subr.bf16.mxu0 %v2847
        %4042 = vmatpush2.bf16.msra.mxu0 %v2846
        %4043 = vmatprep.subr.bf16.mxu0 %v2839
        %4044 = vmatpush2.bf16.msra.mxu0 %v2838
        %4045 = vmatprep.subr.bf16.mxu0 %v2831
        %4046 = vmatpush2.bf16.msra.mxu0 %v2830
        %4047 = vmatprep.mubr.bf16.mxu0 %v831
        %4048 = vmatmul.mubr.bf16.gmra.mxu0 %v830
        %v4049 = vpop.f32.mrf.mxu0
        %v4050 = vadd.f32 %v4009, %v4049
        %v4051 = vpop.f32.mrf.mxu0
        %v4052 = vadd.f32 %v4011, %v4051
        %v4053 = vpop.f32.mrf.mxu0
        %v4054 = vpop.f32.mrf.mxu0
        %4055 = vdwg.mxu0
        %p4056 = scmp.ne.s32.totalorder %s19, 4
        // Predicated region
        $region49: #{tpu_custom_call.1} parent=31 // pred_check
          %p4057 = pneg %p4056
        $region50: #{tpu_custom_call.1} parent=31 // pred_check_branch
          %4059 = sbr.rel (%p4057) target = $region52
        $region51: #{tpu_custom_call.1} parent=31 // pred_region
          %v4060 = vpack.c.bf16 %v3558, %v3558
          %v4061 = vpack.c.bf16 %v3560, %v3560
          %v4062 = vpack.c.bf16 %v3722, %v3722
          %v4063 = vpack.c.bf16 %v3724, %v3724
          %v4064 = vpack.c.bf16 %v3886, %v3886
          %v4065 = vpack.c.bf16 %v3888, %v3888
          %v4066 = vpack.c.bf16 %v4050, %v4050
          %v4067 = vpack.c.bf16 %v4052, %v4052
          %v4076 = vunpack.c.l.b16 %v4060
          %v4077 = vunpack.c.l.b16 %v4061
          %v4078 = vunpack.c.l.b16 %v4062
          %v4079 = vunpack.c.l.b16 %v4063
          %v4080 = vunpack.c.l.b16 %v4064
          %v4081 = vunpack.c.l.b16 %v4065
          %v4082 = vunpack.c.l.b16 %v4066
          %v4083 = vunpack.c.l.b16 %v4067
          %v4084 = vpack.c.b16 %v4077, %v4076
          %v4085 = vpack.c.b16 %v4079, %v4078
          %v4086 = vpack.c.b16 %v4081, %v4080
          %v4087 = vpack.c.b16 %v4083, %v4082
          %4092 = vst [vmem:[#allocation2] sm:$0xff] %v4084
          %4093 = vst [vmem:[#allocation2 + $0x8] sm:$0xff] %v4085
          %4094 = vst [vmem:[#allocation2 + $0x10] sm:$0xff] %v4086
          %4095 = vst [vmem:[#allocation2 + $0x18] sm:$0xff] %v4087
        $region52: #{tpu_custom_call.1} parent=31 // pred_fallthru
          _
        %p4096 = scmp.eq.s32.totalorder %s19, 4
        // Predicated region
        $region53: #{tpu_custom_call.1} parent=31 // pred_check
          %p4097 = pneg %p4096
        $region54: #{tpu_custom_call.1} parent=31 // pred_check_branch
          %4099 = sbr.rel (%p4097) target = $region56
        $region55: #{tpu_custom_call.1} parent=31 // pred_region
          %4100 = vst [vmem:[#allocation9] sm:$0xff] %v3558
          %4101 = vst [vmem:[#allocation9 + $0x8] sm:$0xff] %v3560
          %4102 = vst [vmem:[#allocation9 + $0x10] sm:$0xff] %v3722
          %4103 = vst [vmem:[#allocation9 + $0x18] sm:$0xff] %v3724
          %4104 = vst [vmem:[#allocation9 + $0x20] sm:$0xff] %v3886
          %4105 = vst [vmem:[#allocation9 + $0x28] sm:$0xff] %v3888
          %4106 = vst [vmem:[#allocation9 + $0x30] sm:$0xff] %v4050
          %4107 = vst [vmem:[#allocation9 + $0x38] sm:$0xff] %v4052
        $region56: #{tpu_custom_call.1} parent=31 // pred_fallthru
          _
        // Predicated region
        $region57: #{tpu_custom_call.1} parent=31 // pred_check
          %p4108 = pneg %p100
        $region58: #{tpu_custom_call.1} parent=31 // pred_check_branch
          %4110 = sbr.rel (%p4108) target = $region60
        $region59: #{tpu_custom_call.1} parent=31 // pred_region
          %s4112 = ssub.s32 1024, 1024
          %4113 = vsyncadd [#allocation5], %s4112
          %s4115 = sshll.u32 [#allocation9], 4
          %s4116 = int_to_ptr.vmem [resolvable:$true] %s4115
          %4118 = dma.vmem_to_hbm [thread:$0]  %s4116, 1024, %s3, [#allocation5]
        $region60: #{tpu_custom_call.1} parent=31 // pred_fallthru
          _
        // Predicated region
        $region61: #{tpu_custom_call.1} parent=31 // pred_check
          %p4119 = pneg %p100
        $region62: #{tpu_custom_call.1} parent=31 // pred_check_branch
          %4121 = sbr.rel (%p4119) target = $region64
        $region63: #{tpu_custom_call.1} parent=31 // pred_region
          %4122 = dma.done [#allocation5], 1024
        $region64: #{tpu_custom_call.1} parent=31 // pred_fallthru
          _
      $region32: #{tpu_custom_call.1} parent=5 // pred_fallthru
        _
      %p4123 = scmp.le.s32.totalorder 2, %s14
      // Predicated region
      $region65: #{tpu_custom_call.1} parent=5 // pred_check
        %p4124 = pneg %p4123
      $region66: #{tpu_custom_call.1} parent=5 // pred_check_branch
        %4126 = sbr.rel (%p4124) target = $region68
      $region67: #{tpu_custom_call.1} parent=5 // pred_region
        %s4127 = ssub.s32 %s14, 2
      $region68: #{tpu_custom_call.1} parent=5 // pred_fallthru
        _
    $region6: #{tpu_custom_call.1} parent=1 // loop_footer
      %s18 = sadd.s32 1, %s14
    $region7: #{tpu_custom_call.1} parent=1 // loop_footer_branch
      %13 = sbr.rel target = $region3
    $region8: #{tpu_custom_call.1} parent=1 // loop_exit
      _
    %4128 = vsyncpa [#allocation4], 1
    %s4129 = scalar_lea.sflag [#allocation4], 1
    %4130 = vsyncpa %s4129, 1
    %4131 = vsyncpa [#allocation7], 1
    %s4132 = scalar_lea.sflag [#allocation7], 1
    %4133 = vsyncpa %s4132, 1
    %4134 = vsyncpa [#allocation5], 1
    %s4135 = scalar_lea.sflag [#allocation5], 1
    %4136 = vsyncpa %s4135, 1

</llo_original>
